<compile_context>
chip_gen: v7x
topology: tpu7x:2x2x1
jax: 0.10.0
libtpu: 0.0.40
codegen_flags: <defaults>
</compile_context>

<pallas_src>
import functools

import jax
import jax.numpy as jnp
from jax.experimental import pallas as pl
from jax.experimental.pallas import tpu as pltpu

LATENT_DIM = 100
NUM_CLASSES = 10
IN_DIM = LATENT_DIM + NUM_CLASSES          # 110
IN_DIM_PAD = 128                            # zero-pad features to 128 lanes
H1, H2, H3 = 256, 512, 1024
OUT_DIM = 784
OUT_DIM_PAD = 896                           # 7 * 128, lane-dense output
BN_EPS = 1e-5
LRELU_SLOPE = 0.2
BATCH_ALIGN = 16                            # bf16 sublane packing


def _generator_kernel(x_ref,
                      w1_ref, b1_ref, g1_ref, be1_ref,
                      w2_ref, b2_ref, g2_ref, be2_ref,
                      w3_hbm_ref, b3_ref, g3_ref, be3_ref,
                      w4_hbm_ref, b4_ref,
                      o_ref,
                      w3_vmem, w4_vmem, dma_sem,
                      *, real_b):
    b_pad = x_ref.shape[0]                   # static padded batch size
    inv_b = 1.0 / real_b                     # true batch size for BN statistics

    # Start the big weight DMAs (W3 + W4 ~= 2.75 MiB, ~90% of weight bytes) so they overlap
    # with layer-1/2 compute instead of serializing before the body runs.
    cp3 = pltpu.make_async_copy(w3_hbm_ref, w3_vmem, dma_sem.at[0])
    cp4 = pltpu.make_async_copy(w4_hbm_ref, w4_vmem, dma_sem.at[1])
    cp3.start()
    cp4.start()

    # Pad rows must not contaminate the per-batch mean/variance.
    if real_b == b_pad:
        row_mask = None
    else:
        rows = jax.lax.broadcasted_iota(jnp.int32, (b_pad, 1), 0)
        row_mask = (rows < real_b).astype(jnp.float32)

    def lin_lrelu_bn(h_bf16, w, b_ref, g_ref, be_ref):
        # Linear: bf16 x bf16 -> f32 accumulation on the MXU.
        h = jnp.dot(h_bf16, w, preferred_element_type=jnp.float32) + b_ref[...]
        # LeakyReLU(0.2) (slope < 1 => max(h, 0.2*h)).
        h = jnp.maximum(h, LRELU_SLOPE * h)
        # BatchNorm1d (training mode), fused single pass, pad rows masked out of stats:
        #   var = E[h^2] - mean^2;  out = h*scale + shift.
        hm = h if row_mask is None else h * row_mask
        s1 = jnp.sum(hm, axis=0, keepdims=True)
        s2 = jnp.sum(hm * h, axis=0, keepdims=True)
        mean = s1 * inv_b
        var = s2 * inv_b - mean * mean
        scale = g_ref[...] * jax.lax.rsqrt(var + BN_EPS)
        shift = be_ref[...] - mean * scale
        # Keep inter-layer activations in bf16 (matmul input dtype anyway).
        return (h * scale + shift).astype(jnp.bfloat16)

    h = x_ref[...]                            # (B_pad, 128) bf16
    h = lin_lrelu_bn(h, w1_ref[...], b1_ref, g1_ref, be1_ref)
    h = lin_lrelu_bn(h, w2_ref[...], b2_ref, g2_ref, be2_ref)
    cp3.wait()
    h = lin_lrelu_bn(h, w3_vmem[...], b3_ref, g3_ref, be3_ref)
    cp4.wait()
    # Final linear (lane-padded to 896 cols) + Tanh.
    h = jnp.dot(h, w4_vmem[...], preferred_element_type=jnp.float32) + b4_ref[...]
    o_ref[...] = jnp.tanh(h)


def conditional_generator_forward(z, labels, params):
    """z: (B, LATENT_DIM) f32, labels: (B,) int32 -> (B, 1, 28, 28) f32."""
    B = z.shape[0]
    B_pad = ((B + BATCH_ALIGN - 1) // BATCH_ALIGN) * BATCH_ALIGN

    # Embedding lookup + concat (glue, not the hot path).
    emb = jnp.take(params["label_emb"], labels, axis=0)          # (B, NUM_CLASSES)
    x = jnp.concatenate([z, emb], axis=1)                        # (B, IN_DIM)
    # Zero-pad features to 128 lanes (matches zero-padded rows of W1) and batch to a multiple
    # of 16; cast to bf16 once here (halves the x input bytes).
    x = jnp.pad(x, ((0, B_pad - B), (0, IN_DIM_PAD - IN_DIM))).astype(jnp.bfloat16)

    args = (
        x,
        params["w1"], params["b1"], params["g1"], params["be1"],
        params["w2"], params["b2"], params["g2"], params["be2"],
        params["w3"], params["b3"], params["g3"], params["be3"],
        params["w4"], params["b4"],
    )

    # Whole-array VMEM residency, single kernel invocation (no grid -> no double-buffering of
    # constant weights).  W3/W4 stay in HBM and are DMA'd manually (overlapped) in-kernel.
    vmem_spec = pl.BlockSpec(memory_space=pltpu.MemorySpace.VMEM)
    any_spec = pl.BlockSpec(memory_space=pl.ANY)
    in_specs = [vmem_spec] * len(args)
    in_specs[9] = any_spec                    # w3
    in_specs[13] = any_spec                   # w4

    # ~3.1 MiB of weights (W1/W2 resident + W3/W4 scratch) + activations; 16 MiB comfortably
    # covers B_pad <= ~512, give larger batches more headroom (still well under v7x's 64 MiB).
    vmem_limit = (16 << 20) if B_pad <= 512 else (32 << 20)

    out = pl.pallas_call(
        functools.partial(_generator_kernel, real_b=B),
        out_shape=jax.ShapeDtypeStruct((B_pad, OUT_DIM_PAD), jnp.float32),
        in_specs=in_specs,
        out_specs=vmem_spec,
        scratch_shapes=[
            pltpu.VMEM((H2, H3), jnp.bfloat16),          # W3 landing buffer
            pltpu.VMEM((H3, OUT_DIM_PAD), jnp.bfloat16),  # W4 landing buffer
            pltpu.SemaphoreType.DMA((2,)),
        ],
        compiler_params=pltpu.CompilerParams(vmem_limit_bytes=vmem_limit),
    )(*args)

    # Strip batch + lane padding, reshape to NCHW like the PyTorch module's .view(-1,1,28,28).
    return out[:B, :OUT_DIM].reshape(B, 1, 28, 28)


def init_params(key):
    """Deterministic parameter init matching the PyTorch module's shapes.

    Linear weights stored transposed as (in, out), in bfloat16, so the kernel does x @ W on
    the MXU with halved HBM weight bytes. Biases / BN params kept in f32.
    """
    ks = jax.random.split(key, 16)

    def lin(kw, kb, fan_in, fan_out, pad_in=None, pad_out=None):
        bound = 1.0 / jnp.sqrt(fan_in)
        w = jax.random.uniform(kw, (fan_in, fan_out), jnp.float32, -bound, bound)
        b = jax.random.uniform(kb, (1, fan_out), jnp.float32, -bound, bound)
        if pad_in is not None and pad_in > fan_in:
            w = jnp.pad(w, ((0, pad_in - fan_in), (0, 0)))
        if pad_out is not None and pad_out > fan_out:
            w = jnp.pad(w, ((0, 0), (0, pad_out - fan_out)))
            b = jnp.pad(b, ((0, 0), (0, pad_out - fan_out)))
        return w.astype(jnp.bfloat16), b

    params = {}
    params["label_emb"] = jax.random.normal(ks[0], (NUM_CLASSES, NUM_CLASSES), jnp.float32)

    params["w1"], params["b1"] = lin(ks[1], ks[2], IN_DIM, H1, pad_in=IN_DIM_PAD)
    params["g1"] = jnp.ones((1, H1), jnp.float32)
    params["be1"] = jnp.zeros((1, H1), jnp.float32)

    params["w2"], params["b2"] = lin(ks[3], ks[4], H1, H2)
    params["g2"] = jnp.ones((1, H2), jnp.float32)
    params["be2"] = jnp.zeros((1, H2), jnp.float32)

    params["w3"], params["b3"] = lin(ks[5], ks[6], H2, H3)
    params["g3"] = jnp.ones((1, H3), jnp.float32)
    params["be3"] = jnp.zeros((1, H3), jnp.float32)

    params["w4"], params["b4"] = lin(ks[7], ks[8], H3, OUT_DIM, pad_out=OUT_DIM_PAD)
    return params


def _reference_forward(z, labels, params):
    """Pure-JAX reference (same bf16 weights / bf16 matmul inputs, PyTorch-style two-pass
    BatchNorm over the *real* batch, no padding) used to validate the fused-BN kernel math
    and the pad-row masking."""
    emb = jnp.take(params["label_emb"], labels, axis=0)
    h = jnp.concatenate([z, emb], axis=1)
    h = jnp.pad(h, ((0, 0), (0, IN_DIM_PAD - IN_DIM)))

    def block(h, w, b, g, be):
        h = jnp.dot(h.astype(jnp.bfloat16), w, preferred_element_type=jnp.float32) + b
        h = jnp.where(h > 0, h, LRELU_SLOPE * h)
        m = jnp.mean(h, axis=0, keepdims=True)
        v = jnp.mean((h - m) ** 2, axis=0, keepdims=True)
        return (h - m) / jnp.sqrt(v + BN_EPS) * g + be

    h = block(h, params["w1"], params["b1"], params["g1"], params["be1"])
    h = block(h, params["w2"], params["b2"], params["g2"], params["be2"])
    h = block(h, params["w3"], params["b3"], params["g3"], params["be3"])
    h = jnp.tanh(jnp.dot(h.astype(jnp.bfloat16), params["w4"],
                         preferred_element_type=jnp.float32) + params["b4"])
    return h[:, :OUT_DIM].reshape(-1, 1, 28, 28)


if __name__ == "__main__":
    key = jax.random.PRNGKey(0)
    k_params, k_z, k_lab = jax.random.split(key, 3)

    # Small but non-multiple-of-16 batch: exercises the batch-pad + BN-stat-masking path.
    # (For throughput, callers should use B >= 256 per call; the kernel is batch-agnostic.)
    B = 24
    params = init_params(k_params)
    z = jax.random.normal(k_z, (B, LATENT_DIM), jnp.float32)
    labels = jax.random.randint(k_lab, (B,), 0, NUM_CLASSES, dtype=jnp.int32)

    out = conditional_generator_forward(z, labels, params)
    out = jax.block_until_ready(out)

    ref = jax.block_until_ready(_reference_forward(z, labels, params))
    assert out.shape == (B, 1, 28, 28), out.shape
    # bf16 matmuls / bf16 inter-layer activations + fused vs two-pass BN variance
    # => allow a modest tolerance.
    assert jnp.allclose(out, ref, atol=1e-2, rtol=1e-2), "mismatch vs reference"

    print("KERNEL_OK")
</pallas_src>

<mosaic_0001>
module attributes {stable_mosaic.version = 11 : i64} {
  func.func @_generator_kernel(%arg0: memref<32x128xbf16, #tpu.memory_space<vmem>>, %arg1: memref<128x256xbf16, #tpu.memory_space<vmem>>, %arg2: memref<1x256xf32, #tpu.memory_space<vmem>>, %arg3: memref<1x256xf32, #tpu.memory_space<vmem>>, %arg4: memref<1x256xf32, #tpu.memory_space<vmem>>, %arg5: memref<256x512xbf16, #tpu.memory_space<vmem>>, %arg6: memref<1x512xf32, #tpu.memory_space<vmem>>, %arg7: memref<1x512xf32, #tpu.memory_space<vmem>>, %arg8: memref<1x512xf32, #tpu.memory_space<vmem>>, %arg9: memref<512x1024xbf16, #tpu.memory_space<any>>, %arg10: memref<1x1024xf32, #tpu.memory_space<vmem>>, %arg11: memref<1x1024xf32, #tpu.memory_space<vmem>>, %arg12: memref<1x1024xf32, #tpu.memory_space<vmem>>, %arg13: memref<1024x896xbf16, #tpu.memory_space<any>>, %arg14: memref<1x896xf32, #tpu.memory_space<vmem>>, %arg15: memref<32x896xf32, #tpu.memory_space<vmem>>, %arg16: memref<512x1024xbf16, #tpu.memory_space<vmem>>, %arg17: memref<1024x896xbf16, #tpu.memory_space<vmem>>, %arg18: memref<2x!tpu.dma_semaphore, #tpu.memory_space<semaphore_mem>>) attributes {dimension_semantics = [], scalar_prefetch = 0 : i64, scratch_operands = 3 : i64, tpu.core_type = #tpu.core_type<tc>} {
    %c0_i32 = arith.constant 0 : i32
    %0 = tpu.memref_slice %arg18[%c0_i32] : memref<2x!tpu.dma_semaphore, #tpu.memory_space<semaphore_mem>> -> memref<1x!tpu.dma_semaphore, #tpu.memory_space<semaphore_mem>>
    %1 = tpu.memref_squeeze %0 : memref<1x!tpu.dma_semaphore, #tpu.memory_space<semaphore_mem>> -> memref<!tpu.dma_semaphore, #tpu.memory_space<semaphore_mem>>
    tpu.enqueue_dma source(%arg9 : memref<512x1024xbf16, #tpu.memory_space<any>>) target(%arg16 : memref<512x1024xbf16, #tpu.memory_space<vmem>>) target_semaphore(%1 : memref<!tpu.dma_semaphore, #tpu.memory_space<semaphore_mem>>)
    %c1_i32 = arith.constant 1 : i32
    %2 = tpu.memref_slice %arg18[%c1_i32] : memref<2x!tpu.dma_semaphore, #tpu.memory_space<semaphore_mem>> -> memref<1x!tpu.dma_semaphore, #tpu.memory_space<semaphore_mem>>
    %3 = tpu.memref_squeeze %2 : memref<1x!tpu.dma_semaphore, #tpu.memory_space<semaphore_mem>> -> memref<!tpu.dma_semaphore, #tpu.memory_space<semaphore_mem>>
    tpu.enqueue_dma source(%arg13 : memref<1024x896xbf16, #tpu.memory_space<any>>) target(%arg17 : memref<1024x896xbf16, #tpu.memory_space<vmem>>) target_semaphore(%3 : memref<!tpu.dma_semaphore, #tpu.memory_space<semaphore_mem>>)
    %4 = tpu.iota {dimensions = array<i32: 0>} : vector<32x1xi32>
    %c24_i32 = arith.constant 24 : i32
    %5 = vector.broadcast %c24_i32 : i32 to vector<32x1xi32>
    %6 = arith.cmpi slt, %4, %5 : vector<32x1xi32>
    %7 = arith.extui %6 : vector<32x1xi1> to vector<32x1xi32>
    %8 = arith.sitofp %7 : vector<32x1xi32> to vector<32x1xf32>
    %c0 = arith.constant 0 : index
    %c0_0 = arith.constant 0 : index
    %9 = vector.load %arg0[%c0, %c0_0] : memref<32x128xbf16, #tpu.memory_space<vmem>>, vector<32x128xbf16>
    %c0_1 = arith.constant 0 : index
    %c0_2 = arith.constant 0 : index
    %10 = vector.load %arg1[%c0_1, %c0_2] : memref<128x256xbf16, #tpu.memory_space<vmem>>, vector<128x256xbf16>
    %cst = arith.constant dense<0.000000e+00> : vector<32x256xf32>
    %11 = tpu.matmul %9, %10, %cst {dimension_numbers = #tpu.dot_dimension_numbers<[1], [0], [0], [1], [0, 0, 1, 1], [], []>} : vector<32x128xbf16>, vector<128x256xbf16>, vector<32x256xf32> -> vector<32x256xf32>
    %c0_3 = arith.constant 0 : index
    %c0_4 = arith.constant 0 : index
    %12 = vector.load %arg2[%c0_3, %c0_4] : memref<1x256xf32, #tpu.memory_space<vmem>>, vector<1x256xf32>
    %13 = vector.broadcast %12 : vector<1x256xf32> to vector<32x256xf32>
    %14 = arith.addf %11, %13 : vector<32x256xf32>
    %cst_5 = arith.constant 2.000000e-01 : f32
    %15 = vector.broadcast %cst_5 : f32 to vector<32x256xf32>
    %16 = arith.mulf %15, %14 : vector<32x256xf32>
    %17 = arith.maximumf %14, %16 : vector<32x256xf32>
    %18 = vector.broadcast %8 : vector<32x1xf32> to vector<32x256xf32>
    %19 = arith.mulf %17, %18 : vector<32x256xf32>
    %cst_6 = arith.constant dense<0.000000e+00> : vector<256xf32>
    %20 = vector.multi_reduction <add>, %19, %cst_6 [0] : vector<32x256xf32> to vector<256xf32>
    %21 = vector.shape_cast %20 : vector<256xf32> to vector<1x256xf32>
    %22 = arith.mulf %19, %17 : vector<32x256xf32>
    %cst_7 = arith.constant dense<0.000000e+00> : vector<256xf32>
    %23 = vector.multi_reduction <add>, %22, %cst_7 [0] : vector<32x256xf32> to vector<256xf32>
    %24 = vector.shape_cast %23 : vector<256xf32> to vector<1x256xf32>
    %cst_8 = arith.constant 0.0416666679 : f32
    %25 = vector.broadcast %cst_8 : f32 to vector<1x256xf32>
    %26 = arith.mulf %21, %25 : vector<1x256xf32>
    %cst_9 = arith.constant 0.0416666679 : f32
    %27 = vector.broadcast %cst_9 : f32 to vector<1x256xf32>
    %28 = arith.mulf %24, %27 : vector<1x256xf32>
    %29 = arith.mulf %26, %26 : vector<1x256xf32>
    %30 = arith.subf %28, %29 : vector<1x256xf32>
    %c0_10 = arith.constant 0 : index
    %c0_11 = arith.constant 0 : index
    %31 = vector.load %arg3[%c0_10, %c0_11] : memref<1x256xf32, #tpu.memory_space<vmem>>, vector<1x256xf32>
    %cst_12 = arith.constant 9.99999974E-6 : f32
    %32 = vector.broadcast %cst_12 : f32 to vector<1x256xf32>
    %33 = arith.addf %30, %32 : vector<1x256xf32>
    %34 = math.rsqrt %33 : vector<1x256xf32>
    %35 = arith.mulf %31, %34 : vector<1x256xf32>
    %c0_13 = arith.constant 0 : index
    %c0_14 = arith.constant 0 : index
    %36 = vector.load %arg4[%c0_13, %c0_14] : memref<1x256xf32, #tpu.memory_space<vmem>>, vector<1x256xf32>
    %37 = arith.mulf %26, %35 : vector<1x256xf32>
    %38 = arith.subf %36, %37 : vector<1x256xf32>
    %39 = vector.broadcast %35 : vector<1x256xf32> to vector<32x256xf32>
    %40 = arith.mulf %17, %39 : vector<32x256xf32>
    %41 = vector.broadcast %38 : vector<1x256xf32> to vector<32x256xf32>
    %42 = arith.addf %40, %41 : vector<32x256xf32>
    %43 = arith.truncf %42 : vector<32x256xf32> to vector<32x256xbf16>
    %c0_15 = arith.constant 0 : index
    %c0_16 = arith.constant 0 : index
    %44 = vector.load %arg5[%c0_15, %c0_16] : memref<256x512xbf16, #tpu.memory_space<vmem>>, vector<256x512xbf16>
    %cst_17 = arith.constant dense<0.000000e+00> : vector<32x512xf32>
    %45 = tpu.matmul %43, %44, %cst_17 {dimension_numbers = #tpu.dot_dimension_numbers<[1], [0], [0], [1], [0, 0, 1, 1], [], []>} : vector<32x256xbf16>, vector<256x512xbf16>, vector<32x512xf32> -> vector<32x512xf32>
    %c0_18 = arith.constant 0 : index
    %c0_19 = arith.constant 0 : index
    %46 = vector.load %arg6[%c0_18, %c0_19] : memref<1x512xf32, #tpu.memory_space<vmem>>, vector<1x512xf32>
    %47 = vector.broadcast %46 : vector<1x512xf32> to vector<32x512xf32>
    %48 = arith.addf %45, %47 : vector<32x512xf32>
    %cst_20 = arith.constant 2.000000e-01 : f32
    %49 = vector.broadcast %cst_20 : f32 to vector<32x512xf32>
    %50 = arith.mulf %49, %48 : vector<32x512xf32>
    %51 = arith.maximumf %48, %50 : vector<32x512xf32>
    %52 = vector.broadcast %8 : vector<32x1xf32> to vector<32x512xf32>
    %53 = arith.mulf %51, %52 : vector<32x512xf32>
    %cst_21 = arith.constant dense<0.000000e+00> : vector<512xf32>
    %54 = vector.multi_reduction <add>, %53, %cst_21 [0] : vector<32x512xf32> to vector<512xf32>
    %55 = vector.shape_cast %54 : vector<512xf32> to vector<1x512xf32>
    %56 = arith.mulf %53, %51 : vector<32x512xf32>
    %cst_22 = arith.constant dense<0.000000e+00> : vector<512xf32>
    %57 = vector.multi_reduction <add>, %56, %cst_22 [0] : vector<32x512xf32> to vector<512xf32>
    %58 = vector.shape_cast %57 : vector<512xf32> to vector<1x512xf32>
    %cst_23 = arith.constant 0.0416666679 : f32
    %59 = vector.broadcast %cst_23 : f32 to vector<1x512xf32>
    %60 = arith.mulf %55, %59 : vector<1x512xf32>
    %cst_24 = arith.constant 0.0416666679 : f32
    %61 = vector.broadcast %cst_24 : f32 to vector<1x512xf32>
    %62 = arith.mulf %58, %61 : vector<1x512xf32>
    %63 = arith.mulf %60, %60 : vector<1x512xf32>
    %64 = arith.subf %62, %63 : vector<1x512xf32>
    %c0_25 = arith.constant 0 : index
    %c0_26 = arith.constant 0 : index
    %65 = vector.load %arg7[%c0_25, %c0_26] : memref<1x512xf32, #tpu.memory_space<vmem>>, vector<1x512xf32>
    %cst_27 = arith.constant 9.99999974E-6 : f32
    %66 = vector.broadcast %cst_27 : f32 to vector<1x512xf32>
    %67 = arith.addf %64, %66 : vector<1x512xf32>
    %68 = math.rsqrt %67 : vector<1x512xf32>
    %69 = arith.mulf %65, %68 : vector<1x512xf32>
    %c0_28 = arith.constant 0 : index
    %c0_29 = arith.constant 0 : index
    %70 = vector.load %arg8[%c0_28, %c0_29] : memref<1x512xf32, #tpu.memory_space<vmem>>, vector<1x512xf32>
    %71 = arith.mulf %60, %69 : vector<1x512xf32>
    %72 = arith.subf %70, %71 : vector<1x512xf32>
    %73 = vector.broadcast %69 : vector<1x512xf32> to vector<32x512xf32>
    %74 = arith.mulf %51, %73 : vector<32x512xf32>
    %75 = vector.broadcast %72 : vector<1x512xf32> to vector<32x512xf32>
    %76 = arith.addf %74, %75 : vector<32x512xf32>
    %77 = arith.truncf %76 : vector<32x512xf32> to vector<32x512xbf16>
    %c0_i32_30 = arith.constant 0 : i32
    %78 = tpu.memref_slice %arg18[%c0_i32_30] : memref<2x!tpu.dma_semaphore, #tpu.memory_space<semaphore_mem>> -> memref<1x!tpu.dma_semaphore, #tpu.memory_space<semaphore_mem>>
    %79 = tpu.memref_squeeze %78 : memref<1x!tpu.dma_semaphore, #tpu.memory_space<semaphore_mem>> -> memref<!tpu.dma_semaphore, #tpu.memory_space<semaphore_mem>>
    tpu.wait_dma2 semaphore(%79 : memref<!tpu.dma_semaphore, #tpu.memory_space<semaphore_mem>>) src(%arg9 : memref<512x1024xbf16, #tpu.memory_space<any>>) dst(%arg16 : memref<512x1024xbf16, #tpu.memory_space<vmem>>)
    %c0_31 = arith.constant 0 : index
    %c0_32 = arith.constant 0 : index
    %80 = vector.load %arg16[%c0_31, %c0_32] : memref<512x1024xbf16, #tpu.memory_space<vmem>>, vector<512x1024xbf16>
    %cst_33 = arith.constant dense<0.000000e+00> : vector<32x1024xf32>
    %81 = tpu.matmul %77, %80, %cst_33 {dimension_numbers = #tpu.dot_dimension_numbers<[1], [0], [0], [1], [0, 0, 1, 1], [], []>} : vector<32x512xbf16>, vector<512x1024xbf16>, vector<32x1024xf32> -> vector<32x1024xf32>
    %c0_34 = arith.constant 0 : index
    %c0_35 = arith.constant 0 : index
    %82 = vector.load %arg10[%c0_34, %c0_35] : memref<1x1024xf32, #tpu.memory_space<vmem>>, vector<1x1024xf32>
    %83 = vector.broadcast %82 : vector<1x1024xf32> to vector<32x1024xf32>
    %84 = arith.addf %81, %83 : vector<32x1024xf32>
    %cst_36 = arith.constant 2.000000e-01 : f32
    %85 = vector.broadcast %cst_36 : f32 to vector<32x1024xf32>
    %86 = arith.mulf %85, %84 : vector<32x1024xf32>
    %87 = arith.maximumf %84, %86 : vector<32x1024xf32>
    %88 = vector.broadcast %8 : vector<32x1xf32> to vector<32x1024xf32>
    %89 = arith.mulf %87, %88 : vector<32x1024xf32>
    %cst_37 = arith.constant dense<0.000000e+00> : vector<1024xf32>
    %90 = vector.multi_reduction <add>, %89, %cst_37 [0] : vector<32x1024xf32> to vector<1024xf32>
    %91 = vector.shape_cast %90 : vector<1024xf32> to vector<1x1024xf32>
    %92 = arith.mulf %89, %87 : vector<32x1024xf32>
    %cst_38 = arith.constant dense<0.000000e+00> : vector<1024xf32>
    %93 = vector.multi_reduction <add>, %92, %cst_38 [0] : vector<32x1024xf32> to vector<1024xf32>
    %94 = vector.shape_cast %93 : vector<1024xf32> to vector<1x1024xf32>
    %cst_39 = arith.constant 0.0416666679 : f32
    %95 = vector.broadcast %cst_39 : f32 to vector<1x1024xf32>
    %96 = arith.mulf %91, %95 : vector<1x1024xf32>
    %cst_40 = arith.constant 0.0416666679 : f32
    %97 = vector.broadcast %cst_40 : f32 to vector<1x1024xf32>
    %98 = arith.mulf %94, %97 : vector<1x1024xf32>
    %99 = arith.mulf %96, %96 : vector<1x1024xf32>
    %100 = arith.subf %98, %99 : vector<1x1024xf32>
    %c0_41 = arith.constant 0 : index
    %c0_42 = arith.constant 0 : index
    %101 = vector.load %arg11[%c0_41, %c0_42] : memref<1x1024xf32, #tpu.memory_space<vmem>>, vector<1x1024xf32>
    %cst_43 = arith.constant 9.99999974E-6 : f32
    %102 = vector.broadcast %cst_43 : f32 to vector<1x1024xf32>
    %103 = arith.addf %100, %102 : vector<1x1024xf32>
    %104 = math.rsqrt %103 : vector<1x1024xf32>
    %105 = arith.mulf %101, %104 : vector<1x1024xf32>
    %c0_44 = arith.constant 0 : index
    %c0_45 = arith.constant 0 : index
    %106 = vector.load %arg12[%c0_44, %c0_45] : memref<1x1024xf32, #tpu.memory_space<vmem>>, vector<1x1024xf32>
    %107 = arith.mulf %96, %105 : vector<1x1024xf32>
    %108 = arith.subf %106, %107 : vector<1x1024xf32>
    %109 = vector.broadcast %105 : vector<1x1024xf32> to vector<32x1024xf32>
    %110 = arith.mulf %87, %109 : vector<32x1024xf32>
    %111 = vector.broadcast %108 : vector<1x1024xf32> to vector<32x1024xf32>
    %112 = arith.addf %110, %111 : vector<32x1024xf32>
    %113 = arith.truncf %112 : vector<32x1024xf32> to vector<32x1024xbf16>
    %c1_i32_46 = arith.constant 1 : i32
    %114 = tpu.memref_slice %arg18[%c1_i32_46] : memref<2x!tpu.dma_semaphore, #tpu.memory_space<semaphore_mem>> -> memref<1x!tpu.dma_semaphore, #tpu.memory_space<semaphore_mem>>
    %115 = tpu.memref_squeeze %114 : memref<1x!tpu.dma_semaphore, #tpu.memory_space<semaphore_mem>> -> memref<!tpu.dma_semaphore, #tpu.memory_space<semaphore_mem>>
    tpu.wait_dma2 semaphore(%115 : memref<!tpu.dma_semaphore, #tpu.memory_space<semaphore_mem>>) src(%arg13 : memref<1024x896xbf16, #tpu.memory_space<any>>) dst(%arg17 : memref<1024x896xbf16, #tpu.memory_space<vmem>>)
    %c0_47 = arith.constant 0 : index
    %c0_48 = arith.constant 0 : index
    %116 = vector.load %arg17[%c0_47, %c0_48] : memref<1024x896xbf16, #tpu.memory_space<vmem>>, vector<1024x896xbf16>
    %cst_49 = arith.constant dense<0.000000e+00> : vector<32x896xf32>
    %117 = tpu.matmul %113, %116, %cst_49 {dimension_numbers = #tpu.dot_dimension_numbers<[1], [0], [0], [1], [0, 0, 1, 1], [], []>} : vector<32x1024xbf16>, vector<1024x896xbf16>, vector<32x896xf32> -> vector<32x896xf32>
    %c0_50 = arith.constant 0 : index
    %c0_51 = arith.constant 0 : index
    %118 = vector.load %arg14[%c0_50, %c0_51] : memref<1x896xf32, #tpu.memory_space<vmem>>, vector<1x896xf32>
    %119 = vector.broadcast %118 : vector<1x896xf32> to vector<32x896xf32>
    %120 = arith.addf %117, %119 : vector<32x896xf32>
    %121 = math.tanh %120 : vector<32x896xf32>
    %c0_52 = arith.constant 0 : index
    %c0_53 = arith.constant 0 : index
    %122 = vector.load %arg15[%c0_52, %c0_53] : memref<32x896xf32, #tpu.memory_space<vmem>>, vector<32x896xf32>
    tpu.vector_store %arg15[%c0_52, %c0_53], %121 {strides = array<i32>} : memref<32x896xf32, #tpu.memory_space<vmem>>, vector<32x896xf32>,
    return
  }
}

</mosaic_0001>

<llo_original>
// kernel: tpu_custom_call.1
$region0: #{tpu_custom_call.1}
  #allocation0 [shape = 'u32[]', space=smem, size = 0x4, offset = 0x4, fixed_abs, tag = 'smem constant byte address 0x4 - core index']
  #allocation1 [shape = 'u32[144,128]{1,0:T(1,128)}', space=vmem, size = 0x12000, scoped, tag = 'internal scratch']
  #allocation2 [shape = 'bf16[512,1024]{1,0:T(16,128)(2,1)}', space=vmem, size = 0x100000, scoped, tag = 'scratch operand']
  #allocation3 [shape = 'bf16[1024,896]{1,0:T(16,128)(2,1)}', space=vmem, size = 0x1c0000, scoped, tag = 'scratch operand']
  #allocation4 [shape = 's32[2]{0}', space=sflag, size = 0x8, scoped, tag = 'scratch operand']
  #allocation27 [shape = 's32[]', space=sflag, size = 0x4, offset = 0, fixed_abs, tag = 'sflag constant byte address 0x0 - dummy sync flag']
  #allocation29 [shape = 's32[]', space=sflag, size = 0x4, offset = 0, fixed_abs, tag = 'sflag constant byte address 0x0 - dummy sync flag']
  %s0 = inlined_call_operand.hbm [shape: bf16[32,128], index: 0, kind: input, shape index: {}]
  %s1 = inlined_call_operand.hbm [shape: bf16[128,256], index: 1, kind: input, shape index: {}]
  %s2 = inlined_call_operand.hbm [shape: f32[1,256], index: 2, kind: input, shape index: {}]
  %s3 = inlined_call_operand.hbm [shape: f32[1,256], index: 3, kind: input, shape index: {}]
  %s4 = inlined_call_operand.hbm [shape: f32[1,256], index: 4, kind: input, shape index: {}]
  %s5 = inlined_call_operand.hbm [shape: bf16[256,512], index: 5, kind: input, shape index: {}]
  %s6 = inlined_call_operand.hbm [shape: f32[1,512], index: 6, kind: input, shape index: {}]
  %s7 = inlined_call_operand.hbm [shape: f32[1,512], index: 7, kind: input, shape index: {}]
  %s8 = inlined_call_operand.hbm [shape: f32[1,512], index: 8, kind: input, shape index: {}]
  %s9 = inlined_call_operand.hbm [shape: bf16[512,1024], index: 9, kind: input, shape index: {}]
  %s10 = inlined_call_operand.hbm [shape: f32[1,1024], index: 10, kind: input, shape index: {}]
  %s11 = inlined_call_operand.hbm [shape: f32[1,1024], index: 11, kind: input, shape index: {}]
  %s12 = inlined_call_operand.hbm [shape: f32[1,1024], index: 12, kind: input, shape index: {}]
  %s13 = inlined_call_operand.hbm [shape: bf16[1024,896], index: 13, kind: input, shape index: {}]
  %s14 = inlined_call_operand.hbm [shape: f32[1,896], index: 14, kind: input, shape index: {}]
  %s15 = inlined_call_operand.hbm [shape: f32[32,896], index: 15, kind: output, shape index: {}]
  %s16 = sld [smem:[#allocation0]]
  $region114: #{tpu_custom_call.1} parent=0
    _
  %s18 = ssub.s32 1, %s16
  %s19 = scalar_select 0, %s18, %s16
  $region1: #{tpu_custom_call.1} parent=0
    #allocation5 [shape = 'u8[8192]{0}', space=vmem, size = 0x2000, scoped, tag = 'input window, operand 0, single buffered']
    #allocation6 [shape = 's32[1]{0}', space=sflag, size = 0x4, scoped, tag = 'scoped memory for tpu_custom_call.1']
    #allocation7 [shape = 's32[1]{0}', space=sflag, size = 0x4, scoped, tag = 'scoped memory for tpu_custom_call.1']
    #allocation8 [shape = 'u8[65536]{0}', space=vmem, size = 0x10000, scoped, tag = 'input window, operand 1, single buffered']
    #allocation9 [shape = 's32[1]{0}', space=sflag, size = 0x4, scoped, tag = 'scoped memory for tpu_custom_call.1']
    #allocation10 [shape = 'u8[1024]{0}', space=vmem, size = 0x400, scoped, tag = 'input window, operand 2, single buffered']
    #allocation11 [shape = 'u8[1024]{0}', space=vmem, size = 0x400, scoped, tag = 'input window, operand 3, single buffered']
    #allocation12 [shape = 's32[1]{0}', space=sflag, size = 0x4, scoped, tag = 'scoped memory for tpu_custom_call.1']
    #allocation13 [shape = 'u8[1024]{0}', space=vmem, size = 0x400, scoped, tag = 'input window, operand 4, single buffered']
    #allocation14 [shape = 'u8[262144]{0}', space=vmem, size = 0x40000, scoped, tag = 'input window, operand 5, single buffered']
    #allocation15 [shape = 's32[1]{0}', space=sflag, size = 0x4, scoped, tag = 'scoped memory for tpu_custom_call.1']
    #allocation16 [shape = 'u8[2048]{0}', space=vmem, size = 0x800, scoped, tag = 'input window, operand 6, single buffered']
    #allocation17 [shape = 'u8[2048]{0}', space=vmem, size = 0x800, scoped, tag = 'input window, operand 7, single buffered']
    #allocation18 [shape = 's32[1]{0}', space=sflag, size = 0x4, scoped, tag = 'scoped memory for tpu_custom_call.1']
    #allocation19 [shape = 'u8[2048]{0}', space=vmem, size = 0x800, scoped, tag = 'input window, operand 8, single buffered']
    #allocation20 [shape = 'u8[4096]{0}', space=vmem, size = 0x1000, scoped, tag = 'input window, operand 10, single buffered']
    #allocation21 [shape = 's32[1]{0}', space=sflag, size = 0x4, scoped, tag = 'scoped memory for tpu_custom_call.1']
    #allocation22 [shape = 'u8[4096]{0}', space=vmem, size = 0x1000, scoped, tag = 'input window, operand 11, single buffered']
    #allocation23 [shape = 'u8[4096]{0}', space=vmem, size = 0x1000, scoped, tag = 'input window, operand 12, single buffered']
    #allocation24 [shape = 's32[1]{0}', space=sflag, size = 0x4, scoped, tag = 'scoped memory for tpu_custom_call.1']
    #allocation25 [shape = 'u8[3584]{0}', space=vmem, size = 0x1000, scoped, tag = 'input window, operand 14, single buffered']
    #allocation26 [shape = 'u8[114688]{0}', space=vmem, size = 0x1c000, scoped, tag = 'output window, operand 0, single buffered']
    #allocation28 [shape = 'u32[9]{0}', space=smem, size = 0x24, scoped, tag = 'DMA stride descriptor']
    #allocation30 [shape = 'u32[9]{0}', space=smem, size = 0x24, scoped, tag = 'DMA stride descriptor']
    %20 = vsyncpa [#allocation6], 0
    %21 = vsyncpa [#allocation9], 0
    %22 = vsyncpa [#allocation12], 0
    %23 = vsyncpa [#allocation15], 0
    %24 = vsyncpa [#allocation18], 0
    %25 = vsyncpa [#allocation21], 0
    %26 = vsyncpa [#allocation24], 0
    %27 = vsyncpa [#allocation7], 0
    // Predicated region
    $region2: #{tpu_custom_call.1} parent=1 // pred_check
      _
    $region3: #{tpu_custom_call.1} parent=1 // pred_check_branch
      %29 = sbr.rel (0) target = $region5
    $region4: #{tpu_custom_call.1} parent=1 // pred_region
      %s31 = ssub.s32 256, 256
      %32 = vsyncadd [#allocation6], %s31
      %s33 = sshll.u32 [#allocation5], 4
      %s34 = int_to_ptr.vmem [resolvable:$true] %s33
      %39 = dma.hbm_to_vmem [thread:$0]  %s0, 256, %s34, [#allocation6], 64, 64, 4
    $region5: #{tpu_custom_call.1} parent=1 // pred_fallthru
      _
    // Predicated region
    $region6: #{tpu_custom_call.1} parent=1 // pred_check
      _
    $region7: #{tpu_custom_call.1} parent=1 // pred_check_branch
      %41 = sbr.rel (0) target = $region9
    $region8: #{tpu_custom_call.1} parent=1 // pred_region
      %s43 = ssub.s32 2048, 2048
      %44 = vsyncadd [#allocation9], %s43
      %s45 = sshll.u32 [#allocation8], 4
      %s46 = int_to_ptr.vmem [resolvable:$true] %s45
      %51 = dma.hbm_to_vmem [thread:$0]  %s1, 2048, %s46, [#allocation9], 128, 128, 8
    $region9: #{tpu_custom_call.1} parent=1 // pred_fallthru
      _
    // Predicated region
    $region10: #{tpu_custom_call.1} parent=1 // pred_check
      _
    $region11: #{tpu_custom_call.1} parent=1 // pred_check_branch
      %53 = sbr.rel (0) target = $region13
    $region12: #{tpu_custom_call.1} parent=1 // pred_region
      %s55 = ssub.s32 32, 32
      %56 = vsyncadd [#allocation9], %s55
      %s58 = sshll.u32 [#allocation10], 4
      %s59 = int_to_ptr.vmem [resolvable:$true] %s58
      %61 = dma.hbm_to_vmem [thread:$0]  %s2, 32, %s59, [#allocation9]
    $region13: #{tpu_custom_call.1} parent=1 // pred_fallthru
      _
    // Predicated region
    $region14: #{tpu_custom_call.1} parent=1 // pred_check
      _
    $region15: #{tpu_custom_call.1} parent=1 // pred_check_branch
      %63 = sbr.rel (0) target = $region17
    $region16: #{tpu_custom_call.1} parent=1 // pred_region
      %s65 = ssub.s32 32, 32
      %66 = vsyncadd [#allocation12], %s65
      %s68 = sshll.u32 [#allocation11], 4
      %s69 = int_to_ptr.vmem [resolvable:$true] %s68
      %71 = dma.hbm_to_vmem [thread:$0]  %s3, 32, %s69, [#allocation12]
    $region17: #{tpu_custom_call.1} parent=1 // pred_fallthru
      _
    // Predicated region
    $region18: #{tpu_custom_call.1} parent=1 // pred_check
      _
    $region19: #{tpu_custom_call.1} parent=1 // pred_check_branch
      %73 = sbr.rel (0) target = $region21
    $region20: #{tpu_custom_call.1} parent=1 // pred_region
      %s75 = ssub.s32 32, 32
      %76 = vsyncadd [#allocation12], %s75
      %s78 = sshll.u32 [#allocation13], 4
      %s79 = int_to_ptr.vmem [resolvable:$true] %s78
      %81 = dma.hbm_to_vmem [thread:$0]  %s4, 32, %s79, [#allocation12]
    $region21: #{tpu_custom_call.1} parent=1 // pred_fallthru
      _
    // Predicated region
    $region22: #{tpu_custom_call.1} parent=1 // pred_check
      _
    $region23: #{tpu_custom_call.1} parent=1 // pred_check_branch
      %83 = sbr.rel (0) target = $region25
    $region24: #{tpu_custom_call.1} parent=1 // pred_region
      %s85 = ssub.s32 8192, 8192
      %86 = vsyncadd [#allocation15], %s85
      %s87 = sshll.u32 [#allocation14], 4
      %s88 = int_to_ptr.vmem [resolvable:$true] %s87
      %93 = dma.hbm_to_vmem [thread:$0]  %s5, 8192, %s88, [#allocation15], 256, 256, 16
    $region25: #{tpu_custom_call.1} parent=1 // pred_fallthru
      _
    // Predicated region
    $region26: #{tpu_custom_call.1} parent=1 // pred_check
      _
    $region27: #{tpu_custom_call.1} parent=1 // pred_check_branch
      %95 = sbr.rel (0) target = $region29
    $region28: #{tpu_custom_call.1} parent=1 // pred_region
      %s97 = ssub.s32 64, 64
      %98 = vsyncadd [#allocation15], %s97
      %s100 = sshll.u32 [#allocation16], 4
      %s101 = int_to_ptr.vmem [resolvable:$true] %s100
      %103 = dma.hbm_to_vmem [thread:$0]  %s6, 64, %s101, [#allocation15]
    $region29: #{tpu_custom_call.1} parent=1 // pred_fallthru
      _
    // Predicated region
    $region30: #{tpu_custom_call.1} parent=1 // pred_check
      _
    $region31: #{tpu_custom_call.1} parent=1 // pred_check_branch
      %105 = sbr.rel (0) target = $region33
    $region32: #{tpu_custom_call.1} parent=1 // pred_region
      %s107 = ssub.s32 64, 64
      %108 = vsyncadd [#allocation18], %s107
      %s110 = sshll.u32 [#allocation17], 4
      %s111 = int_to_ptr.vmem [resolvable:$true] %s110
      %113 = dma.hbm_to_vmem [thread:$0]  %s7, 64, %s111, [#allocation18]
    $region33: #{tpu_custom_call.1} parent=1 // pred_fallthru
      _
    // Predicated region
    $region34: #{tpu_custom_call.1} parent=1 // pred_check
      _
    $region35: #{tpu_custom_call.1} parent=1 // pred_check_branch
      %115 = sbr.rel (0) target = $region37
    $region36: #{tpu_custom_call.1} parent=1 // pred_region
      %s117 = ssub.s32 64, 64
      %118 = vsyncadd [#allocation18], %s117
      %s120 = sshll.u32 [#allocation19], 4
      %s121 = int_to_ptr.vmem [resolvable:$true] %s120
      %123 = dma.hbm_to_vmem [thread:$0]  %s8, 64, %s121, [#allocation18]
    $region37: #{tpu_custom_call.1} parent=1 // pred_fallthru
      _
    // Predicated region
    $region38: #{tpu_custom_call.1} parent=1 // pred_check
      _
    $region39: #{tpu_custom_call.1} parent=1 // pred_check_branch
      %125 = sbr.rel (0) target = $region41
    $region40: #{tpu_custom_call.1} parent=1 // pred_region
      %s127 = ssub.s32 128, 128
      %128 = vsyncadd [#allocation21], %s127
      %s130 = sshll.u32 [#allocation20], 4
      %s131 = int_to_ptr.vmem [resolvable:$true] %s130
      %133 = dma.hbm_to_vmem [thread:$0]  %s10, 128, %s131, [#allocation21]
    $region41: #{tpu_custom_call.1} parent=1 // pred_fallthru
      _
    // Predicated region
    $region42: #{tpu_custom_call.1} parent=1 // pred_check
      _
    $region43: #{tpu_custom_call.1} parent=1 // pred_check_branch
      %135 = sbr.rel (0) target = $region45
    $region44: #{tpu_custom_call.1} parent=1 // pred_region
      %s137 = ssub.s32 128, 128
      %138 = vsyncadd [#allocation21], %s137
      %s140 = sshll.u32 [#allocation22], 4
      %s141 = int_to_ptr.vmem [resolvable:$true] %s140
      %143 = dma.hbm_to_vmem [thread:$0]  %s11, 128, %s141, [#allocation21]
    $region45: #{tpu_custom_call.1} parent=1 // pred_fallthru
      _
    // Predicated region
    $region46: #{tpu_custom_call.1} parent=1 // pred_check
      _
    $region47: #{tpu_custom_call.1} parent=1 // pred_check_branch
      %145 = sbr.rel (0) target = $region49
    $region48: #{tpu_custom_call.1} parent=1 // pred_region
      %s147 = ssub.s32 128, 128
      %148 = vsyncadd [#allocation24], %s147
      %s150 = sshll.u32 [#allocation23], 4
      %s151 = int_to_ptr.vmem [resolvable:$true] %s150
      %153 = dma.hbm_to_vmem [thread:$0]  %s12, 128, %s151, [#allocation24]
    $region49: #{tpu_custom_call.1} parent=1 // pred_fallthru
      _
    // Predicated region
    $region50: #{tpu_custom_call.1} parent=1 // pred_check
      _
    $region51: #{tpu_custom_call.1} parent=1 // pred_check_branch
      %155 = sbr.rel (0) target = $region53
    $region52: #{tpu_custom_call.1} parent=1 // pred_region
      %s157 = ssub.s32 112, 112
      %158 = vsyncadd [#allocation24], %s157
      %s160 = sshll.u32 [#allocation25], 4
      %s161 = int_to_ptr.vmem [resolvable:$true] %s160
      %163 = dma.hbm_to_vmem [thread:$0]  %s14, 112, %s161, [#allocation24]
    $region53: #{tpu_custom_call.1} parent=1 // pred_fallthru
      _
    // Predicated region
    $region54: #{tpu_custom_call.1} parent=1 // pred_check
      _
    $region55: #{tpu_custom_call.1} parent=1 // pred_check_branch
      %165 = sbr.rel (0) target = $region57
    $region56: #{tpu_custom_call.1} parent=1 // pred_region
      %166 = dma.done [#allocation6], 256
    $region57: #{tpu_custom_call.1} parent=1 // pred_fallthru
      _
    // Predicated region
    $region58: #{tpu_custom_call.1} parent=1 // pred_check
      _
    $region59: #{tpu_custom_call.1} parent=1 // pred_check_branch
      %168 = sbr.rel (0) target = $region61
    $region60: #{tpu_custom_call.1} parent=1 // pred_region
      %169 = dma.done [#allocation9], 2048
    $region61: #{tpu_custom_call.1} parent=1 // pred_fallthru
      _
    // Predicated region
    $region62: #{tpu_custom_call.1} parent=1 // pred_check
      _
    $region63: #{tpu_custom_call.1} parent=1 // pred_check_branch
      %171 = sbr.rel (0) target = $region65
    $region64: #{tpu_custom_call.1} parent=1 // pred_region
      %172 = dma.done [#allocation9], 32
    $region65: #{tpu_custom_call.1} parent=1 // pred_fallthru
      _
    // Predicated region
    $region66: #{tpu_custom_call.1} parent=1 // pred_check
      _
    $region67: #{tpu_custom_call.1} parent=1 // pred_check_branch
      %174 = sbr.rel (0) target = $region69
    $region68: #{tpu_custom_call.1} parent=1 // pred_region
      %175 = dma.done [#allocation12], 32
    $region69: #{tpu_custom_call.1} parent=1 // pred_fallthru
      _
    // Predicated region
    $region70: #{tpu_custom_call.1} parent=1 // pred_check
      _
    $region71: #{tpu_custom_call.1} parent=1 // pred_check_branch
      %177 = sbr.rel (0) target = $region73
    $region72: #{tpu_custom_call.1} parent=1 // pred_region
      %178 = dma.done [#allocation12], 32
    $region73: #{tpu_custom_call.1} parent=1 // pred_fallthru
      _
    // Predicated region
    $region74: #{tpu_custom_call.1} parent=1 // pred_check
      _
    $region75: #{tpu_custom_call.1} parent=1 // pred_check_branch
      %180 = sbr.rel (0) target = $region77
    $region76: #{tpu_custom_call.1} parent=1 // pred_region
      %181 = dma.done [#allocation15], 8192
    $region77: #{tpu_custom_call.1} parent=1 // pred_fallthru
      _
    // Predicated region
    $region78: #{tpu_custom_call.1} parent=1 // pred_check
      _
    $region79: #{tpu_custom_call.1} parent=1 // pred_check_branch
      %183 = sbr.rel (0) target = $region81
    $region80: #{tpu_custom_call.1} parent=1 // pred_region
      %184 = dma.done [#allocation15], 64
    $region81: #{tpu_custom_call.1} parent=1 // pred_fallthru
      _
    // Predicated region
    $region82: #{tpu_custom_call.1} parent=1 // pred_check
      _
    $region83: #{tpu_custom_call.1} parent=1 // pred_check_branch
      %186 = sbr.rel (0) target = $region85
    $region84: #{tpu_custom_call.1} parent=1 // pred_region
      %187 = dma.done [#allocation18], 64
    $region85: #{tpu_custom_call.1} parent=1 // pred_fallthru
      _
    // Predicated region
    $region86: #{tpu_custom_call.1} parent=1 // pred_check
      _
    $region87: #{tpu_custom_call.1} parent=1 // pred_check_branch
      %189 = sbr.rel (0) target = $region89
    $region88: #{tpu_custom_call.1} parent=1 // pred_region
      %190 = dma.done [#allocation18], 64
    $region89: #{tpu_custom_call.1} parent=1 // pred_fallthru
      _
    // Predicated region
    $region90: #{tpu_custom_call.1} parent=1 // pred_check
      _
    $region91: #{tpu_custom_call.1} parent=1 // pred_check_branch
      %192 = sbr.rel (0) target = $region93
    $region92: #{tpu_custom_call.1} parent=1 // pred_region
      %193 = dma.done [#allocation21], 128
    $region93: #{tpu_custom_call.1} parent=1 // pred_fallthru
      _
    // Predicated region
    $region94: #{tpu_custom_call.1} parent=1 // pred_check
      _
    $region95: #{tpu_custom_call.1} parent=1 // pred_check_branch
      %195 = sbr.rel (0) target = $region97
    $region96: #{tpu_custom_call.1} parent=1 // pred_region
      %196 = dma.done [#allocation21], 128
    $region97: #{tpu_custom_call.1} parent=1 // pred_fallthru
      _
    // Predicated region
    $region98: #{tpu_custom_call.1} parent=1 // pred_check
      _
    $region99: #{tpu_custom_call.1} parent=1 // pred_check_branch
      %198 = sbr.rel (0) target = $region101
    $region100: #{tpu_custom_call.1} parent=1 // pred_region
      %199 = dma.done [#allocation24], 128
    $region101: #{tpu_custom_call.1} parent=1 // pred_fallthru
      _
    // Predicated region
    $region102: #{tpu_custom_call.1} parent=1 // pred_check
      _
    $region103: #{tpu_custom_call.1} parent=1 // pred_check_branch
      %201 = sbr.rel (0) target = $region105
    $region104: #{tpu_custom_call.1} parent=1 // pred_region
      %202 = dma.done [#allocation24], 112
    $region105: #{tpu_custom_call.1} parent=1 // pred_fallthru
      _
    %s205 = sshll.u32 1, 14
    %s206 = sxor.u32 4294967295, %s205
    %s208 = sld [smem:[#allocation0]]
    %s209 = sadd.s32 2, %s208
    %s211 = sshll.u32 7, 26
    %s212 = sxor.u32 4294967295, %s211
    %s213 = sand.u32 0, %s212
    %s214 = sshll.u32 %s209, 26
    %s215 = sor.u32 %s213, %s214
    %s216 = sshll.u32 [#allocation2], 4
    %s217 = int_to_ptr.vmem [resolvable:$true] %s216
    %220 = sst [smem:[#allocation28]] 1024
    %s221 = scalar_lea.smem [#allocation28], 1
    %222 = sst [smem:[%s221]] 1024
    %s223 = scalar_lea.smem [#allocation28], 2
    %224 = sst [smem:[%s223]] 8
    %s225 = scalar_lea.smem [#allocation28], 3
    %226 = sst [smem:[%s225]] 64
    %s227 = scalar_lea.smem [#allocation28], 4
    %228 = sst [smem:[%s227]] 128
    %s229 = scalar_lea.smem [#allocation28], 5
    %230 = sst [smem:[%s229]] 2
    %s231 = scalar_lea.smem [#allocation28], 6
    %232 = sst [smem:[%s231]] 512
    %s233 = scalar_lea.smem [#allocation28], 7
    %234 = sst [smem:[%s233]] 64
    %s235 = scalar_lea.smem [#allocation28], 8
    %236 = sst [smem:[%s235]] 4
    %238 = dma.general %s9, 32768, %s217, [#allocation4], [#allocation27], [#allocation28], %s215, 0
    %s239 = scalar_lea.sflag [#allocation4], 1
    %s241 = sshll.u32 1, 14
    %s242 = sxor.u32 4294967295, %s241
    %s244 = sadd.s32 2, %s208
    %s246 = sshll.u32 7, 26
    %s247 = sxor.u32 4294967295, %s246
    %s248 = sand.u32 0, %s247
    %s249 = sshll.u32 %s244, 26
    %s250 = sor.u32 %s248, %s249
    %s251 = sshll.u32 [#allocation3], 4
    %s252 = int_to_ptr.vmem [resolvable:$true] %s251
    %255 = sst [smem:[#allocation30]] 896
    %s256 = scalar_lea.smem [#allocation30], 1
    %257 = sst [smem:[%s256]] 896
    %s258 = scalar_lea.smem [#allocation30], 2
    %259 = sst [smem:[%s258]] 7
    %s260 = scalar_lea.smem [#allocation30], 3
    %261 = sst [smem:[%s260]] 64
    %s262 = scalar_lea.smem [#allocation30], 4
    %263 = sst [smem:[%s262]] 128
    %s264 = scalar_lea.smem [#allocation30], 5
    %265 = sst [smem:[%s264]] 2
    %s266 = scalar_lea.smem [#allocation30], 6
    %267 = sst [smem:[%s266]] 448
    %s268 = scalar_lea.smem [#allocation30], 7
    %269 = sst [smem:[%s268]] 64
    %s270 = scalar_lea.smem [#allocation30], 8
    %271 = sst [smem:[%s270]] 4
    %273 = dma.general %s13, 57344, %s252, %s239, [#allocation29], [#allocation30], %s250, 0
    %v274 = vlaneseq
    %v275 = vshrl.u32 %v274, 7
    %v276 = vadd.s32 %v275, 8
    %v277 = vadd.s32 %v275, 16
    %v278 = vadd.s32 %v275, 24
    %vm279 = vcmp.lt.s32.totalorder %v275, 24
    %vm280 = vcmp.lt.s32.totalorder %v276, 24
    %vm281 = vcmp.lt.s32.totalorder %v277, 24
    %vm282 = vcmp.lt.s32.totalorder %v278, 24
    %v283 = vsel %vm279, 1, 0
    %v284 = vsel %vm280, 1, 0
    %v285 = vsel %vm281, 1, 0
    %v286 = vsel %vm282, 1, 0
    %v287 = vcvt.s32.f32 %v283
    %v288 = vcvt.s32.f32 %v284
    %v289 = vcvt.s32.f32 %v285
    %v290 = vcvt.s32.f32 %v286
    %v291 = vld [vmem:[#allocation5] sm:$0xf]
    %v292 = vld [vmem:[#allocation5 + $0x4] sm:$0xf]
    %v293 = vld [vmem:[#allocation5 + $0x8] sm:$0xf]
    %v294 = vld [vmem:[#allocation5 + $0xc] sm:$0xf]
    %v295 = vld [vmem:[#allocation8] sm:$0xff]
    %v296 = vld [vmem:[#allocation8 + $0x8] sm:$0xff]
    %v297 = vld [vmem:[#allocation8 + $0x10] sm:$0xff]
    %v298 = vld [vmem:[#allocation8 + $0x18] sm:$0xff]
    %v299 = vld [vmem:[#allocation8 + $0x20] sm:$0xff]
    %v300 = vld [vmem:[#allocation8 + $0x28] sm:$0xff]
    %v301 = vld [vmem:[#allocation8 + $0x30] sm:$0xff]
    %v302 = vld [vmem:[#allocation8 + $0x38] sm:$0xff]
    %v303 = vld [vmem:[#allocation8 + $0x40] sm:$0xff]
    %v304 = vld [vmem:[#allocation8 + $0x48] sm:$0xff]
    %v305 = vld [vmem:[#allocation8 + $0x50] sm:$0xff]
    %v306 = vld [vmem:[#allocation8 + $0x58] sm:$0xff]
    %v307 = vld [vmem:[#allocation8 + $0x60] sm:$0xff]
    %v308 = vld [vmem:[#allocation8 + $0x68] sm:$0xff]
    %v309 = vld [vmem:[#allocation8 + $0x70] sm:$0xff]
    %v310 = vld [vmem:[#allocation8 + $0x78] sm:$0xff]
    %v311 = vld [vmem:[#allocation10] sm:$0x3]
    %v313 = vlaneseq
    %v314 = vshrl.u32 %v313, 7
    %v315 = vsub.s32 0, %v314
    %v316 = vrot.slane %v311, %v315
    %v317 = vlaneseq
    %v318 = vshrl.u32 %v317, 7
    %v319 = vsub.s32 1, %v318
    %v320 = vrot.slane %v311, %v319
    %v327 = vunpack.c.l.b16 %v291
    %v328 = vunpack.c.l.b16 %v292
    %v329 = vunpack.c.l.b16 %v293
    %v330 = vunpack.c.l.b16 %v294
    %v331 = vpack.c.b16 %v328, %v327
    %v332 = vpack.c.b16 %v330, %v329
    %v351 = vunpack.c.l.b16 %v295
    %v352 = vunpack.c.h.b16 %v295
    %v353 = vunpack.c.l.b16 %v296
    %v354 = vunpack.c.h.b16 %v296
    %v355 = vunpack.c.l.b16 %v297
    %v356 = vunpack.c.h.b16 %v297
    %v357 = vunpack.c.l.b16 %v298
    %v358 = vunpack.c.h.b16 %v298
    %v359 = vunpack.c.l.b16 %v299
    %v360 = vunpack.c.h.b16 %v299
    %v361 = vunpack.c.l.b16 %v300
    %v362 = vunpack.c.h.b16 %v300
    %v363 = vunpack.c.l.b16 %v301
    %v364 = vunpack.c.h.b16 %v301
    %v365 = vunpack.c.l.b16 %v302
    %v366 = vunpack.c.h.b16 %v302
    %v367 = vunpack.c.l.b16 %v303
    %v368 = vunpack.c.h.b16 %v303
    %v369 = vunpack.c.l.b16 %v304
    %v370 = vunpack.c.h.b16 %v304
    %v371 = vunpack.c.l.b16 %v305
    %v372 = vunpack.c.h.b16 %v305
    %v373 = vunpack.c.l.b16 %v306
    %v374 = vunpack.c.h.b16 %v306
    %v375 = vunpack.c.l.b16 %v307
    %v376 = vunpack.c.h.b16 %v307
    %v377 = vunpack.c.l.b16 %v308
    %v378 = vunpack.c.h.b16 %v308
    %v379 = vunpack.c.l.b16 %v309
    %v380 = vunpack.c.h.b16 %v309
    %v381 = vunpack.c.l.b16 %v310
    %v382 = vunpack.c.h.b16 %v310
    %v383 = vpack.c.b16 %v353, %v351
    %v384 = vpack.c.b16 %v354, %v352
    %v385 = vpack.c.b16 %v357, %v355
    %v386 = vpack.c.b16 %v358, %v356
    %v387 = vpack.c.b16 %v361, %v359
    %v388 = vpack.c.b16 %v362, %v360
    %v389 = vpack.c.b16 %v365, %v363
    %v390 = vpack.c.b16 %v366, %v364
    %v391 = vpack.c.b16 %v369, %v367
    %v392 = vpack.c.b16 %v370, %v368
    %v393 = vpack.c.b16 %v373, %v371
    %v394 = vpack.c.b16 %v374, %v372
    %v395 = vpack.c.b16 %v377, %v375
    %v396 = vpack.c.b16 %v378, %v376
    %v397 = vpack.c.b16 %v381, %v379
    %v398 = vpack.c.b16 %v382, %v380
    %415 = vmatprep.subr.bf16.mxu0 %v384
    %416 = vmatpush1.bf16.msra.mxu0 %v383
    %417 = vmatprep.subr.bf16.mxu0 %v386
    %418 = vmatpush1.bf16.msra.mxu0 %v385
    %419 = vmatprep.subr.bf16.mxu0 %v388
    %420 = vmatpush1.bf16.msra.mxu0 %v387
    %421 = vmatprep.subr.bf16.mxu0 %v390
    %422 = vmatpush1.bf16.msra.mxu0 %v389
    %423 = vmatprep.subr.bf16.mxu0 %v392
    %424 = vmatpush1.bf16.msra.mxu0 %v391
    %425 = vmatprep.subr.bf16.mxu0 %v394
    %426 = vmatpush1.bf16.msra.mxu0 %v393
    %427 = vmatprep.subr.bf16.mxu0 %v396
    %428 = vmatpush1.bf16.msra.mxu0 %v395
    %429 = vmatprep.subr.bf16.mxu0 %v398
    %430 = vmatpush1.bf16.msra.mxu0 %v397
    %431 = vmatprep.subr.bf16.mxu0 0
    %432 = vmatpush1.bf16.msra.mxu0 0
    %433 = vmatprep.subr.bf16.mxu0 0
    %434 = vmatpush1.bf16.msra.mxu0 0
    %435 = vmatprep.subr.bf16.mxu0 0
    %436 = vmatpush1.bf16.msra.mxu0 0
    %437 = vmatprep.subr.bf16.mxu0 0
    %438 = vmatpush1.bf16.msra.mxu0 0
    %439 = vmatprep.subr.bf16.mxu0 0
    %440 = vmatpush1.bf16.msra.mxu0 0
    %441 = vmatprep.subr.bf16.mxu0 0
    %442 = vmatpush1.bf16.msra.mxu0 0
    %443 = vmatprep.subr.bf16.mxu0 0
    %444 = vmatpush1.bf16.msra.mxu0 0
    %445 = vmatprep.subr.bf16.mxu0 0
    %446 = vmatpush1.bf16.msra.mxu0 0
    %447 = vmatprep.mubr.bf16.mxu0 0
    %448 = vmatmul.mubr.bf16.gmra.mrb[0].mxu0 %v331
    %v449 = vpop.f32.mrb[0].mxu0
    %v450 = vadd.f32 %v316, %v449
    %v451 = vpop.f32.mrb[0].mxu0
    %v452 = vadd.f32 %v320, %v451
    %v453 = vpop.f32.mrb[0].mxu0
    %v454 = vadd.f32 %v316, %v453
    %v455 = vpop.f32.mrb[0].mxu0
    %v456 = vadd.f32 %v320, %v455
    %457 = vmatprep.mubr.bf16.mxu0 0
    %458 = vmatmul.mubr.bf16.gmra.mrb[0].mxu0 %v332
    %v459 = vpop.f32.mrb[0].mxu0
    %v460 = vadd.f32 %v316, %v459
    %v461 = vpop.f32.mrb[0].mxu0
    %v462 = vadd.f32 %v320, %v461
    %v463 = vpop.f32.mrb[0].mxu0
    %v464 = vadd.f32 %v316, %v463
    %v465 = vpop.f32.mrb[0].mxu0
    %v466 = vadd.f32 %v320, %v465
    %467 = vdwg.mxu0
    %v468 = vmul.f32 %v450, 0.2
    %v469 = vmul.f32 %v452, 0.2
    %v470 = vmul.f32 %v454, 0.2
    %v471 = vmul.f32 %v456, 0.2
    %v472 = vmul.f32 %v460, 0.2
    %v473 = vmul.f32 %v462, 0.2
    %v474 = vmul.f32 %v464, 0.2
    %v475 = vmul.f32 %v466, 0.2
    %v476 = vmax.f32 %v450, %v468
    %v477 = vmax.f32 %v452, %v469
    %v478 = vmax.f32 %v454, %v470
    %v479 = vmax.f32 %v456, %v471
    %v480 = vmax.f32 %v460, %v472
    %v481 = vmax.f32 %v462, %v473
    %v482 = vmax.f32 %v464, %v474
    %v483 = vmax.f32 %v466, %v475
    %v484 = vmul.f32 %v476, %v287
    %v485 = vmul.f32 %v477, %v287
    %v486 = vmul.f32 %v478, %v288
    %v487 = vmul.f32 %v479, %v288
    %v488 = vmul.f32 %v480, %v289
    %v489 = vmul.f32 %v481, %v289
    %v490 = vmul.f32 %v482, %v290
    %v491 = vmul.f32 %v483, %v290
    %v492 = vadd.f32 %v484, %v486
    %v493 = vadd.f32 %v492, %v488
    %v494 = vadd.f32 %v493, %v490
    %v495 = vrot.slane %v494, 4
    %v496 = vadd.f32 %v494, %v495
    %v497 = vrot.slane %v496, 2
    %v498 = vadd.f32 %v496, %v497
    %v499 = vrot.slane %v498, 1
    %v500 = vadd.f32 %v498, %v499
    %v501 = vadd.f32 %v485, %v487
    %v502 = vadd.f32 %v501, %v489
    %v503 = vadd.f32 %v502, %v491
    %v504 = vrot.slane %v503, 4
    %v505 = vadd.f32 %v503, %v504
    %v506 = vrot.slane %v505, 2
    %v507 = vadd.f32 %v505, %v506
    %v508 = vrot.slane %v507, 1
    %v509 = vadd.f32 %v507, %v508
    %v510 = vmul.f32 %v484, %v476
    %v511 = vmul.f32 %v485, %v477
    %v512 = vmul.f32 %v486, %v478
    %v513 = vmul.f32 %v487, %v479
    %v514 = vmul.f32 %v488, %v480
    %v515 = vmul.f32 %v489, %v481
    %v516 = vmul.f32 %v490, %v482
    %v517 = vmul.f32 %v491, %v483
    %v518 = vadd.f32 %v510, %v512
    %v519 = vadd.f32 %v518, %v514
    %v520 = vadd.f32 %v519, %v516
    %v521 = vrot.slane %v520, 4
    %v522 = vadd.f32 %v520, %v521
    %v523 = vrot.slane %v522, 2
    %v524 = vadd.f32 %v522, %v523
    %v525 = vrot.slane %v524, 1
    %v526 = vadd.f32 %v524, %v525
    %v527 = vadd.f32 %v511, %v513
    %v528 = vadd.f32 %v527, %v515
    %v529 = vadd.f32 %v528, %v517
    %v530 = vrot.slane %v529, 4
    %v531 = vadd.f32 %v529, %v530
    %v532 = vrot.slane %v531, 2
    %v533 = vadd.f32 %v531, %v532
    %v534 = vrot.slane %v533, 1
    %v535 = vadd.f32 %v533, %v534
    %v536 = vmul.f32 %v500, 0.041666668
    %v537 = vmul.f32 %v509, 0.041666668
    %v538 = vmul.f32 %v526, 0.041666668
    %v539 = vmul.f32 %v535, 0.041666668
    %v540 = vmul.f32 %v536, %v536
    %v541 = vmul.f32 %v537, %v537
    %v542 = vsub.f32 %v538, %v540
    %v543 = vsub.f32 %v539, %v541
    %v544 = vld [vmem:[#allocation11] sm:$0x3]
    %v545 = vadd.f32 %v542, 1e-05
    %v546 = vadd.f32 %v543, 1e-05
    %v547 = vrsqrt.pop %v545
    %v548 = vrsqrt.pop %v546
    %v551 = vcombine.low %v547, %v548
    %v553 = vunpack.c.l.s4 1966171168
    %v554 = vunpack.c.0.s8 %v553
    %v555 = vlaneseq
    %v556 = vshrl.u32 %v555, 7
    %v557 = vsub.s32 %v554, %v556
    %v558 = vrot.slane %v551, %v557
    %v560 = vunpack.c.l.s4 1966171168
    %v561 = vunpack.c.0.s8 %v560
    %v562 = vlaneseq
    %v563 = vshrl.u32 %v562, 7
    %v564 = vsub.s32 %v561, %v563
    %v565 = vrot.slane %v558, %v564
    %v567 = vmul.f32 %v544, %v565
    %v568 = vld [vmem:[#allocation13] sm:$0x3]
    %v570 = vlaneseq
    %v571 = vshrl.u32 %v570, 7
    %v572 = vsub.s32 0, %v571
    %v573 = vrot.slane %v567, %v572
    %v574 = vlaneseq
    %v575 = vshrl.u32 %v574, 7
    %v576 = vsub.s32 1, %v575
    %v577 = vrot.slane %v567, %v576
    %v580 = vmul.f32 %v536, %v573
    %v581 = vmul.f32 %v537, %v577
    %v584 = vcombine.low %v580, %v581
    %v586 = vunpack.c.l.s4 1966171168
    %v587 = vunpack.c.0.s8 %v586
    %v588 = vlaneseq
    %v589 = vshrl.u32 %v588, 7
    %v590 = vsub.s32 %v587, %v589
    %v591 = vrot.slane %v584, %v590
    %v593 = vunpack.c.l.s4 1966171168
    %v594 = vunpack.c.0.s8 %v593
    %v595 = vlaneseq
    %v596 = vshrl.u32 %v595, 7
    %v597 = vsub.s32 %v594, %v596
    %v598 = vrot.slane %v591, %v597
    %v600 = vsub.f32 %v568, %v598
    %v601 = vmul.f32 %v476, %v573
    %v602 = vmul.f32 %v477, %v577
    %v603 = vmul.f32 %v478, %v573
    %v604 = vmul.f32 %v479, %v577
    %v605 = vmul.f32 %v480, %v573
    %v606 = vmul.f32 %v481, %v577
    %v607 = vmul.f32 %v482, %v573
    %v608 = vmul.f32 %v483, %v577
    %v610 = vlaneseq
    %v611 = vshrl.u32 %v610, 7
    %v612 = vsub.s32 0, %v611
    %v613 = vrot.slane %v600, %v612
    %v614 = vlaneseq
    %v615 = vshrl.u32 %v614, 7
    %v616 = vsub.s32 1, %v615
    %v617 = vrot.slane %v600, %v616
    %v620 = vadd.f32 %v601, %v613
    %v621 = vadd.f32 %v602, %v617
    %v622 = vadd.f32 %v603, %v613
    %v623 = vadd.f32 %v604, %v617
    %v624 = vadd.f32 %v605, %v613
    %v625 = vadd.f32 %v606, %v617
    %v626 = vadd.f32 %v607, %v613
    %v627 = vadd.f32 %v608, %v617
    %v628 = vpack.c.bf16 %v622, %v620
    %v629 = vpack.c.bf16 %v623, %v621
    %v630 = vpack.c.bf16 %v626, %v624
    %v631 = vpack.c.bf16 %v627, %v625
    %v632 = vld [vmem:[#allocation14] sm:$0xff]
    %v633 = vld [vmem:[#allocation14 + $0x8] sm:$0xff]
    %v634 = vld [vmem:[#allocation14 + $0x10] sm:$0xff]
    %v635 = vld [vmem:[#allocation14 + $0x18] sm:$0xff]
    %v636 = vld [vmem:[#allocation14 + $0x20] sm:$0xff]
    %v637 = vld [vmem:[#allocation14 + $0x28] sm:$0xff]
    %v638 = vld [vmem:[#allocation14 + $0x30] sm:$0xff]
    %v639 = vld [vmem:[#allocation14 + $0x38] sm:$0xff]
    %v640 = vld [vmem:[#allocation14 + $0x40] sm:$0xff]
    %v641 = vld [vmem:[#allocation14 + $0x48] sm:$0xff]
    %v642 = vld [vmem:[#allocation14 + $0x50] sm:$0xff]
    %v643 = vld [vmem:[#allocation14 + $0x58] sm:$0xff]
    %v644 = vld [vmem:[#allocation14 + $0x60] sm:$0xff]
    %v645 = vld [vmem:[#allocation14 + $0x68] sm:$0xff]
    %v646 = vld [vmem:[#allocation14 + $0x70] sm:$0xff]
    %v647 = vld [vmem:[#allocation14 + $0x78] sm:$0xff]
    %v648 = vld [vmem:[#allocation14 + $0x80] sm:$0xff]
    %v649 = vld [vmem:[#allocation14 + $0x88] sm:$0xff]
    %v650 = vld [vmem:[#allocation14 + $0x90] sm:$0xff]
    %v651 = vld [vmem:[#allocation14 + $0x98] sm:$0xff]
    %v652 = vld [vmem:[#allocation14 + $0xa0] sm:$0xff]
    %v653 = vld [vmem:[#allocation14 + $0xa8] sm:$0xff]
    %v654 = vld [vmem:[#allocation14 + $0xb0] sm:$0xff]
    %v655 = vld [vmem:[#allocation14 + $0xb8] sm:$0xff]
    %v656 = vld [vmem:[#allocation14 + $0xc0] sm:$0xff]
    %v657 = vld [vmem:[#allocation14 + $0xc8] sm:$0xff]
    %v658 = vld [vmem:[#allocation14 + $0xd0] sm:$0xff]
    %v659 = vld [vmem:[#allocation14 + $0xd8] sm:$0xff]
    %v660 = vld [vmem:[#allocation14 + $0xe0] sm:$0xff]
    %v661 = vld [vmem:[#allocation14 + $0xe8] sm:$0xff]
    %v662 = vld [vmem:[#allocation14 + $0xf0] sm:$0xff]
    %v663 = vld [vmem:[#allocation14 + $0xf8] sm:$0xff]
    %v664 = vld [vmem:[#allocation14 + $0x100] sm:$0xff]
    %v665 = vld [vmem:[#allocation14 + $0x108] sm:$0xff]
    %v666 = vld [vmem:[#allocation14 + $0x110] sm:$0xff]
    %v667 = vld [vmem:[#allocation14 + $0x118] sm:$0xff]
    %v668 = vld [vmem:[#allocation14 + $0x120] sm:$0xff]
    %v669 = vld [vmem:[#allocation14 + $0x128] sm:$0xff]
    %v670 = vld [vmem:[#allocation14 + $0x130] sm:$0xff]
    %v671 = vld [vmem:[#allocation14 + $0x138] sm:$0xff]
    %v672 = vld [vmem:[#allocation14 + $0x140] sm:$0xff]
    %v673 = vld [vmem:[#allocation14 + $0x148] sm:$0xff]
    %v674 = vld [vmem:[#allocation14 + $0x150] sm:$0xff]
    %v675 = vld [vmem:[#allocation14 + $0x158] sm:$0xff]
    %v676 = vld [vmem:[#allocation14 + $0x160] sm:$0xff]
    %v677 = vld [vmem:[#allocation14 + $0x168] sm:$0xff]
    %v678 = vld [vmem:[#allocation14 + $0x170] sm:$0xff]
    %v679 = vld [vmem:[#allocation14 + $0x178] sm:$0xff]
    %v680 = vld [vmem:[#allocation14 + $0x180] sm:$0xff]
    %v681 = vld [vmem:[#allocation14 + $0x188] sm:$0xff]
    %v682 = vld [vmem:[#allocation14 + $0x190] sm:$0xff]
    %v683 = vld [vmem:[#allocation14 + $0x198] sm:$0xff]
    %v684 = vld [vmem:[#allocation14 + $0x1a0] sm:$0xff]
    %v685 = vld [vmem:[#allocation14 + $0x1a8] sm:$0xff]
    %v686 = vld [vmem:[#allocation14 + $0x1b0] sm:$0xff]
    %v687 = vld [vmem:[#allocation14 + $0x1b8] sm:$0xff]
    %v688 = vld [vmem:[#allocation14 + $0x1c0] sm:$0xff]
    %v689 = vld [vmem:[#allocation14 + $0x1c8] sm:$0xff]
    %v690 = vld [vmem:[#allocation14 + $0x1d0] sm:$0xff]
    %v691 = vld [vmem:[#allocation14 + $0x1d8] sm:$0xff]
    %v692 = vld [vmem:[#allocation14 + $0x1e0] sm:$0xff]
    %v693 = vld [vmem:[#allocation14 + $0x1e8] sm:$0xff]
    %v694 = vld [vmem:[#allocation14 + $0x1f0] sm:$0xff]
    %v695 = vld [vmem:[#allocation14 + $0x1f8] sm:$0xff]
    %v696 = vld [vmem:[#allocation16] sm:$0xf]
    %v698 = vlaneseq
    %v699 = vshrl.u32 %v698, 7
    %v700 = vsub.s32 0, %v699
    %v701 = vrot.slane %v696, %v700
    %v702 = vlaneseq
    %v703 = vshrl.u32 %v702, 7
    %v704 = vsub.s32 1, %v703
    %v705 = vrot.slane %v696, %v704
    %v706 = vlaneseq
    %v707 = vshrl.u32 %v706, 7
    %v708 = vsub.s32 2, %v707
    %v709 = vrot.slane %v696, %v708
    %v710 = vlaneseq
    %v711 = vshrl.u32 %v710, 7
    %v712 = vsub.s32 3, %v711
    %v713 = vrot.slane %v696, %v712
    %v782 = vunpack.c.l.b16 %v632
    %v783 = vunpack.c.h.b16 %v632
    %v784 = vunpack.c.l.b16 %v633
    %v785 = vunpack.c.h.b16 %v633
    %v786 = vunpack.c.l.b16 %v634
    %v787 = vunpack.c.h.b16 %v634
    %v788 = vunpack.c.l.b16 %v635
    %v789 = vunpack.c.h.b16 %v635
    %v790 = vunpack.c.l.b16 %v636
    %v791 = vunpack.c.h.b16 %v636
    %v792 = vunpack.c.l.b16 %v637
    %v793 = vunpack.c.h.b16 %v637
    %v794 = vunpack.c.l.b16 %v638
    %v795 = vunpack.c.h.b16 %v638
    %v796 = vunpack.c.l.b16 %v639
    %v797 = vunpack.c.h.b16 %v639
    %v798 = vunpack.c.l.b16 %v640
    %v799 = vunpack.c.h.b16 %v640
    %v800 = vunpack.c.l.b16 %v641
    %v801 = vunpack.c.h.b16 %v641
    %v802 = vunpack.c.l.b16 %v642
    %v803 = vunpack.c.h.b16 %v642
    %v804 = vunpack.c.l.b16 %v643
    %v805 = vunpack.c.h.b16 %v643
    %v806 = vunpack.c.l.b16 %v644
    %v807 = vunpack.c.h.b16 %v644
    %v808 = vunpack.c.l.b16 %v645
    %v809 = vunpack.c.h.b16 %v645
    %v810 = vunpack.c.l.b16 %v646
    %v811 = vunpack.c.h.b16 %v646
    %v812 = vunpack.c.l.b16 %v647
    %v813 = vunpack.c.h.b16 %v647
    %v814 = vunpack.c.l.b16 %v648
    %v815 = vunpack.c.h.b16 %v648
    %v816 = vunpack.c.l.b16 %v649
    %v817 = vunpack.c.h.b16 %v649
    %v818 = vunpack.c.l.b16 %v650
    %v819 = vunpack.c.h.b16 %v650
    %v820 = vunpack.c.l.b16 %v651
    %v821 = vunpack.c.h.b16 %v651
    %v822 = vunpack.c.l.b16 %v652
    %v823 = vunpack.c.h.b16 %v652
    %v824 = vunpack.c.l.b16 %v653
    %v825 = vunpack.c.h.b16 %v653
    %v826 = vunpack.c.l.b16 %v654
    %v827 = vunpack.c.h.b16 %v654
    %v828 = vunpack.c.l.b16 %v655
    %v829 = vunpack.c.h.b16 %v655
    %v830 = vunpack.c.l.b16 %v656
    %v831 = vunpack.c.h.b16 %v656
    %v832 = vunpack.c.l.b16 %v657
    %v833 = vunpack.c.h.b16 %v657
    %v834 = vunpack.c.l.b16 %v658
    %v835 = vunpack.c.h.b16 %v658
    %v836 = vunpack.c.l.b16 %v659
    %v837 = vunpack.c.h.b16 %v659
    %v838 = vunpack.c.l.b16 %v660
    %v839 = vunpack.c.h.b16 %v660
    %v840 = vunpack.c.l.b16 %v661
    %v841 = vunpack.c.h.b16 %v661
    %v842 = vunpack.c.l.b16 %v662
    %v843 = vunpack.c.h.b16 %v662
    %v844 = vunpack.c.l.b16 %v663
    %v845 = vunpack.c.h.b16 %v663
    %v846 = vunpack.c.l.b16 %v664
    %v847 = vunpack.c.h.b16 %v664
    %v848 = vunpack.c.l.b16 %v665
    %v849 = vunpack.c.h.b16 %v665
    %v850 = vunpack.c.l.b16 %v666
    %v851 = vunpack.c.h.b16 %v666
    %v852 = vunpack.c.l.b16 %v667
    %v853 = vunpack.c.h.b16 %v667
    %v854 = vunpack.c.l.b16 %v668
    %v855 = vunpack.c.h.b16 %v668
    %v856 = vunpack.c.l.b16 %v669
    %v857 = vunpack.c.h.b16 %v669
    %v858 = vunpack.c.l.b16 %v670
    %v859 = vunpack.c.h.b16 %v670
    %v860 = vunpack.c.l.b16 %v671
    %v861 = vunpack.c.h.b16 %v671
    %v862 = vunpack.c.l.b16 %v672
    %v863 = vunpack.c.h.b16 %v672
    %v864 = vunpack.c.l.b16 %v673
    %v865 = vunpack.c.h.b16 %v673
    %v866 = vunpack.c.l.b16 %v674
    %v867 = vunpack.c.h.b16 %v674
    %v868 = vunpack.c.l.b16 %v675
    %v869 = vunpack.c.h.b16 %v675
    %v870 = vunpack.c.l.b16 %v676
    %v871 = vunpack.c.h.b16 %v676
    %v872 = vunpack.c.l.b16 %v677
    %v873 = vunpack.c.h.b16 %v677
    %v874 = vunpack.c.l.b16 %v678
    %v875 = vunpack.c.h.b16 %v678
    %v876 = vunpack.c.l.b16 %v679
    %v877 = vunpack.c.h.b16 %v679
    %v878 = vunpack.c.l.b16 %v680
    %v879 = vunpack.c.h.b16 %v680
    %v880 = vunpack.c.l.b16 %v681
    %v881 = vunpack.c.h.b16 %v681
    %v882 = vunpack.c.l.b16 %v682
    %v883 = vunpack.c.h.b16 %v682
    %v884 = vunpack.c.l.b16 %v683
    %v885 = vunpack.c.h.b16 %v683
    %v886 = vunpack.c.l.b16 %v684
    %v887 = vunpack.c.h.b16 %v684
    %v888 = vunpack.c.l.b16 %v685
    %v889 = vunpack.c.h.b16 %v685
    %v890 = vunpack.c.l.b16 %v686
    %v891 = vunpack.c.h.b16 %v686
    %v892 = vunpack.c.l.b16 %v687
    %v893 = vunpack.c.h.b16 %v687
    %v894 = vunpack.c.l.b16 %v688
    %v895 = vunpack.c.h.b16 %v688
    %v896 = vunpack.c.l.b16 %v689
    %v897 = vunpack.c.h.b16 %v689
    %v898 = vunpack.c.l.b16 %v690
    %v899 = vunpack.c.h.b16 %v690
    %v900 = vunpack.c.l.b16 %v691
    %v901 = vunpack.c.h.b16 %v691
    %v902 = vunpack.c.l.b16 %v692
    %v903 = vunpack.c.h.b16 %v692
    %v904 = vunpack.c.l.b16 %v693
    %v905 = vunpack.c.h.b16 %v693
    %v906 = vunpack.c.l.b16 %v694
    %v907 = vunpack.c.h.b16 %v694
    %v908 = vunpack.c.l.b16 %v695
    %v909 = vunpack.c.h.b16 %v695
    %v910 = vpack.c.b16 %v786, %v782
    %v911 = vpack.c.b16 %v787, %v783
    %v912 = vpack.c.b16 %v788, %v784
    %v913 = vpack.c.b16 %v789, %v785
    %v914 = vpack.c.b16 %v794, %v790
    %v915 = vpack.c.b16 %v795, %v791
    %v916 = vpack.c.b16 %v796, %v792
    %v917 = vpack.c.b16 %v797, %v793
    %v918 = vpack.c.b16 %v802, %v798
    %v919 = vpack.c.b16 %v803, %v799
    %v920 = vpack.c.b16 %v804, %v800
    %v921 = vpack.c.b16 %v805, %v801
    %v922 = vpack.c.b16 %v810, %v806
    %v923 = vpack.c.b16 %v811, %v807
    %v924 = vpack.c.b16 %v812, %v808
    %v925 = vpack.c.b16 %v813, %v809
    %v926 = vpack.c.b16 %v818, %v814
    %v927 = vpack.c.b16 %v819, %v815
    %v928 = vpack.c.b16 %v820, %v816
    %v929 = vpack.c.b16 %v821, %v817
    %v930 = vpack.c.b16 %v826, %v822
    %v931 = vpack.c.b16 %v827, %v823
    %v932 = vpack.c.b16 %v828, %v824
    %v933 = vpack.c.b16 %v829, %v825
    %v934 = vpack.c.b16 %v834, %v830
    %v935 = vpack.c.b16 %v835, %v831
    %v936 = vpack.c.b16 %v836, %v832
    %v937 = vpack.c.b16 %v837, %v833
    %v938 = vpack.c.b16 %v842, %v838
    %v939 = vpack.c.b16 %v843, %v839
    %v940 = vpack.c.b16 %v844, %v840
    %v941 = vpack.c.b16 %v845, %v841
    %v942 = vpack.c.b16 %v850, %v846
    %v943 = vpack.c.b16 %v851, %v847
    %v944 = vpack.c.b16 %v852, %v848
    %v945 = vpack.c.b16 %v853, %v849
    %v946 = vpack.c.b16 %v858, %v854
    %v947 = vpack.c.b16 %v859, %v855
    %v948 = vpack.c.b16 %v860, %v856
    %v949 = vpack.c.b16 %v861, %v857
    %v950 = vpack.c.b16 %v866, %v862
    %v951 = vpack.c.b16 %v867, %v863
    %v952 = vpack.c.b16 %v868, %v864
    %v953 = vpack.c.b16 %v869, %v865
    %v954 = vpack.c.b16 %v874, %v870
    %v955 = vpack.c.b16 %v875, %v871
    %v956 = vpack.c.b16 %v876, %v872
    %v957 = vpack.c.b16 %v877, %v873
    %v958 = vpack.c.b16 %v882, %v878
    %v959 = vpack.c.b16 %v883, %v879
    %v960 = vpack.c.b16 %v884, %v880
    %v961 = vpack.c.b16 %v885, %v881
    %v962 = vpack.c.b16 %v890, %v886
    %v963 = vpack.c.b16 %v891, %v887
    %v964 = vpack.c.b16 %v892, %v888
    %v965 = vpack.c.b16 %v893, %v889
    %v966 = vpack.c.b16 %v898, %v894
    %v967 = vpack.c.b16 %v899, %v895
    %v968 = vpack.c.b16 %v900, %v896
    %v969 = vpack.c.b16 %v901, %v897
    %v970 = vpack.c.b16 %v906, %v902
    %v971 = vpack.c.b16 %v907, %v903
    %v972 = vpack.c.b16 %v908, %v904
    %v973 = vpack.c.b16 %v909, %v905
    %1038 = vmatprep.subr.bf16.mxu0 %v911
    %1039 = vmatpush1.bf16.msra.mxu0 %v910
    %1040 = vmatprep.subr.bf16.mxu0 %v915
    %1041 = vmatpush1.bf16.msra.mxu0 %v914
    %1042 = vmatprep.subr.bf16.mxu0 %v919
    %1043 = vmatpush1.bf16.msra.mxu0 %v918
    %1044 = vmatprep.subr.bf16.mxu0 %v923
    %1045 = vmatpush1.bf16.msra.mxu0 %v922
    %1046 = vmatprep.subr.bf16.mxu0 %v927
    %1047 = vmatpush1.bf16.msra.mxu0 %v926
    %1048 = vmatprep.subr.bf16.mxu0 %v931
    %1049 = vmatpush1.bf16.msra.mxu0 %v930
    %1050 = vmatprep.subr.bf16.mxu0 %v935
    %1051 = vmatpush1.bf16.msra.mxu0 %v934
    %1052 = vmatprep.subr.bf16.mxu0 %v939
    %1053 = vmatpush1.bf16.msra.mxu0 %v938
    %1054 = vmatprep.subr.bf16.mxu0 %v943
    %1055 = vmatpush1.bf16.msra.mxu0 %v942
    %1056 = vmatprep.subr.bf16.mxu0 %v947
    %1057 = vmatpush1.bf16.msra.mxu0 %v946
    %1058 = vmatprep.subr.bf16.mxu0 %v951
    %1059 = vmatpush1.bf16.msra.mxu0 %v950
    %1060 = vmatprep.subr.bf16.mxu0 %v955
    %1061 = vmatpush1.bf16.msra.mxu0 %v954
    %1062 = vmatprep.subr.bf16.mxu0 %v959
    %1063 = vmatpush1.bf16.msra.mxu0 %v958
    %1064 = vmatprep.subr.bf16.mxu0 %v963
    %1065 = vmatpush1.bf16.msra.mxu0 %v962
    %1066 = vmatprep.subr.bf16.mxu0 %v967
    %1067 = vmatpush1.bf16.msra.mxu0 %v966
    %1068 = vmatprep.subr.bf16.mxu0 %v971
    %1069 = vmatpush1.bf16.msra.mxu0 %v970
    %1070 = vmatprep.mubr.bf16.mxu0 %v629
    %1071 = vmatmul.mubr.bf16.gmra.mrb[0].mxu0 %v628
    %v1072 = vpop.f32.mrb[0].mxu0
    %v1073 = vadd.f32 %v701, %v1072
    %v1074 = vpop.f32.mrb[0].mxu0
    %v1075 = vadd.f32 %v705, %v1074
    %v1076 = vpop.f32.mrb[0].mxu0
    %v1077 = vadd.f32 %v701, %v1076
    %v1078 = vpop.f32.mrb[0].mxu0
    %v1079 = vadd.f32 %v705, %v1078
    %1080 = vmatprep.mubr.bf16.mxu0 %v631
    %1081 = vmatmul.mubr.bf16.gmra.mrb[0].mxu0 %v630
    %v1082 = vpop.f32.mrb[0].mxu0
    %v1083 = vadd.f32 %v701, %v1082
    %v1084 = vpop.f32.mrb[0].mxu0
    %v1085 = vadd.f32 %v705, %v1084
    %v1086 = vpop.f32.mrb[0].mxu0
    %v1087 = vadd.f32 %v701, %v1086
    %v1088 = vpop.f32.mrb[0].mxu0
    %v1089 = vadd.f32 %v705, %v1088
    %1090 = vdwg.mxu0
    %1091 = vmatprep.subr.bf16.mxu0 %v913
    %1092 = vmatpush1.bf16.msra.mxu0 %v912
    %1093 = vmatprep.subr.bf16.mxu0 %v917
    %1094 = vmatpush1.bf16.msra.mxu0 %v916
    %1095 = vmatprep.subr.bf16.mxu0 %v921
    %1096 = vmatpush1.bf16.msra.mxu0 %v920
    %1097 = vmatprep.subr.bf16.mxu0 %v925
    %1098 = vmatpush1.bf16.msra.mxu0 %v924
    %1099 = vmatprep.subr.bf16.mxu0 %v929
    %1100 = vmatpush1.bf16.msra.mxu0 %v928
    %1101 = vmatprep.subr.bf16.mxu0 %v933
    %1102 = vmatpush1.bf16.msra.mxu0 %v932
    %1103 = vmatprep.subr.bf16.mxu0 %v937
    %1104 = vmatpush1.bf16.msra.mxu0 %v936
    %1105 = vmatprep.subr.bf16.mxu0 %v941
    %1106 = vmatpush1.bf16.msra.mxu0 %v940
    %1107 = vmatprep.subr.bf16.mxu0 %v945
    %1108 = vmatpush1.bf16.msra.mxu0 %v944
    %1109 = vmatprep.subr.bf16.mxu0 %v949
    %1110 = vmatpush1.bf16.msra.mxu0 %v948
    %1111 = vmatprep.subr.bf16.mxu0 %v953
    %1112 = vmatpush1.bf16.msra.mxu0 %v952
    %1113 = vmatprep.subr.bf16.mxu0 %v957
    %1114 = vmatpush1.bf16.msra.mxu0 %v956
    %1115 = vmatprep.subr.bf16.mxu0 %v961
    %1116 = vmatpush1.bf16.msra.mxu0 %v960
    %1117 = vmatprep.subr.bf16.mxu0 %v965
    %1118 = vmatpush1.bf16.msra.mxu0 %v964
    %1119 = vmatprep.subr.bf16.mxu0 %v969
    %1120 = vmatpush1.bf16.msra.mxu0 %v968
    %1121 = vmatprep.subr.bf16.mxu0 %v973
    %1122 = vmatpush1.bf16.msra.mxu0 %v972
    %1123 = vmatprep.mubr.bf16.mxu0 %v629
    %1124 = vmatmul.mubr.bf16.gmra.mrb[0].mxu0 %v628
    %v1125 = vpop.f32.mrb[0].mxu0
    %v1126 = vadd.f32 %v709, %v1125
    %v1127 = vpop.f32.mrb[0].mxu0
    %v1128 = vadd.f32 %v713, %v1127
    %v1129 = vpop.f32.mrb[0].mxu0
    %v1130 = vadd.f32 %v709, %v1129
    %v1131 = vpop.f32.mrb[0].mxu0
    %v1132 = vadd.f32 %v713, %v1131
    %1133 = vmatprep.mubr.bf16.mxu0 %v631
    %1134 = vmatmul.mubr.bf16.gmra.mrb[0].mxu0 %v630
    %v1135 = vpop.f32.mrb[0].mxu0
    %v1136 = vadd.f32 %v709, %v1135
    %v1137 = vpop.f32.mrb[0].mxu0
    %v1138 = vadd.f32 %v713, %v1137
    %v1139 = vpop.f32.mrb[0].mxu0
    %v1140 = vadd.f32 %v709, %v1139
    %v1141 = vpop.f32.mrb[0].mxu0
    %v1142 = vadd.f32 %v713, %v1141
    %1143 = vdwg.mxu0
    %v1144 = vmul.f32 %v1073, 0.2
    %v1145 = vmul.f32 %v1075, 0.2
    %v1146 = vmul.f32 %v1126, 0.2
    %v1147 = vmul.f32 %v1128, 0.2
    %v1148 = vmul.f32 %v1077, 0.2
    %v1149 = vmul.f32 %v1079, 0.2
    %v1150 = vmul.f32 %v1130, 0.2
    %v1151 = vmul.f32 %v1132, 0.2
    %v1152 = vmul.f32 %v1083, 0.2
    %v1153 = vmul.f32 %v1085, 0.2
    %v1154 = vmul.f32 %v1136, 0.2
    %v1155 = vmul.f32 %v1138, 0.2
    %v1156 = vmul.f32 %v1087, 0.2
    %v1157 = vmul.f32 %v1089, 0.2
    %v1158 = vmul.f32 %v1140, 0.2
    %v1159 = vmul.f32 %v1142, 0.2
    %v1160 = vmax.f32 %v1073, %v1144
    %v1161 = vmax.f32 %v1075, %v1145
    %v1162 = vmax.f32 %v1126, %v1146
    %v1163 = vmax.f32 %v1128, %v1147
    %v1164 = vmax.f32 %v1077, %v1148
    %v1165 = vmax.f32 %v1079, %v1149
    %v1166 = vmax.f32 %v1130, %v1150
    %v1167 = vmax.f32 %v1132, %v1151
    %v1168 = vmax.f32 %v1083, %v1152
    %v1169 = vmax.f32 %v1085, %v1153
    %v1170 = vmax.f32 %v1136, %v1154
    %v1171 = vmax.f32 %v1138, %v1155
    %v1172 = vmax.f32 %v1087, %v1156
    %v1173 = vmax.f32 %v1089, %v1157
    %v1174 = vmax.f32 %v1140, %v1158
    %v1175 = vmax.f32 %v1142, %v1159
    %v1176 = vmul.f32 %v1160, %v287
    %v1177 = vmul.f32 %v1161, %v287
    %v1178 = vmul.f32 %v1162, %v287
    %v1179 = vmul.f32 %v1163, %v287
    %v1180 = vmul.f32 %v1164, %v288
    %v1181 = vmul.f32 %v1165, %v288
    %v1182 = vmul.f32 %v1166, %v288
    %v1183 = vmul.f32 %v1167, %v288
    %v1184 = vmul.f32 %v1168, %v289
    %v1185 = vmul.f32 %v1169, %v289
    %v1186 = vmul.f32 %v1170, %v289
    %v1187 = vmul.f32 %v1171, %v289
    %v1188 = vmul.f32 %v1172, %v290
    %v1189 = vmul.f32 %v1173, %v290
    %v1190 = vmul.f32 %v1174, %v290
    %v1191 = vmul.f32 %v1175, %v290
    %v1192 = vadd.f32 %v1176, %v1180
    %v1193 = vadd.f32 %v1192, %v1184
    %v1194 = vadd.f32 %v1193, %v1188
    %v1195 = vrot.slane %v1194, 4
    %v1196 = vadd.f32 %v1194, %v1195
    %v1197 = vrot.slane %v1196, 2
    %v1198 = vadd.f32 %v1196, %v1197
    %v1199 = vrot.slane %v1198, 1
    %v1200 = vadd.f32 %v1198, %v1199
    %v1201 = vadd.f32 %v1177, %v1181
    %v1202 = vadd.f32 %v1201, %v1185
    %v1203 = vadd.f32 %v1202, %v1189
    %v1204 = vrot.slane %v1203, 4
    %v1205 = vadd.f32 %v1203, %v1204
    %v1206 = vrot.slane %v1205, 2
    %v1207 = vadd.f32 %v1205, %v1206
    %v1208 = vrot.slane %v1207, 1
    %v1209 = vadd.f32 %v1207, %v1208
    %v1210 = vadd.f32 %v1178, %v1182
    %v1211 = vadd.f32 %v1210, %v1186
    %v1212 = vadd.f32 %v1211, %v1190
    %v1213 = vrot.slane %v1212, 4
    %v1214 = vadd.f32 %v1212, %v1213
    %v1215 = vrot.slane %v1214, 2
    %v1216 = vadd.f32 %v1214, %v1215
    %v1217 = vrot.slane %v1216, 1
    %v1218 = vadd.f32 %v1216, %v1217
    %v1219 = vadd.f32 %v1179, %v1183
    %v1220 = vadd.f32 %v1219, %v1187
    %v1221 = vadd.f32 %v1220, %v1191
    %v1222 = vrot.slane %v1221, 4
    %v1223 = vadd.f32 %v1221, %v1222
    %v1224 = vrot.slane %v1223, 2
    %v1225 = vadd.f32 %v1223, %v1224
    %v1226 = vrot.slane %v1225, 1
    %v1227 = vadd.f32 %v1225, %v1226
    %v1228 = vmul.f32 %v1176, %v1160
    %v1229 = vmul.f32 %v1177, %v1161
    %v1230 = vmul.f32 %v1178, %v1162
    %v1231 = vmul.f32 %v1179, %v1163
    %v1232 = vmul.f32 %v1180, %v1164
    %v1233 = vmul.f32 %v1181, %v1165
    %v1234 = vmul.f32 %v1182, %v1166
    %v1235 = vmul.f32 %v1183, %v1167
    %v1236 = vmul.f32 %v1184, %v1168
    %v1237 = vmul.f32 %v1185, %v1169
    %v1238 = vmul.f32 %v1186, %v1170
    %v1239 = vmul.f32 %v1187, %v1171
    %v1240 = vmul.f32 %v1188, %v1172
    %v1241 = vmul.f32 %v1189, %v1173
    %v1242 = vmul.f32 %v1190, %v1174
    %v1243 = vmul.f32 %v1191, %v1175
    %v1244 = vadd.f32 %v1228, %v1232
    %v1245 = vadd.f32 %v1244, %v1236
    %v1246 = vadd.f32 %v1245, %v1240
    %v1247 = vrot.slane %v1246, 4
    %v1248 = vadd.f32 %v1246, %v1247
    %v1249 = vrot.slane %v1248, 2
    %v1250 = vadd.f32 %v1248, %v1249
    %v1251 = vrot.slane %v1250, 1
    %v1252 = vadd.f32 %v1250, %v1251
    %v1253 = vadd.f32 %v1229, %v1233
    %v1254 = vadd.f32 %v1253, %v1237
    %v1255 = vadd.f32 %v1254, %v1241
    %v1256 = vrot.slane %v1255, 4
    %v1257 = vadd.f32 %v1255, %v1256
    %v1258 = vrot.slane %v1257, 2
    %v1259 = vadd.f32 %v1257, %v1258
    %v1260 = vrot.slane %v1259, 1
    %v1261 = vadd.f32 %v1259, %v1260
    %v1262 = vadd.f32 %v1230, %v1234
    %v1263 = vadd.f32 %v1262, %v1238
    %v1264 = vadd.f32 %v1263, %v1242
    %v1265 = vrot.slane %v1264, 4
    %v1266 = vadd.f32 %v1264, %v1265
    %v1267 = vrot.slane %v1266, 2
    %v1268 = vadd.f32 %v1266, %v1267
    %v1269 = vrot.slane %v1268, 1
    %v1270 = vadd.f32 %v1268, %v1269
    %v1271 = vadd.f32 %v1231, %v1235
    %v1272 = vadd.f32 %v1271, %v1239
    %v1273 = vadd.f32 %v1272, %v1243
    %v1274 = vrot.slane %v1273, 4
    %v1275 = vadd.f32 %v1273, %v1274
    %v1276 = vrot.slane %v1275, 2
    %v1277 = vadd.f32 %v1275, %v1276
    %v1278 = vrot.slane %v1277, 1
    %v1279 = vadd.f32 %v1277, %v1278
    %v1280 = vmul.f32 %v1200, 0.041666668
    %v1281 = vmul.f32 %v1209, 0.041666668
    %v1282 = vmul.f32 %v1218, 0.041666668
    %v1283 = vmul.f32 %v1227, 0.041666668
    %v1284 = vmul.f32 %v1252, 0.041666668
    %v1285 = vmul.f32 %v1261, 0.041666668
    %v1286 = vmul.f32 %v1270, 0.041666668
    %v1287 = vmul.f32 %v1279, 0.041666668
    %v1288 = vmul.f32 %v1280, %v1280
    %v1289 = vmul.f32 %v1281, %v1281
    %v1290 = vmul.f32 %v1282, %v1282
    %v1291 = vmul.f32 %v1283, %v1283
    %v1292 = vsub.f32 %v1284, %v1288
    %v1293 = vsub.f32 %v1285, %v1289
    %v1294 = vsub.f32 %v1286, %v1290
    %v1295 = vsub.f32 %v1287, %v1291
    %v1296 = vld [vmem:[#allocation17] sm:$0xf]
    %v1297 = vadd.f32 %v1292, 1e-05
    %v1298 = vadd.f32 %v1293, 1e-05
    %v1299 = vadd.f32 %v1294, 1e-05
    %v1300 = vadd.f32 %v1295, 1e-05
    %v1301 = vrsqrt.pop %v1297
    %v1302 = vrsqrt.pop %v1298
    %v1303 = vrsqrt.pop %v1299
    %v1304 = vrsqrt.pop %v1300
    %v1309 = vcombine.low %v1301, %v1302
    %v1310 = vcombine.low %v1303, %v1304
    %v1312 = vunpack.c.l.s4 1966171168
    %v1313 = vunpack.c.0.s8 %v1312
    %v1314 = vlaneseq
    %v1315 = vshrl.u32 %v1314, 7
    %v1316 = vsub.s32 %v1313, %v1315
    %v1317 = vrot.slane %v1309, %v1316
    %v1319 = vunpack.c.l.s4 1966171168
    %v1320 = vunpack.c.0.s8 %v1319
    %v1321 = vlaneseq
    %v1322 = vshrl.u32 %v1321, 7
    %v1323 = vsub.s32 %v1320, %v1322
    %v1324 = vrot.slane %v1310, %v1323
    %v1325 = vcombine.low %v1317, %v1324
    %v1327 = vunpack.c.l.s4 1966171168
    %v1328 = vunpack.c.0.s8 %v1327
    %v1329 = vlaneseq
    %v1330 = vshrl.u32 %v1329, 7
    %v1331 = vsub.s32 %v1328, %v1330
    %v1332 = vrot.slane %v1325, %v1331
    %v1334 = vmul.f32 %v1296, %v1332
    %v1335 = vld [vmem:[#allocation19] sm:$0xf]
    %v1337 = vlaneseq
    %v1338 = vshrl.u32 %v1337, 7
    %v1339 = vsub.s32 0, %v1338
    %v1340 = vrot.slane %v1334, %v1339
    %v1341 = vlaneseq
    %v1342 = vshrl.u32 %v1341, 7
    %v1343 = vsub.s32 1, %v1342
    %v1344 = vrot.slane %v1334, %v1343
    %v1345 = vlaneseq
    %v1346 = vshrl.u32 %v1345, 7
    %v1347 = vsub.s32 2, %v1346
    %v1348 = vrot.slane %v1334, %v1347
    %v1349 = vlaneseq
    %v1350 = vshrl.u32 %v1349, 7
    %v1351 = vsub.s32 3, %v1350
    %v1352 = vrot.slane %v1334, %v1351
    %v1357 = vmul.f32 %v1280, %v1340
    %v1358 = vmul.f32 %v1281, %v1344
    %v1359 = vmul.f32 %v1282, %v1348
    %v1360 = vmul.f32 %v1283, %v1352
    %v1365 = vcombine.low %v1357, %v1358
    %v1366 = vcombine.low %v1359, %v1360
    %v1368 = vunpack.c.l.s4 1966171168
    %v1369 = vunpack.c.0.s8 %v1368
    %v1370 = vlaneseq
    %v1371 = vshrl.u32 %v1370, 7
    %v1372 = vsub.s32 %v1369, %v1371
    %v1373 = vrot.slane %v1365, %v1372
    %v1375 = vunpack.c.l.s4 1966171168
    %v1376 = vunpack.c.0.s8 %v1375
    %v1377 = vlaneseq
    %v1378 = vshrl.u32 %v1377, 7
    %v1379 = vsub.s32 %v1376, %v1378
    %v1380 = vrot.slane %v1366, %v1379
    %v1381 = vcombine.low %v1373, %v1380
    %v1383 = vunpack.c.l.s4 1966171168
    %v1384 = vunpack.c.0.s8 %v1383
    %v1385 = vlaneseq
    %v1386 = vshrl.u32 %v1385, 7
    %v1387 = vsub.s32 %v1384, %v1386
    %v1388 = vrot.slane %v1381, %v1387
    %v1390 = vsub.f32 %v1335, %v1388
    %v1391 = vmul.f32 %v1160, %v1340
    %v1392 = vmul.f32 %v1161, %v1344
    %v1393 = vmul.f32 %v1162, %v1348
    %v1394 = vmul.f32 %v1163, %v1352
    %v1395 = vmul.f32 %v1164, %v1340
    %v1396 = vmul.f32 %v1165, %v1344
    %v1397 = vmul.f32 %v1166, %v1348
    %v1398 = vmul.f32 %v1167, %v1352
    %v1399 = vmul.f32 %v1168, %v1340
    %v1400 = vmul.f32 %v1169, %v1344
    %v1401 = vmul.f32 %v1170, %v1348
    %v1402 = vmul.f32 %v1171, %v1352
    %v1403 = vmul.f32 %v1172, %v1340
    %v1404 = vmul.f32 %v1173, %v1344
    %v1405 = vmul.f32 %v1174, %v1348
    %v1406 = vmul.f32 %v1175, %v1352
    %v1408 = vlaneseq
    %v1409 = vshrl.u32 %v1408, 7
    %v1410 = vsub.s32 0, %v1409
    %v1411 = vrot.slane %v1390, %v1410
    %v1412 = vlaneseq
    %v1413 = vshrl.u32 %v1412, 7
    %v1414 = vsub.s32 1, %v1413
    %v1415 = vrot.slane %v1390, %v1414
    %v1416 = vlaneseq
    %v1417 = vshrl.u32 %v1416, 7
    %v1418 = vsub.s32 2, %v1417
    %v1419 = vrot.slane %v1390, %v1418
    %v1420 = vlaneseq
    %v1421 = vshrl.u32 %v1420, 7
    %v1422 = vsub.s32 3, %v1421
    %v1423 = vrot.slane %v1390, %v1422
    %v1428 = vadd.f32 %v1391, %v1411
    %v1429 = vadd.f32 %v1392, %v1415
    %v1430 = vadd.f32 %v1393, %v1419
    %v1431 = vadd.f32 %v1394, %v1423
    %v1432 = vadd.f32 %v1395, %v1411
    %v1433 = vadd.f32 %v1396, %v1415
    %v1434 = vadd.f32 %v1397, %v1419
    %v1435 = vadd.f32 %v1398, %v1423
    %v1436 = vadd.f32 %v1399, %v1411
    %v1437 = vadd.f32 %v1400, %v1415
    %v1438 = vadd.f32 %v1401, %v1419
    %v1439 = vadd.f32 %v1402, %v1423
    %v1440 = vadd.f32 %v1403, %v1411
    %v1441 = vadd.f32 %v1404, %v1415
    %v1442 = vadd.f32 %v1405, %v1419
    %v1443 = vadd.f32 %v1406, %v1423
    %v1444 = vpack.c.bf16 %v1432, %v1428
    %v1445 = vpack.c.bf16 %v1433, %v1429
    %v1446 = vpack.c.bf16 %v1434, %v1430
    %v1447 = vpack.c.bf16 %v1435, %v1431
    %v1448 = vpack.c.bf16 %v1440, %v1436
    %v1449 = vpack.c.bf16 %v1441, %v1437
    %v1450 = vpack.c.bf16 %v1442, %v1438
    %v1451 = vpack.c.bf16 %v1443, %v1439
    %s1452 = smul.u32 4, 64
    %s1453 = smul.u32 %s1452, 8
    %s1454 = sshll.u32 %s1453, 4
    %1455 = dma.done [#allocation4], %s1454
    %v1456 = vld [vmem:[#allocation2] sm:$0xff]
    %v1457 = vld [vmem:[#allocation2 + $0x8] sm:$0xff]
    %v1458 = vld [vmem:[#allocation2 + $0x10] sm:$0xff]
    %v1459 = vld [vmem:[#allocation2 + $0x18] sm:$0xff]
    %v1460 = vld [vmem:[#allocation2 + $0x20] sm:$0xff]
    %v1461 = vld [vmem:[#allocation2 + $0x28] sm:$0xff]
    %v1462 = vld [vmem:[#allocation2 + $0x30] sm:$0xff]
    %v1463 = vld [vmem:[#allocation2 + $0x38] sm:$0xff]
    %v1464 = vld [vmem:[#allocation2 + $0x40] sm:$0xff]
    %v1465 = vld [vmem:[#allocation2 + $0x48] sm:$0xff]
    %v1466 = vld [vmem:[#allocation2 + $0x50] sm:$0xff]
    %v1467 = vld [vmem:[#allocation2 + $0x58] sm:$0xff]
    %v1468 = vld [vmem:[#allocation2 + $0x60] sm:$0xff]
    %v1469 = vld [vmem:[#allocation2 + $0x68] sm:$0xff]
    %v1470 = vld [vmem:[#allocation2 + $0x70] sm:$0xff]
    %v1471 = vld [vmem:[#allocation2 + $0x78] sm:$0xff]
    %v1472 = vld [vmem:[#allocation2 + $0x80] sm:$0xff]
    %v1473 = vld [vmem:[#allocation2 + $0x88] sm:$0xff]
    %v1474 = vld [vmem:[#allocation2 + $0x90] sm:$0xff]
    %v1475 = vld [vmem:[#allocation2 + $0x98] sm:$0xff]
    %v1476 = vld [vmem:[#allocation2 + $0xa0] sm:$0xff]
    %v1477 = vld [vmem:[#allocation2 + $0xa8] sm:$0xff]
    %v1478 = vld [vmem:[#allocation2 + $0xb0] sm:$0xff]
    %v1479 = vld [vmem:[#allocation2 + $0xb8] sm:$0xff]
    %v1480 = vld [vmem:[#allocation2 + $0xc0] sm:$0xff]
    %v1481 = vld [vmem:[#allocation2 + $0xc8] sm:$0xff]
    %v1482 = vld [vmem:[#allocation2 + $0xd0] sm:$0xff]
    %v1483 = vld [vmem:[#allocation2 + $0xd8] sm:$0xff]
    %v1484 = vld [vmem:[#allocation2 + $0xe0] sm:$0xff]
    %v1485 = vld [vmem:[#allocation2 + $0xe8] sm:$0xff]
    %v1486 = vld [vmem:[#allocation2 + $0xf0] sm:$0xff]
    %v1487 = vld [vmem:[#allocation2 + $0xf8] sm:$0xff]
    %v1488 = vld [vmem:[#allocation2 + $0x100] sm:$0xff]
    %v1489 = vld [vmem:[#allocation2 + $0x108] sm:$0xff]
    %v1490 = vld [vmem:[#allocation2 + $0x110] sm:$0xff]
    %v1491 = vld [vmem:[#allocation2 + $0x118] sm:$0xff]
    %v1492 = vld [vmem:[#allocation2 + $0x120] sm:$0xff]
    %v1493 = vld [vmem:[#allocation2 + $0x128] sm:$0xff]
    %v1494 = vld [vmem:[#allocation2 + $0x130] sm:$0xff]
    %v1495 = vld [vmem:[#allocation2 + $0x138] sm:$0xff]
    %v1496 = vld [vmem:[#allocation2 + $0x140] sm:$0xff]
    %v1497 = vld [vmem:[#allocation2 + $0x148] sm:$0xff]
    %v1498 = vld [vmem:[#allocation2 + $0x150] sm:$0xff]
    %v1499 = vld [vmem:[#allocation2 + $0x158] sm:$0xff]
    %v1500 = vld [vmem:[#allocation2 + $0x160] sm:$0xff]
    %v1501 = vld [vmem:[#allocation2 + $0x168] sm:$0xff]
    %v1502 = vld [vmem:[#allocation2 + $0x170] sm:$0xff]
    %v1503 = vld [vmem:[#allocation2 + $0x178] sm:$0xff]
    %v1504 = vld [vmem:[#allocation2 + $0x180] sm:$0xff]
    %v1505 = vld [vmem:[#allocation2 + $0x188] sm:$0xff]
    %v1506 = vld [vmem:[#allocation2 + $0x190] sm:$0xff]
    %v1507 = vld [vmem:[#allocation2 + $0x198] sm:$0xff]
    %v1508 = vld [vmem:[#allocation2 + $0x1a0] sm:$0xff]
    %v1509 = vld [vmem:[#allocation2 + $0x1a8] sm:$0xff]
    %v1510 = vld [vmem:[#allocation2 + $0x1b0] sm:$0xff]
    %v1511 = vld [vmem:[#allocation2 + $0x1b8] sm:$0xff]
    %v1512 = vld [vmem:[#allocation2 + $0x1c0] sm:$0xff]
    %v1513 = vld [vmem:[#allocation2 + $0x1c8] sm:$0xff]
    %v1514 = vld [vmem:[#allocation2 + $0x1d0] sm:$0xff]
    %v1515 = vld [vmem:[#allocation2 + $0x1d8] sm:$0xff]
    %v1516 = vld [vmem:[#allocation2 + $0x1e0] sm:$0xff]
    %v1517 = vld [vmem:[#allocation2 + $0x1e8] sm:$0xff]
    %v1518 = vld [vmem:[#allocation2 + $0x1f0] sm:$0xff]
    %v1519 = vld [vmem:[#allocation2 + $0x1f8] sm:$0xff]
    %v1520 = vld [vmem:[#allocation2 + $0x200] sm:$0xff]
    %v1521 = vld [vmem:[#allocation2 + $0x208] sm:$0xff]
    %v1522 = vld [vmem:[#allocation2 + $0x210] sm:$0xff]
    %v1523 = vld [vmem:[#allocation2 + $0x218] sm:$0xff]
    %v1524 = vld [vmem:[#allocation2 + $0x220] sm:$0xff]
    %v1525 = vld [vmem:[#allocation2 + $0x228] sm:$0xff]
    %v1526 = vld [vmem:[#allocation2 + $0x230] sm:$0xff]
    %v1527 = vld [vmem:[#allocation2 + $0x238] sm:$0xff]
    %v1528 = vld [vmem:[#allocation2 + $0x240] sm:$0xff]
    %v1529 = vld [vmem:[#allocation2 + $0x248] sm:$0xff]
    %v1530 = vld [vmem:[#allocation2 + $0x250] sm:$0xff]
    %v1531 = vld [vmem:[#allocation2 + $0x258] sm:$0xff]
    %v1532 = vld [vmem:[#allocation2 + $0x260] sm:$0xff]
    %v1533 = vld [vmem:[#allocation2 + $0x268] sm:$0xff]
    %v1534 = vld [vmem:[#allocation2 + $0x270] sm:$0xff]
    %v1535 = vld [vmem:[#allocation2 + $0x278] sm:$0xff]
    %v1536 = vld [vmem:[#allocation2 + $0x280] sm:$0xff]
    %v1537 = vld [vmem:[#allocation2 + $0x288] sm:$0xff]
    %v1538 = vld [vmem:[#allocation2 + $0x290] sm:$0xff]
    %v1539 = vld [vmem:[#allocation2 + $0x298] sm:$0xff]
    %v1540 = vld [vmem:[#allocation2 + $0x2a0] sm:$0xff]
    %v1541 = vld [vmem:[#allocation2 + $0x2a8] sm:$0xff]
    %v1542 = vld [vmem:[#allocation2 + $0x2b0] sm:$0xff]
    %v1543 = vld [vmem:[#allocation2 + $0x2b8] sm:$0xff]
    %v1544 = vld [vmem:[#allocation2 + $0x2c0] sm:$0xff]
    %v1545 = vld [vmem:[#allocation2 + $0x2c8] sm:$0xff]
    %v1546 = vld [vmem:[#allocation2 + $0x2d0] sm:$0xff]
    %v1547 = vld [vmem:[#allocation2 + $0x2d8] sm:$0xff]
    %v1548 = vld [vmem:[#allocation2 + $0x2e0] sm:$0xff]
    %v1549 = vld [vmem:[#allocation2 + $0x2e8] sm:$0xff]
    %v1550 = vld [vmem:[#allocation2 + $0x2f0] sm:$0xff]
    %v1551 = vld [vmem:[#allocation2 + $0x2f8] sm:$0xff]
    %v1552 = vld [vmem:[#allocation2 + $0x300] sm:$0xff]
    %v1553 = vld [vmem:[#allocation2 + $0x308] sm:$0xff]
    %v1554 = vld [vmem:[#allocation2 + $0x310] sm:$0xff]
    %v1555 = vld [vmem:[#allocation2 + $0x318] sm:$0xff]
    %v1556 = vld [vmem:[#allocation2 + $0x320] sm:$0xff]
    %v1557 = vld [vmem:[#allocation2 + $0x328] sm:$0xff]
    %v1558 = vld [vmem:[#allocation2 + $0x330] sm:$0xff]
    %v1559 = vld [vmem:[#allocation2 + $0x338] sm:$0xff]
    %v1560 = vld [vmem:[#allocation2 + $0x340] sm:$0xff]
    %v1561 = vld [vmem:[#allocation2 + $0x348] sm:$0xff]
    %v1562 = vld [vmem:[#allocation2 + $0x350] sm:$0xff]
    %v1563 = vld [vmem:[#allocation2 + $0x358] sm:$0xff]
    %v1564 = vld [vmem:[#allocation2 + $0x360] sm:$0xff]
    %v1565 = vld [vmem:[#allocation2 + $0x368] sm:$0xff]
    %v1566 = vld [vmem:[#allocation2 + $0x370] sm:$0xff]
    %v1567 = vld [vmem:[#allocation2 + $0x378] sm:$0xff]
    %v1568 = vld [vmem:[#allocation2 + $0x380] sm:$0xff]
    %v1569 = vld [vmem:[#allocation2 + $0x388] sm:$0xff]
    %v1570 = vld [vmem:[#allocation2 + $0x390] sm:$0xff]
    %v1571 = vld [vmem:[#allocation2 + $0x398] sm:$0xff]
    %v1572 = vld [vmem:[#allocation2 + $0x3a0] sm:$0xff]
    %v1573 = vld [vmem:[#allocation2 + $0x3a8] sm:$0xff]
    %v1574 = vld [vmem:[#allocation2 + $0x3b0] sm:$0xff]
    %v1575 = vld [vmem:[#allocation2 + $0x3b8] sm:$0xff]
    %v1576 = vld [vmem:[#allocation2 + $0x3c0] sm:$0xff]
    %v1577 = vld [vmem:[#allocation2 + $0x3c8] sm:$0xff]
    %v1578 = vld [vmem:[#allocation2 + $0x3d0] sm:$0xff]
    %v1579 = vld [vmem:[#allocation2 + $0x3d8] sm:$0xff]
    %v1580 = vld [vmem:[#allocation2 + $0x3e0] sm:$0xff]
    %v1581 = vld [vmem:[#allocation2 + $0x3e8] sm:$0xff]
    %v1582 = vld [vmem:[#allocation2 + $0x3f0] sm:$0xff]
    %v1583 = vld [vmem:[#allocation2 + $0x3f8] sm:$0xff]
    %v1584 = vld [vmem:[#allocation2 + $0x400] sm:$0xff]
    %v1585 = vld [vmem:[#allocation2 + $0x408] sm:$0xff]
    %v1586 = vld [vmem:[#allocation2 + $0x410] sm:$0xff]
    %v1587 = vld [vmem:[#allocation2 + $0x418] sm:$0xff]
    %v1588 = vld [vmem:[#allocation2 + $0x420] sm:$0xff]
    %v1589 = vld [vmem:[#allocation2 + $0x428] sm:$0xff]
    %v1590 = vld [vmem:[#allocation2 + $0x430] sm:$0xff]
    %v1591 = vld [vmem:[#allocation2 + $0x438] sm:$0xff]
    %v1592 = vld [vmem:[#allocation2 + $0x440] sm:$0xff]
    %v1593 = vld [vmem:[#allocation2 + $0x448] sm:$0xff]
    %v1594 = vld [vmem:[#allocation2 + $0x450] sm:$0xff]
    %v1595 = vld [vmem:[#allocation2 + $0x458] sm:$0xff]
    %v1596 = vld [vmem:[#allocation2 + $0x460] sm:$0xff]
    %v1597 = vld [vmem:[#allocation2 + $0x468] sm:$0xff]
    %v1598 = vld [vmem:[#allocation2 + $0x470] sm:$0xff]
    %v1599 = vld [vmem:[#allocation2 + $0x478] sm:$0xff]
    %v1600 = vld [vmem:[#allocation2 + $0x480] sm:$0xff]
    %v1601 = vld [vmem:[#allocation2 + $0x488] sm:$0xff]
    %v1602 = vld [vmem:[#allocation2 + $0x490] sm:$0xff]
    %v1603 = vld [vmem:[#allocation2 + $0x498] sm:$0xff]
    %v1604 = vld [vmem:[#allocation2 + $0x4a0] sm:$0xff]
    %v1605 = vld [vmem:[#allocation2 + $0x4a8] sm:$0xff]
    %v1606 = vld [vmem:[#allocation2 + $0x4b0] sm:$0xff]
    %v1607 = vld [vmem:[#allocation2 + $0x4b8] sm:$0xff]
    %v1608 = vld [vmem:[#allocation2 + $0x4c0] sm:$0xff]
    %v1609 = vld [vmem:[#allocation2 + $0x4c8] sm:$0xff]
    %v1610 = vld [vmem:[#allocation2 + $0x4d0] sm:$0xff]
    %v1611 = vld [vmem:[#allocation2 + $0x4d8] sm:$0xff]
    %v1612 = vld [vmem:[#allocation2 + $0x4e0] sm:$0xff]
    %v1613 = vld [vmem:[#allocation2 + $0x4e8] sm:$0xff]
    %v1614 = vld [vmem:[#allocation2 + $0x4f0] sm:$0xff]
    %v1615 = vld [vmem:[#allocation2 + $0x4f8] sm:$0xff]
    %v1616 = vld [vmem:[#allocation2 + $0x500] sm:$0xff]
    %v1617 = vld [vmem:[#allocation2 + $0x508] sm:$0xff]
    %v1618 = vld [vmem:[#allocation2 + $0x510] sm:$0xff]
    %v1619 = vld [vmem:[#allocation2 + $0x518] sm:$0xff]
    %v1620 = vld [vmem:[#allocation2 + $0x520] sm:$0xff]
    %v1621 = vld [vmem:[#allocation2 + $0x528] sm:$0xff]
    %v1622 = vld [vmem:[#allocation2 + $0x530] sm:$0xff]
    %v1623 = vld [vmem:[#allocation2 + $0x538] sm:$0xff]
    %v1624 = vld [vmem:[#allocation2 + $0x540] sm:$0xff]
    %v1625 = vld [vmem:[#allocation2 + $0x548] sm:$0xff]
    %v1626 = vld [vmem:[#allocation2 + $0x550] sm:$0xff]
    %v1627 = vld [vmem:[#allocation2 + $0x558] sm:$0xff]
    %v1628 = vld [vmem:[#allocation2 + $0x560] sm:$0xff]
    %v1629 = vld [vmem:[#allocation2 + $0x568] sm:$0xff]
    %v1630 = vld [vmem:[#allocation2 + $0x570] sm:$0xff]
    %v1631 = vld [vmem:[#allocation2 + $0x578] sm:$0xff]
    %v1632 = vld [vmem:[#allocation2 + $0x580] sm:$0xff]
    %v1633 = vld [vmem:[#allocation2 + $0x588] sm:$0xff]
    %v1634 = vld [vmem:[#allocation2 + $0x590] sm:$0xff]
    %v1635 = vld [vmem:[#allocation2 + $0x598] sm:$0xff]
    %v1636 = vld [vmem:[#allocation2 + $0x5a0] sm:$0xff]
    %v1637 = vld [vmem:[#allocation2 + $0x5a8] sm:$0xff]
    %v1638 = vld [vmem:[#allocation2 + $0x5b0] sm:$0xff]
    %v1639 = vld [vmem:[#allocation2 + $0x5b8] sm:$0xff]
    %v1640 = vld [vmem:[#allocation2 + $0x5c0] sm:$0xff]
    %v1641 = vld [vmem:[#allocation2 + $0x5c8] sm:$0xff]
    %v1642 = vld [vmem:[#allocation2 + $0x5d0] sm:$0xff]
    %v1643 = vld [vmem:[#allocation2 + $0x5d8] sm:$0xff]
    %v1644 = vld [vmem:[#allocation2 + $0x5e0] sm:$0xff]
    %v1645 = vld [vmem:[#allocation2 + $0x5e8] sm:$0xff]
    %v1646 = vld [vmem:[#allocation2 + $0x5f0] sm:$0xff]
    %v1647 = vld [vmem:[#allocation2 + $0x5f8] sm:$0xff]
    %v1648 = vld [vmem:[#allocation2 + $0x600] sm:$0xff]
    %v1649 = vld [vmem:[#allocation2 + $0x608] sm:$0xff]
    %v1650 = vld [vmem:[#allocation2 + $0x610] sm:$0xff]
    %v1651 = vld [vmem:[#allocation2 + $0x618] sm:$0xff]
    %v1652 = vld [vmem:[#allocation2 + $0x620] sm:$0xff]
    %v1653 = vld [vmem:[#allocation2 + $0x628] sm:$0xff]
    %v1654 = vld [vmem:[#allocation2 + $0x630] sm:$0xff]
    %v1655 = vld [vmem:[#allocation2 + $0x638] sm:$0xff]
    %v1656 = vld [vmem:[#allocation2 + $0x640] sm:$0xff]
    %v1657 = vld [vmem:[#allocation2 + $0x648] sm:$0xff]
    %v1658 = vld [vmem:[#allocation2 + $0x650] sm:$0xff]
    %v1659 = vld [vmem:[#allocation2 + $0x658] sm:$0xff]
    %v1660 = vld [vmem:[#allocation2 + $0x660] sm:$0xff]
    %v1661 = vld [vmem:[#allocation2 + $0x668] sm:$0xff]
    %v1662 = vld [vmem:[#allocation2 + $0x670] sm:$0xff]
    %v1663 = vld [vmem:[#allocation2 + $0x678] sm:$0xff]
    %v1664 = vld [vmem:[#allocation2 + $0x680] sm:$0xff]
    %v1665 = vld [vmem:[#allocation2 + $0x688] sm:$0xff]
    %v1666 = vld [vmem:[#allocation2 + $0x690] sm:$0xff]
    %v1667 = vld [vmem:[#allocation2 + $0x698] sm:$0xff]
    %v1668 = vld [vmem:[#allocation2 + $0x6a0] sm:$0xff]
    %v1669 = vld [vmem:[#allocation2 + $0x6a8] sm:$0xff]
    %v1670 = vld [vmem:[#allocation2 + $0x6b0] sm:$0xff]
    %v1671 = vld [vmem:[#allocation2 + $0x6b8] sm:$0xff]
    %v1672 = vld [vmem:[#allocation2 + $0x6c0] sm:$0xff]
    %v1673 = vld [vmem:[#allocation2 + $0x6c8] sm:$0xff]
    %v1674 = vld [vmem:[#allocation2 + $0x6d0] sm:$0xff]
    %v1675 = vld [vmem:[#allocation2 + $0x6d8] sm:$0xff]
    %v1676 = vld [vmem:[#allocation2 + $0x6e0] sm:$0xff]
    %v1677 = vld [vmem:[#allocation2 + $0x6e8] sm:$0xff]
    %v1678 = vld [vmem:[#allocation2 + $0x6f0] sm:$0xff]
    %v1679 = vld [vmem:[#allocation2 + $0x6f8] sm:$0xff]
    %v1680 = vld [vmem:[#allocation2 + $0x700] sm:$0xff]
    %v1681 = vld [vmem:[#allocation2 + $0x708] sm:$0xff]
    %v1682 = vld [vmem:[#allocation2 + $0x710] sm:$0xff]
    %v1683 = vld [vmem:[#allocation2 + $0x718] sm:$0xff]
    %v1684 = vld [vmem:[#allocation2 + $0x720] sm:$0xff]
    %v1685 = vld [vmem:[#allocation2 + $0x728] sm:$0xff]
    %v1686 = vld [vmem:[#allocation2 + $0x730] sm:$0xff]
    %v1687 = vld [vmem:[#allocation2 + $0x738] sm:$0xff]
    %v1688 = vld [vmem:[#allocation2 + $0x740] sm:$0xff]
    %v1689 = vld [vmem:[#allocation2 + $0x748] sm:$0xff]
    %v1690 = vld [vmem:[#allocation2 + $0x750] sm:$0xff]
    %v1691 = vld [vmem:[#allocation2 + $0x758] sm:$0xff]
    %v1692 = vld [vmem:[#allocation2 + $0x760] sm:$0xff]
    %v1693 = vld [vmem:[#allocation2 + $0x768] sm:$0xff]
    %v1694 = vld [vmem:[#allocation2 + $0x770] sm:$0xff]
    %v1695 = vld [vmem:[#allocation2 + $0x778] sm:$0xff]
    %v1696 = vld [vmem:[#allocation2 + $0x780] sm:$0xff]
    %v1697 = vld [vmem:[#allocation2 + $0x788] sm:$0xff]
    %v1698 = vld [vmem:[#allocation2 + $0x790] sm:$0xff]
    %v1699 = vld [vmem:[#allocation2 + $0x798] sm:$0xff]
    %v1700 = vld [vmem:[#allocation2 + $0x7a0] sm:$0xff]
    %v1701 = vld [vmem:[#allocation2 + $0x7a8] sm:$0xff]
    %v1702 = vld [vmem:[#allocation2 + $0x7b0] sm:$0xff]
    %v1703 = vld [vmem:[#allocation2 + $0x7b8] sm:$0xff]
    %v1704 = vld [vmem:[#allocation2 + $0x7c0] sm:$0xff]
    %v1705 = vld [vmem:[#allocation2 + $0x7c8] sm:$0xff]
    %v1706 = vld [vmem:[#allocation2 + $0x7d0] sm:$0xff]
    %v1707 = vld [vmem:[#allocation2 + $0x7d8] sm:$0xff]
    %v1708 = vld [vmem:[#allocation2 + $0x7e0] sm:$0xff]
    %v1709 = vld [vmem:[#allocation2 + $0x7e8] sm:$0xff]
    %v1710 = vld [vmem:[#allocation2 + $0x7f0] sm:$0xff]
    %v1711 = vld [vmem:[#allocation2 + $0x7f8] sm:$0xff]
    %v1712 = vld [vmem:[#allocation20] sm:$0xff]
    %v1714 = vlaneseq
    %v1715 = vshrl.u32 %v1714, 7
    %v1716 = vsub.s32 0, %v1715
    %v1717 = vrot.slane %v1712, %v1716
    %v1718 = vlaneseq
    %v1719 = vshrl.u32 %v1718, 7
    %v1720 = vsub.s32 1, %v1719
    %v1721 = vrot.slane %v1712, %v1720
    %v1722 = vlaneseq
    %v1723 = vshrl.u32 %v1722, 7
    %v1724 = vsub.s32 2, %v1723
    %v1725 = vrot.slane %v1712, %v1724
    %v1726 = vlaneseq
    %v1727 = vshrl.u32 %v1726, 7
    %v1728 = vsub.s32 3, %v1727
    %v1729 = vrot.slane %v1712, %v1728
    %v1730 = vlaneseq
    %v1731 = vshrl.u32 %v1730, 7
    %v1732 = vsub.s32 4, %v1731
    %v1733 = vrot.slane %v1712, %v1732
    %v1734 = vlaneseq
    %v1735 = vshrl.u32 %v1734, 7
    %v1736 = vsub.s32 5, %v1735
    %v1737 = vrot.slane %v1712, %v1736
    %v1738 = vlaneseq
    %v1739 = vshrl.u32 %v1738, 7
    %v1740 = vsub.s32 6, %v1739
    %v1741 = vrot.slane %v1712, %v1740
    %v1742 = vlaneseq
    %v1743 = vshrl.u32 %v1742, 7
    %v1744 = vsub.s32 7, %v1743
    %v1745 = vrot.slane %v1712, %v1744
    %1754 = vmatprep.subr.bf16.mxu0 %v1457
    %1755 = vmatpush1.bf16.msra.mxu0 %v1456
    %1756 = vmatprep.subr.bf16.mxu0 %v1465
    %1757 = vmatpush1.bf16.msra.mxu0 %v1464
    %1758 = vmatprep.subr.bf16.mxu0 %v1473
    %1759 = vmatpush1.bf16.msra.mxu0 %v1472
    %1760 = vmatprep.subr.bf16.mxu0 %v1481
    %1761 = vmatpush1.bf16.msra.mxu0 %v1480
    %1762 = vmatprep.subr.bf16.mxu0 %v1489
    %1763 = vmatpush1.bf16.msra.mxu0 %v1488
    %1764 = vmatprep.subr.bf16.mxu0 %v1497
    %1765 = vmatpush1.bf16.msra.mxu0 %v1496
    %1766 = vmatprep.subr.bf16.mxu0 %v1505
    %1767 = vmatpush1.bf16.msra.mxu0 %v1504
    %1768 = vmatprep.subr.bf16.mxu0 %v1513
    %1769 = vmatpush1.bf16.msra.mxu0 %v1512
    %1770 = vmatprep.subr.bf16.mxu0 %v1521
    %1771 = vmatpush1.bf16.msra.mxu0 %v1520
    %1772 = vmatprep.subr.bf16.mxu0 %v1529
    %1773 = vmatpush1.bf16.msra.mxu0 %v1528
    %1774 = vmatprep.subr.bf16.mxu0 %v1537
    %1775 = vmatpush1.bf16.msra.mxu0 %v1536
    %1776 = vmatprep.subr.bf16.mxu0 %v1545
    %1777 = vmatpush1.bf16.msra.mxu0 %v1544
    %1778 = vmatprep.subr.bf16.mxu0 %v1553
    %1779 = vmatpush1.bf16.msra.mxu0 %v1552
    %1780 = vmatprep.subr.bf16.mxu0 %v1561
    %1781 = vmatpush1.bf16.msra.mxu0 %v1560
    %1782 = vmatprep.subr.bf16.mxu0 %v1569
    %1783 = vmatpush1.bf16.msra.mxu0 %v1568
    %1784 = vmatprep.subr.bf16.mxu0 %v1577
    %1785 = vmatpush1.bf16.msra.mxu0 %v1576
    %1786 = vmatprep.mubr.bf16.mxu0 %v1445
    %1787 = vmatmul.mubr.bf16.gmra.mrb[0].mxu0 %v1444
    %v1788 = vpop.f32.mrb[0].mxu0
    %v1789 = vadd.f32 %v1717, %v1788
    %v1790 = vpop.f32.mrb[0].mxu0
    %v1791 = vadd.f32 %v1721, %v1790
    %v1792 = vpop.f32.mrb[0].mxu0
    %v1793 = vadd.f32 %v1717, %v1792
    %v1794 = vpop.f32.mrb[0].mxu0
    %v1795 = vadd.f32 %v1721, %v1794
    %1796 = vmatprep.mubr.bf16.mxu0 %v1449
    %1797 = vmatmul.mubr.bf16.gmra.mrb[0].mxu0 %v1448
    %v1798 = vpop.f32.mrb[0].mxu0
    %v1799 = vadd.f32 %v1717, %v1798
    %v1800 = vpop.f32.mrb[0].mxu0
    %v1801 = vadd.f32 %v1721, %v1800
    %v1802 = vpop.f32.mrb[0].mxu0
    %v1803 = vadd.f32 %v1717, %v1802
    %v1804 = vpop.f32.mrb[0].mxu0
    %v1805 = vadd.f32 %v1721, %v1804
    %1806 = vdwg.mxu0
    %1807 = vmatprep.subr.bf16.mxu0 %v1585
    %1808 = vmatpush1.bf16.msra.mxu0 %v1584
    %1809 = vmatprep.subr.bf16.mxu0 %v1593
    %1810 = vmatpush1.bf16.msra.mxu0 %v1592
    %1811 = vmatprep.subr.bf16.mxu0 %v1601
    %1812 = vmatpush1.bf16.msra.mxu0 %v1600
    %1813 = vmatprep.subr.bf16.mxu0 %v1609
    %1814 = vmatpush1.bf16.msra.mxu0 %v1608
    %1815 = vmatprep.subr.bf16.mxu0 %v1617
    %1816 = vmatpush1.bf16.msra.mxu0 %v1616
    %1817 = vmatprep.subr.bf16.mxu0 %v1625
    %1818 = vmatpush1.bf16.msra.mxu0 %v1624
    %1819 = vmatprep.subr.bf16.mxu0 %v1633
    %1820 = vmatpush1.bf16.msra.mxu0 %v1632
    %1821 = vmatprep.subr.bf16.mxu0 %v1641
    %1822 = vmatpush1.bf16.msra.mxu0 %v1640
    %1823 = vmatprep.subr.bf16.mxu0 %v1649
    %1824 = vmatpush1.bf16.msra.mxu0 %v1648
    %1825 = vmatprep.subr.bf16.mxu0 %v1657
    %1826 = vmatpush1.bf16.msra.mxu0 %v1656
    %1827 = vmatprep.subr.bf16.mxu0 %v1665
    %1828 = vmatpush1.bf16.msra.mxu0 %v1664
    %1829 = vmatprep.subr.bf16.mxu0 %v1673
    %1830 = vmatpush1.bf16.msra.mxu0 %v1672
    %1831 = vmatprep.subr.bf16.mxu0 %v1681
    %1832 = vmatpush1.bf16.msra.mxu0 %v1680
    %1833 = vmatprep.subr.bf16.mxu0 %v1689
    %1834 = vmatpush1.bf16.msra.mxu0 %v1688
    %1835 = vmatprep.subr.bf16.mxu0 %v1697
    %1836 = vmatpush1.bf16.msra.mxu0 %v1696
    %1837 = vmatprep.subr.bf16.mxu0 %v1705
    %1838 = vmatpush1.bf16.msra.mxu0 %v1704
    %1839 = vmatprep.mubr.bf16.mxu0 %v1447
    %1840 = vmatmul.mubr.bf16.gmra.mrb[0].mxu0 %v1446
    %v1841 = vpop.f32.mrb[0].mxu0
    %v1842 = vadd.f32 %v1789, %v1841
    %v1843 = vpop.f32.mrb[0].mxu0
    %v1844 = vadd.f32 %v1791, %v1843
    %v1845 = vpop.f32.mrb[0].mxu0
    %v1846 = vadd.f32 %v1793, %v1845
    %v1847 = vpop.f32.mrb[0].mxu0
    %v1848 = vadd.f32 %v1795, %v1847
    %1849 = vmatprep.mubr.bf16.mxu0 %v1451
    %1850 = vmatmul.mubr.bf16.gmra.mrb[0].mxu0 %v1450
    %v1851 = vpop.f32.mrb[0].mxu0
    %v1852 = vadd.f32 %v1799, %v1851
    %v1853 = vpop.f32.mrb[0].mxu0
    %v1854 = vadd.f32 %v1801, %v1853
    %v1855 = vpop.f32.mrb[0].mxu0
    %v1856 = vadd.f32 %v1803, %v1855
    %v1857 = vpop.f32.mrb[0].mxu0
    %v1858 = vadd.f32 %v1805, %v1857
    %1859 = vdwg.mxu0
    %1860 = vmatprep.subr.bf16.mxu0 %v1459
    %1861 = vmatpush1.bf16.msra.mxu0 %v1458
    %1862 = vmatprep.subr.bf16.mxu0 %v1467
    %1863 = vmatpush1.bf16.msra.mxu0 %v1466
    %1864 = vmatprep.subr.bf16.mxu0 %v1475
    %1865 = vmatpush1.bf16.msra.mxu0 %v1474
    %1866 = vmatprep.subr.bf16.mxu0 %v1483
    %1867 = vmatpush1.bf16.msra.mxu0 %v1482
    %1868 = vmatprep.subr.bf16.mxu0 %v1491
    %1869 = vmatpush1.bf16.msra.mxu0 %v1490
    %1870 = vmatprep.subr.bf16.mxu0 %v1499
    %1871 = vmatpush1.bf16.msra.mxu0 %v1498
    %1872 = vmatprep.subr.bf16.mxu0 %v1507
    %1873 = vmatpush1.bf16.msra.mxu0 %v1506
    %1874 = vmatprep.subr.bf16.mxu0 %v1515
    %1875 = vmatpush1.bf16.msra.mxu0 %v1514
    %1876 = vmatprep.subr.bf16.mxu0 %v1523
    %1877 = vmatpush1.bf16.msra.mxu0 %v1522
    %1878 = vmatprep.subr.bf16.mxu0 %v1531
    %1879 = vmatpush1.bf16.msra.mxu0 %v1530
    %1880 = vmatprep.subr.bf16.mxu0 %v1539
    %1881 = vmatpush1.bf16.msra.mxu0 %v1538
    %1882 = vmatprep.subr.bf16.mxu0 %v1547
    %1883 = vmatpush1.bf16.msra.mxu0 %v1546
    %1884 = vmatprep.subr.bf16.mxu0 %v1555
    %1885 = vmatpush1.bf16.msra.mxu0 %v1554
    %1886 = vmatprep.subr.bf16.mxu0 %v1563
    %1887 = vmatpush1.bf16.msra.mxu0 %v1562
    %1888 = vmatprep.subr.bf16.mxu0 %v1571
    %1889 = vmatpush1.bf16.msra.mxu0 %v1570
    %1890 = vmatprep.subr.bf16.mxu0 %v1579
    %1891 = vmatpush1.bf16.msra.mxu0 %v1578
    %1892 = vmatprep.mubr.bf16.mxu0 %v1445
    %1893 = vmatmul.mubr.bf16.gmra.mrb[0].mxu0 %v1444
    %v1894 = vpop.f32.mrb[0].mxu0
    %v1895 = vadd.f32 %v1725, %v1894
    %v1896 = vpop.f32.mrb[0].mxu0
    %v1897 = vadd.f32 %v1729, %v1896
    %v1898 = vpop.f32.mrb[0].mxu0
    %v1899 = vadd.f32 %v1725, %v1898
    %v1900 = vpop.f32.mrb[0].mxu0
    %v1901 = vadd.f32 %v1729, %v1900
    %1902 = vmatprep.mubr.bf16.mxu0 %v1449
    %1903 = vmatmul.mubr.bf16.gmra.mrb[0].mxu0 %v1448
    %v1904 = vpop.f32.mrb[0].mxu0
    %v1905 = vadd.f32 %v1725, %v1904
    %v1906 = vpop.f32.mrb[0].mxu0
    %v1907 = vadd.f32 %v1729, %v1906
    %v1908 = vpop.f32.mrb[0].mxu0
    %v1909 = vadd.f32 %v1725, %v1908
    %v1910 = vpop.f32.mrb[0].mxu0
    %v1911 = vadd.f32 %v1729, %v1910
    %1912 = vdwg.mxu0
    %1913 = vmatprep.subr.bf16.mxu0 %v1587
    %1914 = vmatpush1.bf16.msra.mxu0 %v1586
    %1915 = vmatprep.subr.bf16.mxu0 %v1595
    %1916 = vmatpush1.bf16.msra.mxu0 %v1594
    %1917 = vmatprep.subr.bf16.mxu0 %v1603
    %1918 = vmatpush1.bf16.msra.mxu0 %v1602
    %1919 = vmatprep.subr.bf16.mxu0 %v1611
    %1920 = vmatpush1.bf16.msra.mxu0 %v1610
    %1921 = vmatprep.subr.bf16.mxu0 %v1619
    %1922 = vmatpush1.bf16.msra.mxu0 %v1618
    %1923 = vmatprep.subr.bf16.mxu0 %v1627
    %1924 = vmatpush1.bf16.msra.mxu0 %v1626
    %1925 = vmatprep.subr.bf16.mxu0 %v1635
    %1926 = vmatpush1.bf16.msra.mxu0 %v1634
    %1927 = vmatprep.subr.bf16.mxu0 %v1643
    %1928 = vmatpush1.bf16.msra.mxu0 %v1642
    %1929 = vmatprep.subr.bf16.mxu0 %v1651
    %1930 = vmatpush1.bf16.msra.mxu0 %v1650
    %1931 = vmatprep.subr.bf16.mxu0 %v1659
    %1932 = vmatpush1.bf16.msra.mxu0 %v1658
    %1933 = vmatprep.subr.bf16.mxu0 %v1667
    %1934 = vmatpush1.bf16.msra.mxu0 %v1666
    %1935 = vmatprep.subr.bf16.mxu0 %v1675
    %1936 = vmatpush1.bf16.msra.mxu0 %v1674
    %1937 = vmatprep.subr.bf16.mxu0 %v1683
    %1938 = vmatpush1.bf16.msra.mxu0 %v1682
    %1939 = vmatprep.subr.bf16.mxu0 %v1691
    %1940 = vmatpush1.bf16.msra.mxu0 %v1690
    %1941 = vmatprep.subr.bf16.mxu0 %v1699
    %1942 = vmatpush1.bf16.msra.mxu0 %v1698
    %1943 = vmatprep.subr.bf16.mxu0 %v1707
    %1944 = vmatpush1.bf16.msra.mxu0 %v1706
    %1945 = vmatprep.mubr.bf16.mxu0 %v1447
    %1946 = vmatmul.mubr.bf16.gmra.mrb[0].mxu0 %v1446
    %v1947 = vpop.f32.mrb[0].mxu0
    %v1948 = vadd.f32 %v1895, %v1947
    %v1949 = vpop.f32.mrb[0].mxu0
    %v1950 = vadd.f32 %v1897, %v1949
    %v1951 = vpop.f32.mrb[0].mxu0
    %v1952 = vadd.f32 %v1899, %v1951
    %v1953 = vpop.f32.mrb[0].mxu0
    %v1954 = vadd.f32 %v1901, %v1953
    %1955 = vmatprep.mubr.bf16.mxu0 %v1451
    %1956 = vmatmul.mubr.bf16.gmra.mrb[0].mxu0 %v1450
    %v1957 = vpop.f32.mrb[0].mxu0
    %v1958 = vadd.f32 %v1905, %v1957
    %v1959 = vpop.f32.mrb[0].mxu0
    %v1960 = vadd.f32 %v1907, %v1959
    %v1961 = vpop.f32.mrb[0].mxu0
    %v1962 = vadd.f32 %v1909, %v1961
    %v1963 = vpop.f32.mrb[0].mxu0
    %v1964 = vadd.f32 %v1911, %v1963
    %1965 = vdwg.mxu0
    %1966 = vmatprep.subr.bf16.mxu0 %v1461
    %1967 = vmatpush1.bf16.msra.mxu0 %v1460
    %1968 = vmatprep.subr.bf16.mxu0 %v1469
    %1969 = vmatpush1.bf16.msra.mxu0 %v1468
    %1970 = vmatprep.subr.bf16.mxu0 %v1477
    %1971 = vmatpush1.bf16.msra.mxu0 %v1476
    %1972 = vmatprep.subr.bf16.mxu0 %v1485
    %1973 = vmatpush1.bf16.msra.mxu0 %v1484
    %1974 = vmatprep.subr.bf16.mxu0 %v1493
    %1975 = vmatpush1.bf16.msra.mxu0 %v1492
    %1976 = vmatprep.subr.bf16.mxu0 %v1501
    %1977 = vmatpush1.bf16.msra.mxu0 %v1500
    %1978 = vmatprep.subr.bf16.mxu0 %v1509
    %1979 = vmatpush1.bf16.msra.mxu0 %v1508
    %1980 = vmatprep.subr.bf16.mxu0 %v1517
    %1981 = vmatpush1.bf16.msra.mxu0 %v1516
    %1982 = vmatprep.subr.bf16.mxu0 %v1525
    %1983 = vmatpush1.bf16.msra.mxu0 %v1524
    %1984 = vmatprep.subr.bf16.mxu0 %v1533
    %1985 = vmatpush1.bf16.msra.mxu0 %v1532
    %1986 = vmatprep.subr.bf16.mxu0 %v1541
    %1987 = vmatpush1.bf16.msra.mxu0 %v1540
    %1988 = vmatprep.subr.bf16.mxu0 %v1549
    %1989 = vmatpush1.bf16.msra.mxu0 %v1548
    %1990 = vmatprep.subr.bf16.mxu0 %v1557
    %1991 = vmatpush1.bf16.msra.mxu0 %v1556
    %1992 = vmatprep.subr.bf16.mxu0 %v1565
    %1993 = vmatpush1.bf16.msra.mxu0 %v1564
    %1994 = vmatprep.subr.bf16.mxu0 %v1573
    %1995 = vmatpush1.bf16.msra.mxu0 %v1572
    %1996 = vmatprep.subr.bf16.mxu0 %v1581
    %1997 = vmatpush1.bf16.msra.mxu0 %v1580
    %1998 = vmatprep.mubr.bf16.mxu0 %v1445
    %1999 = vmatmul.mubr.bf16.gmra.mrb[0].mxu0 %v1444
    %v2000 = vpop.f32.mrb[0].mxu0
    %v2001 = vadd.f32 %v1733, %v2000
    %v2002 = vpop.f32.mrb[0].mxu0
    %v2003 = vadd.f32 %v1737, %v2002
    %v2004 = vpop.f32.mrb[0].mxu0
    %v2005 = vadd.f32 %v1733, %v2004
    %v2006 = vpop.f32.mrb[0].mxu0
    %v2007 = vadd.f32 %v1737, %v2006
    %2008 = vmatprep.mubr.bf16.mxu0 %v1449
    %2009 = vmatmul.mubr.bf16.gmra.mrb[0].mxu0 %v1448
    %v2010 = vpop.f32.mrb[0].mxu0
    %v2011 = vadd.f32 %v1733, %v2010
    %v2012 = vpop.f32.mrb[0].mxu0
    %v2013 = vadd.f32 %v1737, %v2012
    %v2014 = vpop.f32.mrb[0].mxu0
    %v2015 = vadd.f32 %v1733, %v2014
    %v2016 = vpop.f32.mrb[0].mxu0
    %v2017 = vadd.f32 %v1737, %v2016
    %2018 = vdwg.mxu0
    %2019 = vmatprep.subr.bf16.mxu0 %v1589
    %2020 = vmatpush1.bf16.msra.mxu0 %v1588
    %2021 = vmatprep.subr.bf16.mxu0 %v1597
    %2022 = vmatpush1.bf16.msra.mxu0 %v1596
    %2023 = vmatprep.subr.bf16.mxu0 %v1605
    %2024 = vmatpush1.bf16.msra.mxu0 %v1604
    %2025 = vmatprep.subr.bf16.mxu0 %v1613
    %2026 = vmatpush1.bf16.msra.mxu0 %v1612
    %2027 = vmatprep.subr.bf16.mxu0 %v1621
    %2028 = vmatpush1.bf16.msra.mxu0 %v1620
    %2029 = vmatprep.subr.bf16.mxu0 %v1629
    %2030 = vmatpush1.bf16.msra.mxu0 %v1628
    %2031 = vmatprep.subr.bf16.mxu0 %v1637
    %2032 = vmatpush1.bf16.msra.mxu0 %v1636
    %2033 = vmatprep.subr.bf16.mxu0 %v1645
    %2034 = vmatpush1.bf16.msra.mxu0 %v1644
    %2035 = vmatprep.subr.bf16.mxu0 %v1653
    %2036 = vmatpush1.bf16.msra.mxu0 %v1652
    %2037 = vmatprep.subr.bf16.mxu0 %v1661
    %2038 = vmatpush1.bf16.msra.mxu0 %v1660
    %2039 = vmatprep.subr.bf16.mxu0 %v1669
    %2040 = vmatpush1.bf16.msra.mxu0 %v1668
    %2041 = vmatprep.subr.bf16.mxu0 %v1677
    %2042 = vmatpush1.bf16.msra.mxu0 %v1676
    %2043 = vmatprep.subr.bf16.mxu0 %v1685
    %2044 = vmatpush1.bf16.msra.mxu0 %v1684
    %2045 = vmatprep.subr.bf16.mxu0 %v1693
    %2046 = vmatpush1.bf16.msra.mxu0 %v1692
    %2047 = vmatprep.subr.bf16.mxu0 %v1701
    %2048 = vmatpush1.bf16.msra.mxu0 %v1700
    %2049 = vmatprep.subr.bf16.mxu0 %v1709
    %2050 = vmatpush1.bf16.msra.mxu0 %v1708
    %2051 = vmatprep.mubr.bf16.mxu0 %v1447
    %2052 = vmatmul.mubr.bf16.gmra.mrb[0].mxu0 %v1446
    %v2053 = vpop.f32.mrb[0].mxu0
    %v2054 = vadd.f32 %v2001, %v2053
    %v2055 = vpop.f32.mrb[0].mxu0
    %v2056 = vadd.f32 %v2003, %v2055
    %v2057 = vpop.f32.mrb[0].mxu0
    %v2058 = vadd.f32 %v2005, %v2057
    %v2059 = vpop.f32.mrb[0].mxu0
    %v2060 = vadd.f32 %v2007, %v2059
    %2061 = vmatprep.mubr.bf16.mxu0 %v1451
    %2062 = vmatmul.mubr.bf16.gmra.mrb[0].mxu0 %v1450
    %v2063 = vpop.f32.mrb[0].mxu0
    %v2064 = vadd.f32 %v2011, %v2063
    %v2065 = vpop.f32.mrb[0].mxu0
    %v2066 = vadd.f32 %v2013, %v2065
    %v2067 = vpop.f32.mrb[0].mxu0
    %v2068 = vadd.f32 %v2015, %v2067
    %v2069 = vpop.f32.mrb[0].mxu0
    %v2070 = vadd.f32 %v2017, %v2069
    %2071 = vdwg.mxu0
    %2072 = vmatprep.subr.bf16.mxu0 %v1463
    %2073 = vmatpush1.bf16.msra.mxu0 %v1462
    %2074 = vmatprep.subr.bf16.mxu0 %v1471
    %2075 = vmatpush1.bf16.msra.mxu0 %v1470
    %2076 = vmatprep.subr.bf16.mxu0 %v1479
    %2077 = vmatpush1.bf16.msra.mxu0 %v1478
    %2078 = vmatprep.subr.bf16.mxu0 %v1487
    %2079 = vmatpush1.bf16.msra.mxu0 %v1486
    %2080 = vmatprep.subr.bf16.mxu0 %v1495
    %2081 = vmatpush1.bf16.msra.mxu0 %v1494
    %2082 = vmatprep.subr.bf16.mxu0 %v1503
    %2083 = vmatpush1.bf16.msra.mxu0 %v1502
    %2084 = vmatprep.subr.bf16.mxu0 %v1511
    %2085 = vmatpush1.bf16.msra.mxu0 %v1510
    %2086 = vmatprep.subr.bf16.mxu0 %v1519
    %2087 = vmatpush1.bf16.msra.mxu0 %v1518
    %2088 = vmatprep.subr.bf16.mxu0 %v1527
    %2089 = vmatpush1.bf16.msra.mxu0 %v1526
    %2090 = vmatprep.subr.bf16.mxu0 %v1535
    %2091 = vmatpush1.bf16.msra.mxu0 %v1534
    %2092 = vmatprep.subr.bf16.mxu0 %v1543
    %2093 = vmatpush1.bf16.msra.mxu0 %v1542
    %2094 = vmatprep.subr.bf16.mxu0 %v1551
    %2095 = vmatpush1.bf16.msra.mxu0 %v1550
    %2096 = vmatprep.subr.bf16.mxu0 %v1559
    %2097 = vmatpush1.bf16.msra.mxu0 %v1558
    %2098 = vmatprep.subr.bf16.mxu0 %v1567
    %2099 = vmatpush1.bf16.msra.mxu0 %v1566
    %2100 = vmatprep.subr.bf16.mxu0 %v1575
    %2101 = vmatpush1.bf16.msra.mxu0 %v1574
    %2102 = vmatprep.subr.bf16.mxu0 %v1583
    %2103 = vmatpush1.bf16.msra.mxu0 %v1582
    %2104 = vmatprep.mubr.bf16.mxu0 %v1445
    %2105 = vmatmul.mubr.bf16.gmra.mrb[0].mxu0 %v1444
    %v2106 = vpop.f32.mrb[0].mxu0
    %v2107 = vadd.f32 %v1741, %v2106
    %v2108 = vpop.f32.mrb[0].mxu0
    %v2109 = vadd.f32 %v1745, %v2108
    %v2110 = vpop.f32.mrb[0].mxu0
    %v2111 = vadd.f32 %v1741, %v2110
    %v2112 = vpop.f32.mrb[0].mxu0
    %v2113 = vadd.f32 %v1745, %v2112
    %2114 = vmatprep.mubr.bf16.mxu0 %v1449
    %2115 = vmatmul.mubr.bf16.gmra.mrb[0].mxu0 %v1448
    %v2116 = vpop.f32.mrb[0].mxu0
    %v2117 = vadd.f32 %v1741, %v2116
    %v2118 = vpop.f32.mrb[0].mxu0
    %v2119 = vadd.f32 %v1745, %v2118
    %v2120 = vpop.f32.mrb[0].mxu0
    %v2121 = vadd.f32 %v1741, %v2120
    %v2122 = vpop.f32.mrb[0].mxu0
    %v2123 = vadd.f32 %v1745, %v2122
    %2124 = vdwg.mxu0
    %2125 = vmatprep.subr.bf16.mxu0 %v1591
    %2126 = vmatpush1.bf16.msra.mxu0 %v1590
    %2127 = vmatprep.subr.bf16.mxu0 %v1599
    %2128 = vmatpush1.bf16.msra.mxu0 %v1598
    %2129 = vmatprep.subr.bf16.mxu0 %v1607
    %2130 = vmatpush1.bf16.msra.mxu0 %v1606
    %2131 = vmatprep.subr.bf16.mxu0 %v1615
    %2132 = vmatpush1.bf16.msra.mxu0 %v1614
    %2133 = vmatprep.subr.bf16.mxu0 %v1623
    %2134 = vmatpush1.bf16.msra.mxu0 %v1622
    %2135 = vmatprep.subr.bf16.mxu0 %v1631
    %2136 = vmatpush1.bf16.msra.mxu0 %v1630
    %2137 = vmatprep.subr.bf16.mxu0 %v1639
    %2138 = vmatpush1.bf16.msra.mxu0 %v1638
    %2139 = vmatprep.subr.bf16.mxu0 %v1647
    %2140 = vmatpush1.bf16.msra.mxu0 %v1646
    %2141 = vmatprep.subr.bf16.mxu0 %v1655
    %2142 = vmatpush1.bf16.msra.mxu0 %v1654
    %2143 = vmatprep.subr.bf16.mxu0 %v1663
    %2144 = vmatpush1.bf16.msra.mxu0 %v1662
    %2145 = vmatprep.subr.bf16.mxu0 %v1671
    %2146 = vmatpush1.bf16.msra.mxu0 %v1670
    %2147 = vmatprep.subr.bf16.mxu0 %v1679
    %2148 = vmatpush1.bf16.msra.mxu0 %v1678
    %2149 = vmatprep.subr.bf16.mxu0 %v1687
    %2150 = vmatpush1.bf16.msra.mxu0 %v1686
    %2151 = vmatprep.subr.bf16.mxu0 %v1695
    %2152 = vmatpush1.bf16.msra.mxu0 %v1694
    %2153 = vmatprep.subr.bf16.mxu0 %v1703
    %2154 = vmatpush1.bf16.msra.mxu0 %v1702
    %2155 = vmatprep.subr.bf16.mxu0 %v1711
    %2156 = vmatpush1.bf16.msra.mxu0 %v1710
    %2157 = vmatprep.mubr.bf16.mxu0 %v1447
    %2158 = vmatmul.mubr.bf16.gmra.mrb[0].mxu0 %v1446
    %v2159 = vpop.f32.mrb[0].mxu0
    %v2160 = vadd.f32 %v2107, %v2159
    %v2161 = vpop.f32.mrb[0].mxu0
    %v2162 = vadd.f32 %v2109, %v2161
    %v2163 = vpop.f32.mrb[0].mxu0
    %v2164 = vadd.f32 %v2111, %v2163
    %v2165 = vpop.f32.mrb[0].mxu0
    %v2166 = vadd.f32 %v2113, %v2165
    %2167 = vmatprep.mubr.bf16.mxu0 %v1451
    %2168 = vmatmul.mubr.bf16.gmra.mrb[0].mxu0 %v1450
    %v2169 = vpop.f32.mrb[0].mxu0
    %v2170 = vadd.f32 %v2117, %v2169
    %v2171 = vpop.f32.mrb[0].mxu0
    %v2172 = vadd.f32 %v2119, %v2171
    %v2173 = vpop.f32.mrb[0].mxu0
    %v2174 = vadd.f32 %v2121, %v2173
    %v2175 = vpop.f32.mrb[0].mxu0
    %v2176 = vadd.f32 %v2123, %v2175
    %2177 = vdwg.mxu0
    %v2178 = vmul.f32 %v1842, 0.2
    %v2179 = vmul.f32 %v1844, 0.2
    %v2180 = vmul.f32 %v1948, 0.2
    %v2181 = vmul.f32 %v1950, 0.2
    %v2182 = vmul.f32 %v2054, 0.2
    %v2183 = vmul.f32 %v2056, 0.2
    %v2184 = vmul.f32 %v2160, 0.2
    %v2185 = vmul.f32 %v2162, 0.2
    %v2186 = vmul.f32 %v1846, 0.2
    %v2187 = vmul.f32 %v1848, 0.2
    %v2188 = vmul.f32 %v1952, 0.2
    %v2189 = vmul.f32 %v1954, 0.2
    %v2190 = vmul.f32 %v2058, 0.2
    %v2191 = vmul.f32 %v2060, 0.2
    %v2192 = vmul.f32 %v2164, 0.2
    %v2193 = vmul.f32 %v2166, 0.2
    %v2194 = vmul.f32 %v1852, 0.2
    %v2195 = vmul.f32 %v1854, 0.2
    %v2196 = vmul.f32 %v1958, 0.2
    %v2197 = vmul.f32 %v1960, 0.2
    %v2198 = vmul.f32 %v2064, 0.2
    %v2199 = vmul.f32 %v2066, 0.2
    %v2200 = vmul.f32 %v2170, 0.2
    %v2201 = vmul.f32 %v2172, 0.2
    %v2202 = vmul.f32 %v1856, 0.2
    %v2203 = vmul.f32 %v1858, 0.2
    %v2204 = vmul.f32 %v1962, 0.2
    %v2205 = vmul.f32 %v1964, 0.2
    %v2206 = vmul.f32 %v2068, 0.2
    %v2207 = vmul.f32 %v2070, 0.2
    %v2208 = vmul.f32 %v2174, 0.2
    %v2209 = vmul.f32 %v2176, 0.2
    %v2210 = vmax.f32 %v1842, %v2178
    %v2211 = vmax.f32 %v1844, %v2179
    %v2212 = vmax.f32 %v1948, %v2180
    %v2213 = vmax.f32 %v1950, %v2181
    %v2214 = vmax.f32 %v2054, %v2182
    %v2215 = vmax.f32 %v2056, %v2183
    %v2216 = vmax.f32 %v2160, %v2184
    %v2217 = vmax.f32 %v2162, %v2185
    %v2218 = vmax.f32 %v1846, %v2186
    %v2219 = vmax.f32 %v1848, %v2187
    %v2220 = vmax.f32 %v1952, %v2188
    %v2221 = vmax.f32 %v1954, %v2189
    %v2222 = vmax.f32 %v2058, %v2190
    %v2223 = vmax.f32 %v2060, %v2191
    %v2224 = vmax.f32 %v2164, %v2192
    %v2225 = vmax.f32 %v2166, %v2193
    %v2226 = vmax.f32 %v1852, %v2194
    %v2227 = vmax.f32 %v1854, %v2195
    %v2228 = vmax.f32 %v1958, %v2196
    %v2229 = vmax.f32 %v1960, %v2197
    %v2230 = vmax.f32 %v2064, %v2198
    %v2231 = vmax.f32 %v2066, %v2199
    %v2232 = vmax.f32 %v2170, %v2200
    %v2233 = vmax.f32 %v2172, %v2201
    %v2234 = vmax.f32 %v1856, %v2202
    %v2235 = vmax.f32 %v1858, %v2203
    %v2236 = vmax.f32 %v1962, %v2204
    %v2237 = vmax.f32 %v1964, %v2205
    %v2238 = vmax.f32 %v2068, %v2206
    %v2239 = vmax.f32 %v2070, %v2207
    %v2240 = vmax.f32 %v2174, %v2208
    %v2241 = vmax.f32 %v2176, %v2209
    %v2242 = vmul.f32 %v2210, %v287
    %v2243 = vmul.f32 %v2211, %v287
    %v2244 = vmul.f32 %v2212, %v287
    %v2245 = vmul.f32 %v2213, %v287
    %v2246 = vmul.f32 %v2214, %v287
    %v2247 = vmul.f32 %v2215, %v287
    %v2248 = vmul.f32 %v2216, %v287
    %v2249 = vmul.f32 %v2217, %v287
    %v2250 = vmul.f32 %v2218, %v288
    %v2251 = vmul.f32 %v2219, %v288
    %v2252 = vmul.f32 %v2220, %v288
    %v2253 = vmul.f32 %v2221, %v288
    %v2254 = vmul.f32 %v2222, %v288
    %v2255 = vmul.f32 %v2223, %v288
    %v2256 = vmul.f32 %v2224, %v288
    %v2257 = vmul.f32 %v2225, %v288
    %v2258 = vmul.f32 %v2226, %v289
    %v2259 = vmul.f32 %v2227, %v289
    %v2260 = vmul.f32 %v2228, %v289
    %v2261 = vmul.f32 %v2229, %v289
    %v2262 = vmul.f32 %v2230, %v289
    %v2263 = vmul.f32 %v2231, %v289
    %v2264 = vmul.f32 %v2232, %v289
    %v2265 = vmul.f32 %v2233, %v289
    %v2266 = vmul.f32 %v2234, %v290
    %v2267 = vmul.f32 %v2235, %v290
    %v2268 = vmul.f32 %v2236, %v290
    %v2269 = vmul.f32 %v2237, %v290
    %v2270 = vmul.f32 %v2238, %v290
    %v2271 = vmul.f32 %v2239, %v290
    %v2272 = vmul.f32 %v2240, %v290
    %v2273 = vmul.f32 %v2241, %v290
    %v2274 = vadd.f32 %v2242, %v2250
    %v2275 = vadd.f32 %v2274, %v2258
    %v2276 = vadd.f32 %v2275, %v2266
    %v2277 = vrot.slane %v2276, 4
    %v2278 = vadd.f32 %v2276, %v2277
    %v2279 = vrot.slane %v2278, 2
    %v2280 = vadd.f32 %v2278, %v2279
    %v2281 = vrot.slane %v2280, 1
    %v2282 = vadd.f32 %v2280, %v2281
    %v2283 = vadd.f32 %v2243, %v2251
    %v2284 = vadd.f32 %v2283, %v2259
    %v2285 = vadd.f32 %v2284, %v2267
    %v2286 = vrot.slane %v2285, 4
    %v2287 = vadd.f32 %v2285, %v2286
    %v2288 = vrot.slane %v2287, 2
    %v2289 = vadd.f32 %v2287, %v2288
    %v2290 = vrot.slane %v2289, 1
    %v2291 = vadd.f32 %v2289, %v2290
    %v2292 = vadd.f32 %v2244, %v2252
    %v2293 = vadd.f32 %v2292, %v2260
    %v2294 = vadd.f32 %v2293, %v2268
    %v2295 = vrot.slane %v2294, 4
    %v2296 = vadd.f32 %v2294, %v2295
    %v2297 = vrot.slane %v2296, 2
    %v2298 = vadd.f32 %v2296, %v2297
    %v2299 = vrot.slane %v2298, 1
    %v2300 = vadd.f32 %v2298, %v2299
    %v2301 = vadd.f32 %v2245, %v2253
    %v2302 = vadd.f32 %v2301, %v2261
    %v2303 = vadd.f32 %v2302, %v2269
    %v2304 = vrot.slane %v2303, 4
    %v2305 = vadd.f32 %v2303, %v2304
    %v2306 = vrot.slane %v2305, 2
    %v2307 = vadd.f32 %v2305, %v2306
    %v2308 = vrot.slane %v2307, 1
    %v2309 = vadd.f32 %v2307, %v2308
    %v2310 = vadd.f32 %v2246, %v2254
    %v2311 = vadd.f32 %v2310, %v2262
    %v2312 = vadd.f32 %v2311, %v2270
    %v2313 = vrot.slane %v2312, 4
    %v2314 = vadd.f32 %v2312, %v2313
    %v2315 = vrot.slane %v2314, 2
    %v2316 = vadd.f32 %v2314, %v2315
    %v2317 = vrot.slane %v2316, 1
    %v2318 = vadd.f32 %v2316, %v2317
    %v2319 = vadd.f32 %v2247, %v2255
    %v2320 = vadd.f32 %v2319, %v2263
    %v2321 = vadd.f32 %v2320, %v2271
    %v2322 = vrot.slane %v2321, 4
    %v2323 = vadd.f32 %v2321, %v2322
    %v2324 = vrot.slane %v2323, 2
    %v2325 = vadd.f32 %v2323, %v2324
    %v2326 = vrot.slane %v2325, 1
    %v2327 = vadd.f32 %v2325, %v2326
    %v2328 = vadd.f32 %v2248, %v2256
    %v2329 = vadd.f32 %v2328, %v2264
    %v2330 = vadd.f32 %v2329, %v2272
    %v2331 = vrot.slane %v2330, 4
    %v2332 = vadd.f32 %v2330, %v2331
    %v2333 = vrot.slane %v2332, 2
    %v2334 = vadd.f32 %v2332, %v2333
    %v2335 = vrot.slane %v2334, 1
    %v2336 = vadd.f32 %v2334, %v2335
    %v2337 = vadd.f32 %v2249, %v2257
    %v2338 = vadd.f32 %v2337, %v2265
    %v2339 = vadd.f32 %v2338, %v2273
    %v2340 = vrot.slane %v2339, 4
    %v2341 = vadd.f32 %v2339, %v2340
    %v2342 = vrot.slane %v2341, 2
    %v2343 = vadd.f32 %v2341, %v2342
    %v2344 = vrot.slane %v2343, 1
    %v2345 = vadd.f32 %v2343, %v2344
    %v2346 = vmul.f32 %v2242, %v2210
    %v2347 = vmul.f32 %v2243, %v2211
    %v2348 = vmul.f32 %v2244, %v2212
    %v2349 = vmul.f32 %v2245, %v2213
    %v2350 = vmul.f32 %v2246, %v2214
    %v2351 = vmul.f32 %v2247, %v2215
    %v2352 = vmul.f32 %v2248, %v2216
    %v2353 = vmul.f32 %v2249, %v2217
    %v2354 = vmul.f32 %v2250, %v2218
    %v2355 = vmul.f32 %v2251, %v2219
    %v2356 = vmul.f32 %v2252, %v2220
    %v2357 = vmul.f32 %v2253, %v2221
    %v2358 = vmul.f32 %v2254, %v2222
    %v2359 = vmul.f32 %v2255, %v2223
    %v2360 = vmul.f32 %v2256, %v2224
    %v2361 = vmul.f32 %v2257, %v2225
    %v2362 = vmul.f32 %v2258, %v2226
    %v2363 = vmul.f32 %v2259, %v2227
    %v2364 = vmul.f32 %v2260, %v2228
    %v2365 = vmul.f32 %v2261, %v2229
    %v2366 = vmul.f32 %v2262, %v2230
    %v2367 = vmul.f32 %v2263, %v2231
    %v2368 = vmul.f32 %v2264, %v2232
    %v2369 = vmul.f32 %v2265, %v2233
    %v2370 = vmul.f32 %v2266, %v2234
    %v2371 = vmul.f32 %v2267, %v2235
    %v2372 = vmul.f32 %v2268, %v2236
    %v2373 = vmul.f32 %v2269, %v2237
    %v2374 = vmul.f32 %v2270, %v2238
    %v2375 = vmul.f32 %v2271, %v2239
    %v2376 = vmul.f32 %v2272, %v2240
    %v2377 = vmul.f32 %v2273, %v2241
    %v2378 = vadd.f32 %v2346, %v2354
    %v2379 = vadd.f32 %v2378, %v2362
    %v2380 = vadd.f32 %v2379, %v2370
    %v2381 = vrot.slane %v2380, 4
    %v2382 = vadd.f32 %v2380, %v2381
    %v2383 = vrot.slane %v2382, 2
    %v2384 = vadd.f32 %v2382, %v2383
    %v2385 = vrot.slane %v2384, 1
    %v2386 = vadd.f32 %v2384, %v2385
    %v2387 = vadd.f32 %v2347, %v2355
    %v2388 = vadd.f32 %v2387, %v2363
    %v2389 = vadd.f32 %v2388, %v2371
    %v2390 = vrot.slane %v2389, 4
    %v2391 = vadd.f32 %v2389, %v2390
    %v2392 = vrot.slane %v2391, 2
    %v2393 = vadd.f32 %v2391, %v2392
    %v2394 = vrot.slane %v2393, 1
    %v2395 = vadd.f32 %v2393, %v2394
    %v2396 = vadd.f32 %v2348, %v2356
    %v2397 = vadd.f32 %v2396, %v2364
    %v2398 = vadd.f32 %v2397, %v2372
    %v2399 = vrot.slane %v2398, 4
    %v2400 = vadd.f32 %v2398, %v2399
    %v2401 = vrot.slane %v2400, 2
    %v2402 = vadd.f32 %v2400, %v2401
    %v2403 = vrot.slane %v2402, 1
    %v2404 = vadd.f32 %v2402, %v2403
    %v2405 = vadd.f32 %v2349, %v2357
    %v2406 = vadd.f32 %v2405, %v2365
    %v2407 = vadd.f32 %v2406, %v2373
    %v2408 = vrot.slane %v2407, 4
    %v2409 = vadd.f32 %v2407, %v2408
    %v2410 = vrot.slane %v2409, 2
    %v2411 = vadd.f32 %v2409, %v2410
    %v2412 = vrot.slane %v2411, 1
    %v2413 = vadd.f32 %v2411, %v2412
    %v2414 = vadd.f32 %v2350, %v2358
    %v2415 = vadd.f32 %v2414, %v2366
    %v2416 = vadd.f32 %v2415, %v2374
    %v2417 = vrot.slane %v2416, 4
    %v2418 = vadd.f32 %v2416, %v2417
    %v2419 = vrot.slane %v2418, 2
    %v2420 = vadd.f32 %v2418, %v2419
    %v2421 = vrot.slane %v2420, 1
    %v2422 = vadd.f32 %v2420, %v2421
    %v2423 = vadd.f32 %v2351, %v2359
    %v2424 = vadd.f32 %v2423, %v2367
    %v2425 = vadd.f32 %v2424, %v2375
    %v2426 = vrot.slane %v2425, 4
    %v2427 = vadd.f32 %v2425, %v2426
    %v2428 = vrot.slane %v2427, 2
    %v2429 = vadd.f32 %v2427, %v2428
    %v2430 = vrot.slane %v2429, 1
    %v2431 = vadd.f32 %v2429, %v2430
    %v2432 = vadd.f32 %v2352, %v2360
    %v2433 = vadd.f32 %v2432, %v2368
    %v2434 = vadd.f32 %v2433, %v2376
    %v2435 = vrot.slane %v2434, 4
    %v2436 = vadd.f32 %v2434, %v2435
    %v2437 = vrot.slane %v2436, 2
    %v2438 = vadd.f32 %v2436, %v2437
    %v2439 = vrot.slane %v2438, 1
    %v2440 = vadd.f32 %v2438, %v2439
    %v2441 = vadd.f32 %v2353, %v2361
    %v2442 = vadd.f32 %v2441, %v2369
    %v2443 = vadd.f32 %v2442, %v2377
    %v2444 = vrot.slane %v2443, 4
    %v2445 = vadd.f32 %v2443, %v2444
    %v2446 = vrot.slane %v2445, 2
    %v2447 = vadd.f32 %v2445, %v2446
    %v2448 = vrot.slane %v2447, 1
    %v2449 = vadd.f32 %v2447, %v2448
    %v2450 = vmul.f32 %v2282, 0.041666668
    %v2451 = vmul.f32 %v2291, 0.041666668
    %v2452 = vmul.f32 %v2300, 0.041666668
    %v2453 = vmul.f32 %v2309, 0.041666668
    %v2454 = vmul.f32 %v2318, 0.041666668
    %v2455 = vmul.f32 %v2327, 0.041666668
    %v2456 = vmul.f32 %v2336, 0.041666668
    %v2457 = vmul.f32 %v2345, 0.041666668
    %v2458 = vmul.f32 %v2386, 0.041666668
    %v2459 = vmul.f32 %v2395, 0.041666668
    %v2460 = vmul.f32 %v2404, 0.041666668
    %v2461 = vmul.f32 %v2413, 0.041666668
    %v2462 = vmul.f32 %v2422, 0.041666668
    %v2463 = vmul.f32 %v2431, 0.041666668
    %v2464 = vmul.f32 %v2440, 0.041666668
    %v2465 = vmul.f32 %v2449, 0.041666668
    %v2466 = vmul.f32 %v2450, %v2450
    %v2467 = vmul.f32 %v2451, %v2451
    %v2468 = vmul.f32 %v2452, %v2452
    %v2469 = vmul.f32 %v2453, %v2453
    %v2470 = vmul.f32 %v2454, %v2454
    %v2471 = vmul.f32 %v2455, %v2455
    %v2472 = vmul.f32 %v2456, %v2456
    %v2473 = vmul.f32 %v2457, %v2457
    %v2474 = vsub.f32 %v2458, %v2466
    %v2475 = vsub.f32 %v2459, %v2467
    %v2476 = vsub.f32 %v2460, %v2468
    %v2477 = vsub.f32 %v2461, %v2469
    %v2478 = vsub.f32 %v2462, %v2470
    %v2479 = vsub.f32 %v2463, %v2471
    %v2480 = vsub.f32 %v2464, %v2472
    %v2481 = vsub.f32 %v2465, %v2473
    %v2482 = vld [vmem:[#allocation22] sm:$0xff]
    %v2483 = vadd.f32 %v2474, 1e-05
    %v2484 = vadd.f32 %v2475, 1e-05
    %v2485 = vadd.f32 %v2476, 1e-05
    %v2486 = vadd.f32 %v2477, 1e-05
    %v2487 = vadd.f32 %v2478, 1e-05
    %v2488 = vadd.f32 %v2479, 1e-05
    %v2489 = vadd.f32 %v2480, 1e-05
    %v2490 = vadd.f32 %v2481, 1e-05
    %v2491 = vrsqrt.pop %v2483
    %v2492 = vrsqrt.pop %v2484
    %v2493 = vrsqrt.pop %v2485
    %v2494 = vrsqrt.pop %v2486
    %v2495 = vrsqrt.pop %v2487
    %v2496 = vrsqrt.pop %v2488
    %v2497 = vrsqrt.pop %v2489
    %v2498 = vrsqrt.pop %v2490
    %v2507 = vcombine.low %v2491, %v2492
    %v2508 = vcombine.low %v2493, %v2494
    %v2509 = vcombine.low %v2495, %v2496
    %v2510 = vcombine.low %v2497, %v2498
    %v2512 = vunpack.c.l.s4 1966171168
    %v2513 = vunpack.c.0.s8 %v2512
    %v2514 = vlaneseq
    %v2515 = vshrl.u32 %v2514, 7
    %v2516 = vsub.s32 %v2513, %v2515
    %v2517 = vrot.slane %v2507, %v2516
    %v2519 = vunpack.c.l.s4 1966171168
    %v2520 = vunpack.c.0.s8 %v2519
    %v2521 = vlaneseq
    %v2522 = vshrl.u32 %v2521, 7
    %v2523 = vsub.s32 %v2520, %v2522
    %v2524 = vrot.slane %v2508, %v2523
    %v2526 = vunpack.c.l.s4 1966171168
    %v2527 = vunpack.c.0.s8 %v2526
    %v2528 = vlaneseq
    %v2529 = vshrl.u32 %v2528, 7
    %v2530 = vsub.s32 %v2527, %v2529
    %v2531 = vrot.slane %v2509, %v2530
    %v2533 = vunpack.c.l.s4 1966171168
    %v2534 = vunpack.c.0.s8 %v2533
    %v2535 = vlaneseq
    %v2536 = vshrl.u32 %v2535, 7
    %v2537 = vsub.s32 %v2534, %v2536
    %v2538 = vrot.slane %v2510, %v2537
    %v2539 = vcombine.low %v2517, %v2524
    %v2540 = vcombine.low %v2531, %v2538
    %v2542 = vunpack.c.l.s4 1966171168
    %v2543 = vunpack.c.0.s8 %v2542
    %v2544 = vlaneseq
    %v2545 = vshrl.u32 %v2544, 7
    %v2546 = vsub.s32 %v2543, %v2545
    %v2547 = vrot.slane %v2539, %v2546
    %v2549 = vunpack.c.l.s4 1966171168
    %v2550 = vunpack.c.0.s8 %v2549
    %v2551 = vlaneseq
    %v2552 = vshrl.u32 %v2551, 7
    %v2553 = vsub.s32 %v2550, %v2552
    %v2554 = vrot.slane %v2540, %v2553
    %v2555 = vcombine.low %v2547, %v2554
    %v2557 = vmul.f32 %v2482, %v2555
    %v2558 = vld [vmem:[#allocation23] sm:$0xff]
    %v2560 = vlaneseq
    %v2561 = vshrl.u32 %v2560, 7
    %v2562 = vsub.s32 0, %v2561
    %v2563 = vrot.slane %v2557, %v2562
    %v2564 = vlaneseq
    %v2565 = vshrl.u32 %v2564, 7
    %v2566 = vsub.s32 1, %v2565
    %v2567 = vrot.slane %v2557, %v2566
    %v2568 = vlaneseq
    %v2569 = vshrl.u32 %v2568, 7
    %v2570 = vsub.s32 2, %v2569
    %v2571 = vrot.slane %v2557, %v2570
    %v2572 = vlaneseq
    %v2573 = vshrl.u32 %v2572, 7
    %v2574 = vsub.s32 3, %v2573
    %v2575 = vrot.slane %v2557, %v2574
    %v2576 = vlaneseq
    %v2577 = vshrl.u32 %v2576, 7
    %v2578 = vsub.s32 4, %v2577
    %v2579 = vrot.slane %v2557, %v2578
    %v2580 = vlaneseq
    %v2581 = vshrl.u32 %v2580, 7
    %v2582 = vsub.s32 5, %v2581
    %v2583 = vrot.slane %v2557, %v2582
    %v2584 = vlaneseq
    %v2585 = vshrl.u32 %v2584, 7
    %v2586 = vsub.s32 6, %v2585
    %v2587 = vrot.slane %v2557, %v2586
    %v2588 = vlaneseq
    %v2589 = vshrl.u32 %v2588, 7
    %v2590 = vsub.s32 7, %v2589
    %v2591 = vrot.slane %v2557, %v2590
    %v2600 = vmul.f32 %v2450, %v2563
    %v2601 = vmul.f32 %v2451, %v2567
    %v2602 = vmul.f32 %v2452, %v2571
    %v2603 = vmul.f32 %v2453, %v2575
    %v2604 = vmul.f32 %v2454, %v2579
    %v2605 = vmul.f32 %v2455, %v2583
    %v2606 = vmul.f32 %v2456, %v2587
    %v2607 = vmul.f32 %v2457, %v2591
    %v2616 = vcombine.low %v2600, %v2601
    %v2617 = vcombine.low %v2602, %v2603
    %v2618 = vcombine.low %v2604, %v2605
    %v2619 = vcombine.low %v2606, %v2607
    %v2621 = vunpack.c.l.s4 1966171168
    %v2622 = vunpack.c.0.s8 %v2621
    %v2623 = vlaneseq
    %v2624 = vshrl.u32 %v2623, 7
    %v2625 = vsub.s32 %v2622, %v2624
    %v2626 = vrot.slane %v2616, %v2625
    %v2628 = vunpack.c.l.s4 1966171168
    %v2629 = vunpack.c.0.s8 %v2628
    %v2630 = vlaneseq
    %v2631 = vshrl.u32 %v2630, 7
    %v2632 = vsub.s32 %v2629, %v2631
    %v2633 = vrot.slane %v2617, %v2632
    %v2635 = vunpack.c.l.s4 1966171168
    %v2636 = vunpack.c.0.s8 %v2635
    %v2637 = vlaneseq
    %v2638 = vshrl.u32 %v2637, 7
    %v2639 = vsub.s32 %v2636, %v2638
    %v2640 = vrot.slane %v2618, %v2639
    %v2642 = vunpack.c.l.s4 1966171168
    %v2643 = vunpack.c.0.s8 %v2642
    %v2644 = vlaneseq
    %v2645 = vshrl.u32 %v2644, 7
    %v2646 = vsub.s32 %v2643, %v2645
    %v2647 = vrot.slane %v2619, %v2646
    %v2648 = vcombine.low %v2626, %v2633
    %v2649 = vcombine.low %v2640, %v2647
    %v2651 = vunpack.c.l.s4 1966171168
    %v2652 = vunpack.c.0.s8 %v2651
    %v2653 = vlaneseq
    %v2654 = vshrl.u32 %v2653, 7
    %v2655 = vsub.s32 %v2652, %v2654
    %v2656 = vrot.slane %v2648, %v2655
    %v2658 = vunpack.c.l.s4 1966171168
    %v2659 = vunpack.c.0.s8 %v2658
    %v2660 = vlaneseq
    %v2661 = vshrl.u32 %v2660, 7
    %v2662 = vsub.s32 %v2659, %v2661
    %v2663 = vrot.slane %v2649, %v2662
    %v2664 = vcombine.low %v2656, %v2663
    %v2666 = vsub.f32 %v2558, %v2664
    %v2667 = vmul.f32 %v2210, %v2563
    %v2668 = vmul.f32 %v2211, %v2567
    %v2669 = vmul.f32 %v2212, %v2571
    %v2670 = vmul.f32 %v2213, %v2575
    %v2671 = vmul.f32 %v2214, %v2579
    %v2672 = vmul.f32 %v2215, %v2583
    %v2673 = vmul.f32 %v2216, %v2587
    %v2674 = vmul.f32 %v2217, %v2591
    %v2675 = vmul.f32 %v2218, %v2563
    %v2676 = vmul.f32 %v2219, %v2567
    %v2677 = vmul.f32 %v2220, %v2571
    %v2678 = vmul.f32 %v2221, %v2575
    %v2679 = vmul.f32 %v2222, %v2579
    %v2680 = vmul.f32 %v2223, %v2583
    %v2681 = vmul.f32 %v2224, %v2587
    %v2682 = vmul.f32 %v2225, %v2591
    %v2683 = vmul.f32 %v2226, %v2563
    %v2684 = vmul.f32 %v2227, %v2567
    %v2685 = vmul.f32 %v2228, %v2571
    %v2686 = vmul.f32 %v2229, %v2575
    %v2687 = vmul.f32 %v2230, %v2579
    %v2688 = vmul.f32 %v2231, %v2583
    %v2689 = vmul.f32 %v2232, %v2587
    %v2690 = vmul.f32 %v2233, %v2591
    %v2691 = vmul.f32 %v2234, %v2563
    %v2692 = vmul.f32 %v2235, %v2567
    %v2693 = vmul.f32 %v2236, %v2571
    %v2694 = vmul.f32 %v2237, %v2575
    %v2695 = vmul.f32 %v2238, %v2579
    %v2696 = vmul.f32 %v2239, %v2583
    %v2697 = vmul.f32 %v2240, %v2587
    %v2698 = vmul.f32 %v2241, %v2591
    %v2700 = vlaneseq
    %v2701 = vshrl.u32 %v2700, 7
    %v2702 = vsub.s32 0, %v2701
    %v2703 = vrot.slane %v2666, %v2702
    %v2704 = vlaneseq
    %v2705 = vshrl.u32 %v2704, 7
    %v2706 = vsub.s32 1, %v2705
    %v2707 = vrot.slane %v2666, %v2706
    %v2708 = vlaneseq
    %v2709 = vshrl.u32 %v2708, 7
    %v2710 = vsub.s32 2, %v2709
    %v2711 = vrot.slane %v2666, %v2710
    %v2712 = vlaneseq
    %v2713 = vshrl.u32 %v2712, 7
    %v2714 = vsub.s32 3, %v2713
    %v2715 = vrot.slane %v2666, %v2714
    %v2716 = vlaneseq
    %v2717 = vshrl.u32 %v2716, 7
    %v2718 = vsub.s32 4, %v2717
    %v2719 = vrot.slane %v2666, %v2718
    %v2720 = vlaneseq
    %v2721 = vshrl.u32 %v2720, 7
    %v2722 = vsub.s32 5, %v2721
    %v2723 = vrot.slane %v2666, %v2722
    %v2724 = vlaneseq
    %v2725 = vshrl.u32 %v2724, 7
    %v2726 = vsub.s32 6, %v2725
    %v2727 = vrot.slane %v2666, %v2726
    %v2728 = vlaneseq
    %v2729 = vshrl.u32 %v2728, 7
    %v2730 = vsub.s32 7, %v2729
    %v2731 = vrot.slane %v2666, %v2730
    %v2740 = vadd.f32 %v2667, %v2703
    %v2741 = vadd.f32 %v2668, %v2707
    %v2742 = vadd.f32 %v2669, %v2711
    %v2743 = vadd.f32 %v2670, %v2715
    %v2744 = vadd.f32 %v2671, %v2719
    %v2745 = vadd.f32 %v2672, %v2723
    %v2746 = vadd.f32 %v2673, %v2727
    %v2747 = vadd.f32 %v2674, %v2731
    %v2748 = vadd.f32 %v2675, %v2703
    %v2749 = vadd.f32 %v2676, %v2707
    %v2750 = vadd.f32 %v2677, %v2711
    %v2751 = vadd.f32 %v2678, %v2715
    %v2752 = vadd.f32 %v2679, %v2719
    %v2753 = vadd.f32 %v2680, %v2723
    %v2754 = vadd.f32 %v2681, %v2727
    %v2755 = vadd.f32 %v2682, %v2731
    %v2756 = vadd.f32 %v2683, %v2703
    %v2757 = vadd.f32 %v2684, %v2707
    %v2758 = vadd.f32 %v2685, %v2711
    %v2759 = vadd.f32 %v2686, %v2715
    %v2760 = vadd.f32 %v2687, %v2719
    %v2761 = vadd.f32 %v2688, %v2723
    %v2762 = vadd.f32 %v2689, %v2727
    %v2763 = vadd.f32 %v2690, %v2731
    %v2764 = vadd.f32 %v2691, %v2703
    %v2765 = vadd.f32 %v2692, %v2707
    %v2766 = vadd.f32 %v2693, %v2711
    %v2767 = vadd.f32 %v2694, %v2715
    %v2768 = vadd.f32 %v2695, %v2719
    %v2769 = vadd.f32 %v2696, %v2723
    %v2770 = vadd.f32 %v2697, %v2727
    %v2771 = vadd.f32 %v2698, %v2731
    %v2772 = vpack.c.bf16 %v2748, %v2740
    %v2773 = vpack.c.bf16 %v2749, %v2741
    %v2774 = vpack.c.bf16 %v2750, %v2742
    %v2775 = vpack.c.bf16 %v2751, %v2743
    %v2776 = vpack.c.bf16 %v2752, %v2744
    %v2777 = vpack.c.bf16 %v2753, %v2745
    %v2778 = vpack.c.bf16 %v2754, %v2746
    %v2779 = vpack.c.bf16 %v2755, %v2747
    %v2780 = vpack.c.bf16 %v2764, %v2756
    %v2781 = vpack.c.bf16 %v2765, %v2757
    %v2782 = vpack.c.bf16 %v2766, %v2758
    %v2783 = vpack.c.bf16 %v2767, %v2759
    %v2784 = vpack.c.bf16 %v2768, %v2760
    %v2785 = vpack.c.bf16 %v2769, %v2761
    %v2786 = vpack.c.bf16 %v2770, %v2762
    %v2787 = vpack.c.bf16 %v2771, %v2763
    %s2788 = smul.u32 4, 128
    %s2789 = smul.u32 %s2788, 7
    %s2790 = sshll.u32 %s2789, 4
    %2791 = dma.done %s239, %s2790
    %v2792 = vld [vmem:[#allocation3] sm:$0xff]
    %v2793 = vld [vmem:[#allocation3 + $0x8] sm:$0xff]
    %v2794 = vld [vmem:[#allocation3 + $0x10] sm:$0xff]
    %v2795 = vld [vmem:[#allocation3 + $0x18] sm:$0xff]
    %v2796 = vld [vmem:[#allocation3 + $0x20] sm:$0xff]
    %v2797 = vld [vmem:[#allocation3 + $0x28] sm:$0xff]
    %v2798 = vld [vmem:[#allocation3 + $0x30] sm:$0xff]
    %v2799 = vld [vmem:[#allocation3 + $0x38] sm:$0xff]
    %v2800 = vld [vmem:[#allocation3 + $0x40] sm:$0xff]
    %v2801 = vld [vmem:[#allocation3 + $0x48] sm:$0xff]
    %v2802 = vld [vmem:[#allocation3 + $0x50] sm:$0xff]
    %v2803 = vld [vmem:[#allocation3 + $0x58] sm:$0xff]
    %v2804 = vld [vmem:[#allocation3 + $0x60] sm:$0xff]
    %v2805 = vld [vmem:[#allocation3 + $0x68] sm:$0xff]
    %v2806 = vld [vmem:[#allocation3 + $0x70] sm:$0xff]
    %v2807 = vld [vmem:[#allocation3 + $0x78] sm:$0xff]
    %v2808 = vld [vmem:[#allocation3 + $0x80] sm:$0xff]
    %v2809 = vld [vmem:[#allocation3 + $0x88] sm:$0xff]
    %v2810 = vld [vmem:[#allocation3 + $0x90] sm:$0xff]
    %v2811 = vld [vmem:[#allocation3 + $0x98] sm:$0xff]
    %v2812 = vld [vmem:[#allocation3 + $0xa0] sm:$0xff]
    %v2813 = vld [vmem:[#allocation3 + $0xa8] sm:$0xff]
    %v2814 = vld [vmem:[#allocation3 + $0xb0] sm:$0xff]
    %v2815 = vld [vmem:[#allocation3 + $0xb8] sm:$0xff]
    %v2816 = vld [vmem:[#allocation3 + $0xc0] sm:$0xff]
    %v2817 = vld [vmem:[#allocation3 + $0xc8] sm:$0xff]
    %v2818 = vld [vmem:[#allocation3 + $0xd0] sm:$0xff]
    %v2819 = vld [vmem:[#allocation3 + $0xd8] sm:$0xff]
    %v2820 = vld [vmem:[#allocation3 + $0xe0] sm:$0xff]
    %v2821 = vld [vmem:[#allocation3 + $0xe8] sm:$0xff]
    %v2822 = vld [vmem:[#allocation3 + $0xf0] sm:$0xff]
    %v2823 = vld [vmem:[#allocation3 + $0xf8] sm:$0xff]
    %v2824 = vld [vmem:[#allocation3 + $0x100] sm:$0xff]
    %v2825 = vld [vmem:[#allocation3 + $0x108] sm:$0xff]
    %v2826 = vld [vmem:[#allocation3 + $0x110] sm:$0xff]
    %v2827 = vld [vmem:[#allocation3 + $0x118] sm:$0xff]
    %v2828 = vld [vmem:[#allocation3 + $0x120] sm:$0xff]
    %v2829 = vld [vmem:[#allocation3 + $0x128] sm:$0xff]
    %v2830 = vld [vmem:[#allocation3 + $0x130] sm:$0xff]
    %v2831 = vld [vmem:[#allocation3 + $0x138] sm:$0xff]
    %v2832 = vld [vmem:[#allocation3 + $0x140] sm:$0xff]
    %v2833 = vld [vmem:[#allocation3 + $0x148] sm:$0xff]
    %v2834 = vld [vmem:[#allocation3 + $0x150] sm:$0xff]
    %v2835 = vld [vmem:[#allocation3 + $0x158] sm:$0xff]
    %v2836 = vld [vmem:[#allocation3 + $0x160] sm:$0xff]
    %v2837 = vld [vmem:[#allocation3 + $0x168] sm:$0xff]
    %v2838 = vld [vmem:[#allocation3 + $0x170] sm:$0xff]
    %v2839 = vld [vmem:[#allocation3 + $0x178] sm:$0xff]
    %v2840 = vld [vmem:[#allocation3 + $0x180] sm:$0xff]
    %v2841 = vld [vmem:[#allocation3 + $0x188] sm:$0xff]
    %v2842 = vld [vmem:[#allocation3 + $0x190] sm:$0xff]
    %v2843 = vld [vmem:[#allocation3 + $0x198] sm:$0xff]
    %v2844 = vld [vmem:[#allocation3 + $0x1a0] sm:$0xff]
    %v2845 = vld [vmem:[#allocation3 + $0x1a8] sm:$0xff]
    %v2846 = vld [vmem:[#allocation3 + $0x1b0] sm:$0xff]
    %v2847 = vld [vmem:[#allocation3 + $0x1b8] sm:$0xff]
    %v2848 = vld [vmem:[#allocation3 + $0x1c0] sm:$0xff]
    %v2849 = vld [vmem:[#allocation3 + $0x1c8] sm:$0xff]
    %v2850 = vld [vmem:[#allocation3 + $0x1d0] sm:$0xff]
    %v2851 = vld [vmem:[#allocation3 + $0x1d8] sm:$0xff]
    %v2852 = vld [vmem:[#allocation3 + $0x1e0] sm:$0xff]
    %v2853 = vld [vmem:[#allocation3 + $0x1e8] sm:$0xff]
    %v2854 = vld [vmem:[#allocation3 + $0x1f0] sm:$0xff]
    %v2855 = vld [vmem:[#allocation3 + $0x1f8] sm:$0xff]
    %v2856 = vld [vmem:[#allocation3 + $0x200] sm:$0xff]
    %v2857 = vld [vmem:[#allocation3 + $0x208] sm:$0xff]
    %v2858 = vld [vmem:[#allocation3 + $0x210] sm:$0xff]
    %v2859 = vld [vmem:[#allocation3 + $0x218] sm:$0xff]
    %v2860 = vld [vmem:[#allocation3 + $0x220] sm:$0xff]
    %v2861 = vld [vmem:[#allocation3 + $0x228] sm:$0xff]
    %v2862 = vld [vmem:[#allocation3 + $0x230] sm:$0xff]
    %v2863 = vld [vmem:[#allocation3 + $0x238] sm:$0xff]
    %v2864 = vld [vmem:[#allocation3 + $0x240] sm:$0xff]
    %v2865 = vld [vmem:[#allocation3 + $0x248] sm:$0xff]
    %v2866 = vld [vmem:[#allocation3 + $0x250] sm:$0xff]
    %v2867 = vld [vmem:[#allocation3 + $0x258] sm:$0xff]
    %v2868 = vld [vmem:[#allocation3 + $0x260] sm:$0xff]
    %v2869 = vld [vmem:[#allocation3 + $0x268] sm:$0xff]
    %v2870 = vld [vmem:[#allocation3 + $0x270] sm:$0xff]
    %v2871 = vld [vmem:[#allocation3 + $0x278] sm:$0xff]
    %v2872 = vld [vmem:[#allocation3 + $0x280] sm:$0xff]
    %v2873 = vld [vmem:[#allocation3 + $0x288] sm:$0xff]
    %v2874 = vld [vmem:[#allocation3 + $0x290] sm:$0xff]
    %v2875 = vld [vmem:[#allocation3 + $0x298] sm:$0xff]
    %v2876 = vld [vmem:[#allocation3 + $0x2a0] sm:$0xff]
    %v2877 = vld [vmem:[#allocation3 + $0x2a8] sm:$0xff]
    %v2878 = vld [vmem:[#allocation3 + $0x2b0] sm:$0xff]
    %v2879 = vld [vmem:[#allocation3 + $0x2b8] sm:$0xff]
    %v2880 = vld [vmem:[#allocation3 + $0x2c0] sm:$0xff]
    %v2881 = vld [vmem:[#allocation3 + $0x2c8] sm:$0xff]
    %v2882 = vld [vmem:[#allocation3 + $0x2d0] sm:$0xff]
    %v2883 = vld [vmem:[#allocation3 + $0x2d8] sm:$0xff]
    %v2884 = vld [vmem:[#allocation3 + $0x2e0] sm:$0xff]
    %v2885 = vld [vmem:[#allocation3 + $0x2e8] sm:$0xff]
    %v2886 = vld [vmem:[#allocation3 + $0x2f0] sm:$0xff]
    %v2887 = vld [vmem:[#allocation3 + $0x2f8] sm:$0xff]
    %v2888 = vld [vmem:[#allocation3 + $0x300] sm:$0xff]
    %v2889 = vld [vmem:[#allocation3 + $0x308] sm:$0xff]
    %v2890 = vld [vmem:[#allocation3 + $0x310] sm:$0xff]
    %v2891 = vld [vmem:[#allocation3 + $0x318] sm:$0xff]
    %v2892 = vld [vmem:[#allocation3 + $0x320] sm:$0xff]
    %v2893 = vld [vmem:[#allocation3 + $0x328] sm:$0xff]
    %v2894 = vld [vmem:[#allocation3 + $0x330] sm:$0xff]
    %v2895 = vld [vmem:[#allocation3 + $0x338] sm:$0xff]
    %v2896 = vld [vmem:[#allocation3 + $0x340] sm:$0xff]
    %v2897 = vld [vmem:[#allocation3 + $0x348] sm:$0xff]
    %v2898 = vld [vmem:[#allocation3 + $0x350] sm:$0xff]
    %v2899 = vld [vmem:[#allocation3 + $0x358] sm:$0xff]
    %v2900 = vld [vmem:[#allocation3 + $0x360] sm:$0xff]
    %v2901 = vld [vmem:[#allocation3 + $0x368] sm:$0xff]
    %v2902 = vld [vmem:[#allocation3 + $0x370] sm:$0xff]
    %v2903 = vld [vmem:[#allocation3 + $0x378] sm:$0xff]
    %v2904 = vld [vmem:[#allocation3 + $0x380] sm:$0xff]
    %v2905 = vld [vmem:[#allocation3 + $0x388] sm:$0xff]
    %v2906 = vld [vmem:[#allocation3 + $0x390] sm:$0xff]
    %v2907 = vld [vmem:[#allocation3 + $0x398] sm:$0xff]
    %v2908 = vld [vmem:[#allocation3 + $0x3a0] sm:$0xff]
    %v2909 = vld [vmem:[#allocation3 + $0x3a8] sm:$0xff]
    %v2910 = vld [vmem:[#allocation3 + $0x3b0] sm:$0xff]
    %v2911 = vld [vmem:[#allocation3 + $0x3b8] sm:$0xff]
    %v2912 = vld [vmem:[#allocation3 + $0x3c0] sm:$0xff]
    %v2913 = vld [vmem:[#allocation3 + $0x3c8] sm:$0xff]
    %v2914 = vld [vmem:[#allocation3 + $0x3d0] sm:$0xff]
    %v2915 = vld [vmem:[#allocation3 + $0x3d8] sm:$0xff]
    %v2916 = vld [vmem:[#allocation3 + $0x3e0] sm:$0xff]
    %v2917 = vld [vmem:[#allocation3 + $0x3e8] sm:$0xff]
    %v2918 = vld [vmem:[#allocation3 + $0x3f0] sm:$0xff]
    %v2919 = vld [vmem:[#allocation3 + $0x3f8] sm:$0xff]
    %v2920 = vld [vmem:[#allocation3 + $0x400] sm:$0xff]
    %v2921 = vld [vmem:[#allocation3 + $0x408] sm:$0xff]
    %v2922 = vld [vmem:[#allocation3 + $0x410] sm:$0xff]
    %v2923 = vld [vmem:[#allocation3 + $0x418] sm:$0xff]
    %v2924 = vld [vmem:[#allocation3 + $0x420] sm:$0xff]
    %v2925 = vld [vmem:[#allocation3 + $0x428] sm:$0xff]
    %v2926 = vld [vmem:[#allocation3 + $0x430] sm:$0xff]
    %v2927 = vld [vmem:[#allocation3 + $0x438] sm:$0xff]
    %v2928 = vld [vmem:[#allocation3 + $0x440] sm:$0xff]
    %v2929 = vld [vmem:[#allocation3 + $0x448] sm:$0xff]
    %v2930 = vld [vmem:[#allocation3 + $0x450] sm:$0xff]
    %v2931 = vld [vmem:[#allocation3 + $0x458] sm:$0xff]
    %v2932 = vld [vmem:[#allocation3 + $0x460] sm:$0xff]
    %v2933 = vld [vmem:[#allocation3 + $0x468] sm:$0xff]
    %v2934 = vld [vmem:[#allocation3 + $0x470] sm:$0xff]
    %v2935 = vld [vmem:[#allocation3 + $0x478] sm:$0xff]
    %v2936 = vld [vmem:[#allocation3 + $0x480] sm:$0xff]
    %v2937 = vld [vmem:[#allocation3 + $0x488] sm:$0xff]
    %v2938 = vld [vmem:[#allocation3 + $0x490] sm:$0xff]
    %v2939 = vld [vmem:[#allocation3 + $0x498] sm:$0xff]
    %v2940 = vld [vmem:[#allocation3 + $0x4a0] sm:$0xff]
    %v2941 = vld [vmem:[#allocation3 + $0x4a8] sm:$0xff]
    %v2942 = vld [vmem:[#allocation3 + $0x4b0] sm:$0xff]
    %v2943 = vld [vmem:[#allocation3 + $0x4b8] sm:$0xff]
    %v2944 = vld [vmem:[#allocation3 + $0x4c0] sm:$0xff]
    %v2945 = vld [vmem:[#allocation3 + $0x4c8] sm:$0xff]
    %v2946 = vld [vmem:[#allocation3 + $0x4d0] sm:$0xff]
    %v2947 = vld [vmem:[#allocation3 + $0x4d8] sm:$0xff]
    %v2948 = vld [vmem:[#allocation3 + $0x4e0] sm:$0xff]
    %v2949 = vld [vmem:[#allocation3 + $0x4e8] sm:$0xff]
    %v2950 = vld [vmem:[#allocation3 + $0x4f0] sm:$0xff]
    %v2951 = vld [vmem:[#allocation3 + $0x4f8] sm:$0xff]
    %v2952 = vld [vmem:[#allocation3 + $0x500] sm:$0xff]
    %v2953 = vld [vmem:[#allocation3 + $0x508] sm:$0xff]
    %v2954 = vld [vmem:[#allocation3 + $0x510] sm:$0xff]
    %v2955 = vld [vmem:[#allocation3 + $0x518] sm:$0xff]
    %v2956 = vld [vmem:[#allocation3 + $0x520] sm:$0xff]
    %v2957 = vld [vmem:[#allocation3 + $0x528] sm:$0xff]
    %v2958 = vld [vmem:[#allocation3 + $0x530] sm:$0xff]
    %v2959 = vld [vmem:[#allocation3 + $0x538] sm:$0xff]
    %v2960 = vld [vmem:[#allocation3 + $0x540] sm:$0xff]
    %v2961 = vld [vmem:[#allocation3 + $0x548] sm:$0xff]
    %v2962 = vld [vmem:[#allocation3 + $0x550] sm:$0xff]
    %v2963 = vld [vmem:[#allocation3 + $0x558] sm:$0xff]
    %v2964 = vld [vmem:[#allocation3 + $0x560] sm:$0xff]
    %v2965 = vld [vmem:[#allocation3 + $0x568] sm:$0xff]
    %v2966 = vld [vmem:[#allocation3 + $0x570] sm:$0xff]
    %v2967 = vld [vmem:[#allocation3 + $0x578] sm:$0xff]
    %v2968 = vld [vmem:[#allocation3 + $0x580] sm:$0xff]
    %v2969 = vld [vmem:[#allocation3 + $0x588] sm:$0xff]
    %v2970 = vld [vmem:[#allocation3 + $0x590] sm:$0xff]
    %v2971 = vld [vmem:[#allocation3 + $0x598] sm:$0xff]
    %v2972 = vld [vmem:[#allocation3 + $0x5a0] sm:$0xff]
    %v2973 = vld [vmem:[#allocation3 + $0x5a8] sm:$0xff]
    %v2974 = vld [vmem:[#allocation3 + $0x5b0] sm:$0xff]
    %v2975 = vld [vmem:[#allocation3 + $0x5b8] sm:$0xff]
    %v2976 = vld [vmem:[#allocation3 + $0x5c0] sm:$0xff]
    %v2977 = vld [vmem:[#allocation3 + $0x5c8] sm:$0xff]
    %v2978 = vld [vmem:[#allocation3 + $0x5d0] sm:$0xff]
    %v2979 = vld [vmem:[#allocation3 + $0x5d8] sm:$0xff]
    %v2980 = vld [vmem:[#allocation3 + $0x5e0] sm:$0xff]
    %v2981 = vld [vmem:[#allocation3 + $0x5e8] sm:$0xff]
    %v2982 = vld [vmem:[#allocation3 + $0x5f0] sm:$0xff]
    %v2983 = vld [vmem:[#allocation3 + $0x5f8] sm:$0xff]
    %v2984 = vld [vmem:[#allocation3 + $0x600] sm:$0xff]
    %v2985 = vld [vmem:[#allocation3 + $0x608] sm:$0xff]
    %v2986 = vld [vmem:[#allocation3 + $0x610] sm:$0xff]
    %v2987 = vld [vmem:[#allocation3 + $0x618] sm:$0xff]
    %v2988 = vld [vmem:[#allocation3 + $0x620] sm:$0xff]
    %v2989 = vld [vmem:[#allocation3 + $0x628] sm:$0xff]
    %v2990 = vld [vmem:[#allocation3 + $0x630] sm:$0xff]
    %v2991 = vld [vmem:[#allocation3 + $0x638] sm:$0xff]
    %v2992 = vld [vmem:[#allocation3 + $0x640] sm:$0xff]
    %v2993 = vld [vmem:[#allocation3 + $0x648] sm:$0xff]
    %v2994 = vld [vmem:[#allocation3 + $0x650] sm:$0xff]
    %v2995 = vld [vmem:[#allocation3 + $0x658] sm:$0xff]
    %v2996 = vld [vmem:[#allocation3 + $0x660] sm:$0xff]
    %v2997 = vld [vmem:[#allocation3 + $0x668] sm:$0xff]
    %v2998 = vld [vmem:[#allocation3 + $0x670] sm:$0xff]
    %v2999 = vld [vmem:[#allocation3 + $0x678] sm:$0xff]
    %v3000 = vld [vmem:[#allocation3 + $0x680] sm:$0xff]
    %v3001 = vld [vmem:[#allocation3 + $0x688] sm:$0xff]
    %v3002 = vld [vmem:[#allocation3 + $0x690] sm:$0xff]
    %v3003 = vld [vmem:[#allocation3 + $0x698] sm:$0xff]
    %v3004 = vld [vmem:[#allocation3 + $0x6a0] sm:$0xff]
    %v3005 = vld [vmem:[#allocation3 + $0x6a8] sm:$0xff]
    %v3006 = vld [vmem:[#allocation3 + $0x6b0] sm:$0xff]
    %v3007 = vld [vmem:[#allocation3 + $0x6b8] sm:$0xff]
    %v3008 = vld [vmem:[#allocation3 + $0x6c0] sm:$0xff]
    %v3009 = vld [vmem:[#allocation3 + $0x6c8] sm:$0xff]
    %v3010 = vld [vmem:[#allocation3 + $0x6d0] sm:$0xff]
    %v3011 = vld [vmem:[#allocation3 + $0x6d8] sm:$0xff]
    %v3012 = vld [vmem:[#allocation3 + $0x6e0] sm:$0xff]
    %v3013 = vld [vmem:[#allocation3 + $0x6e8] sm:$0xff]
    %v3014 = vld [vmem:[#allocation3 + $0x6f0] sm:$0xff]
    %v3015 = vld [vmem:[#allocation3 + $0x6f8] sm:$0xff]
    %v3016 = vld [vmem:[#allocation3 + $0x700] sm:$0xff]
    %v3017 = vld [vmem:[#allocation3 + $0x708] sm:$0xff]
    %v3018 = vld [vmem:[#allocation3 + $0x710] sm:$0xff]
    %v3019 = vld [vmem:[#allocation3 + $0x718] sm:$0xff]
    %v3020 = vld [vmem:[#allocation3 + $0x720] sm:$0xff]
    %v3021 = vld [vmem:[#allocation3 + $0x728] sm:$0xff]
    %v3022 = vld [vmem:[#allocation3 + $0x730] sm:$0xff]
    %v3023 = vld [vmem:[#allocation3 + $0x738] sm:$0xff]
    %v3024 = vld [vmem:[#allocation3 + $0x740] sm:$0xff]
    %v3025 = vld [vmem:[#allocation3 + $0x748] sm:$0xff]
    %v3026 = vld [vmem:[#allocation3 + $0x750] sm:$0xff]
    %v3027 = vld [vmem:[#allocation3 + $0x758] sm:$0xff]
    %v3028 = vld [vmem:[#allocation3 + $0x760] sm:$0xff]
    %v3029 = vld [vmem:[#allocation3 + $0x768] sm:$0xff]
    %v3030 = vld [vmem:[#allocation3 + $0x770] sm:$0xff]
    %v3031 = vld [vmem:[#allocation3 + $0x778] sm:$0xff]
    %v3032 = vld [vmem:[#allocation3 + $0x780] sm:$0xff]
    %v3033 = vld [vmem:[#allocation3 + $0x788] sm:$0xff]
    %v3034 = vld [vmem:[#allocation3 + $0x790] sm:$0xff]
    %v3035 = vld [vmem:[#allocation3 + $0x798] sm:$0xff]
    %v3036 = vld [vmem:[#allocation3 + $0x7a0] sm:$0xff]
    %v3037 = vld [vmem:[#allocation3 + $0x7a8] sm:$0xff]
    %v3038 = vld [vmem:[#allocation3 + $0x7b0] sm:$0xff]
    %v3039 = vld [vmem:[#allocation3 + $0x7b8] sm:$0xff]
    %v3040 = vld [vmem:[#allocation3 + $0x7c0] sm:$0xff]
    %v3041 = vld [vmem:[#allocation3 + $0x7c8] sm:$0xff]
    %v3042 = vld [vmem:[#allocation3 + $0x7d0] sm:$0xff]
    %v3043 = vld [vmem:[#allocation3 + $0x7d8] sm:$0xff]
    %v3044 = vld [vmem:[#allocation3 + $0x7e0] sm:$0xff]
    %v3045 = vld [vmem:[#allocation3 + $0x7e8] sm:$0xff]
    %v3046 = vld [vmem:[#allocation3 + $0x7f0] sm:$0xff]
    %v3047 = vld [vmem:[#allocation3 + $0x7f8] sm:$0xff]
    %v3048 = vld [vmem:[#allocation3 + $0x800] sm:$0xff]
    %v3049 = vld [vmem:[#allocation3 + $0x808] sm:$0xff]
    %v3050 = vld [vmem:[#allocation3 + $0x810] sm:$0xff]
    %v3051 = vld [vmem:[#allocation3 + $0x818] sm:$0xff]
    %v3052 = vld [vmem:[#allocation3 + $0x820] sm:$0xff]
    %v3053 = vld [vmem:[#allocation3 + $0x828] sm:$0xff]
    %v3054 = vld [vmem:[#allocation3 + $0x830] sm:$0xff]
    %v3055 = vld [vmem:[#allocation3 + $0x838] sm:$0xff]
    %v3056 = vld [vmem:[#allocation3 + $0x840] sm:$0xff]
    %v3057 = vld [vmem:[#allocation3 + $0x848] sm:$0xff]
    %v3058 = vld [vmem:[#allocation3 + $0x850] sm:$0xff]
    %v3059 = vld [vmem:[#allocation3 + $0x858] sm:$0xff]
    %v3060 = vld [vmem:[#allocation3 + $0x860] sm:$0xff]
    %v3061 = vld [vmem:[#allocation3 + $0x868] sm:$0xff]
    %v3062 = vld [vmem:[#allocation3 + $0x870] sm:$0xff]
    %v3063 = vld [vmem:[#allocation3 + $0x878] sm:$0xff]
    %v3064 = vld [vmem:[#allocation3 + $0x880] sm:$0xff]
    %v3065 = vld [vmem:[#allocation3 + $0x888] sm:$0xff]
    %v3066 = vld [vmem:[#allocation3 + $0x890] sm:$0xff]
    %v3067 = vld [vmem:[#allocation3 + $0x898] sm:$0xff]
    %v3068 = vld [vmem:[#allocation3 + $0x8a0] sm:$0xff]
    %v3069 = vld [vmem:[#allocation3 + $0x8a8] sm:$0xff]
    %v3070 = vld [vmem:[#allocation3 + $0x8b0] sm:$0xff]
    %v3071 = vld [vmem:[#allocation3 + $0x8b8] sm:$0xff]
    %v3072 = vld [vmem:[#allocation3 + $0x8c0] sm:$0xff]
    %v3073 = vld [vmem:[#allocation3 + $0x8c8] sm:$0xff]
    %v3074 = vld [vmem:[#allocation3 + $0x8d0] sm:$0xff]
    %v3075 = vld [vmem:[#allocation3 + $0x8d8] sm:$0xff]
    %v3076 = vld [vmem:[#allocation3 + $0x8e0] sm:$0xff]
    %v3077 = vld [vmem:[#allocation3 + $0x8e8] sm:$0xff]
    %v3078 = vld [vmem:[#allocation3 + $0x8f0] sm:$0xff]
    %v3079 = vld [vmem:[#allocation3 + $0x8f8] sm:$0xff]
    %v3080 = vld [vmem:[#allocation3 + $0x900] sm:$0xff]
    %v3081 = vld [vmem:[#allocation3 + $0x908] sm:$0xff]
    %v3082 = vld [vmem:[#allocation3 + $0x910] sm:$0xff]
    %v3083 = vld [vmem:[#allocation3 + $0x918] sm:$0xff]
    %v3084 = vld [vmem:[#allocation3 + $0x920] sm:$0xff]
    %v3085 = vld [vmem:[#allocation3 + $0x928] sm:$0xff]
    %v3086 = vld [vmem:[#allocation3 + $0x930] sm:$0xff]
    %v3087 = vld [vmem:[#allocation3 + $0x938] sm:$0xff]
    %v3088 = vld [vmem:[#allocation3 + $0x940] sm:$0xff]
    %v3089 = vld [vmem:[#allocation3 + $0x948] sm:$0xff]
    %v3090 = vld [vmem:[#allocation3 + $0x950] sm:$0xff]
    %v3091 = vld [vmem:[#allocation3 + $0x958] sm:$0xff]
    %v3092 = vld [vmem:[#allocation3 + $0x960] sm:$0xff]
    %v3093 = vld [vmem:[#allocation3 + $0x968] sm:$0xff]
    %v3094 = vld [vmem:[#allocation3 + $0x970] sm:$0xff]
    %v3095 = vld [vmem:[#allocation3 + $0x978] sm:$0xff]
    %v3096 = vld [vmem:[#allocation3 + $0x980] sm:$0xff]
    %v3097 = vld [vmem:[#allocation3 + $0x988] sm:$0xff]
    %v3098 = vld [vmem:[#allocation3 + $0x990] sm:$0xff]
    %v3099 = vld [vmem:[#allocation3 + $0x998] sm:$0xff]
    %v3100 = vld [vmem:[#allocation3 + $0x9a0] sm:$0xff]
    %v3101 = vld [vmem:[#allocation3 + $0x9a8] sm:$0xff]
    %v3102 = vld [vmem:[#allocation3 + $0x9b0] sm:$0xff]
    %v3103 = vld [vmem:[#allocation3 + $0x9b8] sm:$0xff]
    %v3104 = vld [vmem:[#allocation3 + $0x9c0] sm:$0xff]
    %v3105 = vld [vmem:[#allocation3 + $0x9c8] sm:$0xff]
    %v3106 = vld [vmem:[#allocation3 + $0x9d0] sm:$0xff]
    %v3107 = vld [vmem:[#allocation3 + $0x9d8] sm:$0xff]
    %v3108 = vld [vmem:[#allocation3 + $0x9e0] sm:$0xff]
    %v3109 = vld [vmem:[#allocation3 + $0x9e8] sm:$0xff]
    %v3110 = vld [vmem:[#allocation3 + $0x9f0] sm:$0xff]
    %v3111 = vld [vmem:[#allocation3 + $0x9f8] sm:$0xff]
    %v3112 = vld [vmem:[#allocation3 + $0xa00] sm:$0xff]
    %v3113 = vld [vmem:[#allocation3 + $0xa08] sm:$0xff]
    %v3114 = vld [vmem:[#allocation3 + $0xa10] sm:$0xff]
    %v3115 = vld [vmem:[#allocation3 + $0xa18] sm:$0xff]
    %v3116 = vld [vmem:[#allocation3 + $0xa20] sm:$0xff]
    %v3117 = vld [vmem:[#allocation3 + $0xa28] sm:$0xff]
    %v3118 = vld [vmem:[#allocation3 + $0xa30] sm:$0xff]
    %v3119 = vld [vmem:[#allocation3 + $0xa38] sm:$0xff]
    %v3120 = vld [vmem:[#allocation3 + $0xa40] sm:$0xff]
    %v3121 = vld [vmem:[#allocation3 + $0xa48] sm:$0xff]
    %v3122 = vld [vmem:[#allocation3 + $0xa50] sm:$0xff]
    %v3123 = vld [vmem:[#allocation3 + $0xa58] sm:$0xff]
    %v3124 = vld [vmem:[#allocation3 + $0xa60] sm:$0xff]
    %v3125 = vld [vmem:[#allocation3 + $0xa68] sm:$0xff]
    %v3126 = vld [vmem:[#allocation3 + $0xa70] sm:$0xff]
    %v3127 = vld [vmem:[#allocation3 + $0xa78] sm:$0xff]
    %v3128 = vld [vmem:[#allocation3 + $0xa80] sm:$0xff]
    %v3129 = vld [vmem:[#allocation3 + $0xa88] sm:$0xff]
    %v3130 = vld [vmem:[#allocation3 + $0xa90] sm:$0xff]
    %v3131 = vld [vmem:[#allocation3 + $0xa98] sm:$0xff]
    %v3132 = vld [vmem:[#allocation3 + $0xaa0] sm:$0xff]
    %v3133 = vld [vmem:[#allocation3 + $0xaa8] sm:$0xff]
    %v3134 = vld [vmem:[#allocation3 + $0xab0] sm:$0xff]
    %v3135 = vld [vmem:[#allocation3 + $0xab8] sm:$0xff]
    %v3136 = vld [vmem:[#allocation3 + $0xac0] sm:$0xff]
    %v3137 = vld [vmem:[#allocation3 + $0xac8] sm:$0xff]
    %v3138 = vld [vmem:[#allocation3 + $0xad0] sm:$0xff]
    %v3139 = vld [vmem:[#allocation3 + $0xad8] sm:$0xff]
    %v3140 = vld [vmem:[#allocation3 + $0xae0] sm:$0xff]
    %v3141 = vld [vmem:[#allocation3 + $0xae8] sm:$0xff]
    %v3142 = vld [vmem:[#allocation3 + $0xaf0] sm:$0xff]
    %v3143 = vld [vmem:[#allocation3 + $0xaf8] sm:$0xff]
    %v3144 = vld [vmem:[#allocation3 + $0xb00] sm:$0xff]
    %v3145 = vld [vmem:[#allocation3 + $0xb08] sm:$0xff]
    %v3146 = vld [vmem:[#allocation3 + $0xb10] sm:$0xff]
    %v3147 = vld [vmem:[#allocation3 + $0xb18] sm:$0xff]
    %v3148 = vld [vmem:[#allocation3 + $0xb20] sm:$0xff]
    %v3149 = vld [vmem:[#allocation3 + $0xb28] sm:$0xff]
    %v3150 = vld [vmem:[#allocation3 + $0xb30] sm:$0xff]
    %v3151 = vld [vmem:[#allocation3 + $0xb38] sm:$0xff]
    %v3152 = vld [vmem:[#allocation3 + $0xb40] sm:$0xff]
    %v3153 = vld [vmem:[#allocation3 + $0xb48] sm:$0xff]
    %v3154 = vld [vmem:[#allocation3 + $0xb50] sm:$0xff]
    %v3155 = vld [vmem:[#allocation3 + $0xb58] sm:$0xff]
    %v3156 = vld [vmem:[#allocation3 + $0xb60] sm:$0xff]
    %v3157 = vld [vmem:[#allocation3 + $0xb68] sm:$0xff]
    %v3158 = vld [vmem:[#allocation3 + $0xb70] sm:$0xff]
    %v3159 = vld [vmem:[#allocation3 + $0xb78] sm:$0xff]
    %v3160 = vld [vmem:[#allocation3 + $0xb80] sm:$0xff]
    %v3161 = vld [vmem:[#allocation3 + $0xb88] sm:$0xff]
    %v3162 = vld [vmem:[#allocation3 + $0xb90] sm:$0xff]
    %v3163 = vld [vmem:[#allocation3 + $0xb98] sm:$0xff]
    %v3164 = vld [vmem:[#allocation3 + $0xba0] sm:$0xff]
    %v3165 = vld [vmem:[#allocation3 + $0xba8] sm:$0xff]
    %v3166 = vld [vmem:[#allocation3 + $0xbb0] sm:$0xff]
    %v3167 = vld [vmem:[#allocation3 + $0xbb8] sm:$0xff]
    %v3168 = vld [vmem:[#allocation3 + $0xbc0] sm:$0xff]
    %v3169 = vld [vmem:[#allocation3 + $0xbc8] sm:$0xff]
    %v3170 = vld [vmem:[#allocation3 + $0xbd0] sm:$0xff]
    %v3171 = vld [vmem:[#allocation3 + $0xbd8] sm:$0xff]
    %v3172 = vld [vmem:[#allocation3 + $0xbe0] sm:$0xff]
    %v3173 = vld [vmem:[#allocation3 + $0xbe8] sm:$0xff]
    %v3174 = vld [vmem:[#allocation3 + $0xbf0] sm:$0xff]
    %v3175 = vld [vmem:[#allocation3 + $0xbf8] sm:$0xff]
    %v3176 = vld [vmem:[#allocation3 + $0xc00] sm:$0xff]
    %v3177 = vld [vmem:[#allocation3 + $0xc08] sm:$0xff]
    %v3178 = vld [vmem:[#allocation3 + $0xc10] sm:$0xff]
    %v3179 = vld [vmem:[#allocation3 + $0xc18] sm:$0xff]
    %v3180 = vld [vmem:[#allocation3 + $0xc20] sm:$0xff]
    %v3181 = vld [vmem:[#allocation3 + $0xc28] sm:$0xff]
    %v3182 = vld [vmem:[#allocation3 + $0xc30] sm:$0xff]
    %v3183 = vld [vmem:[#allocation3 + $0xc38] sm:$0xff]
    %v3184 = vld [vmem:[#allocation3 + $0xc40] sm:$0xff]
    %v3185 = vld [vmem:[#allocation3 + $0xc48] sm:$0xff]
    %v3186 = vld [vmem:[#allocation3 + $0xc50] sm:$0xff]
    %v3187 = vld [vmem:[#allocation3 + $0xc58] sm:$0xff]
    %v3188 = vld [vmem:[#allocation3 + $0xc60] sm:$0xff]
    %v3189 = vld [vmem:[#allocation3 + $0xc68] sm:$0xff]
    %v3190 = vld [vmem:[#allocation3 + $0xc70] sm:$0xff]
    %v3191 = vld [vmem:[#allocation3 + $0xc78] sm:$0xff]
    %v3192 = vld [vmem:[#allocation3 + $0xc80] sm:$0xff]
    %v3193 = vld [vmem:[#allocation3 + $0xc88] sm:$0xff]
    %v3194 = vld [vmem:[#allocation3 + $0xc90] sm:$0xff]
    %v3195 = vld [vmem:[#allocation3 + $0xc98] sm:$0xff]
    %v3196 = vld [vmem:[#allocation3 + $0xca0] sm:$0xff]
    %v3197 = vld [vmem:[#allocation3 + $0xca8] sm:$0xff]
    %v3198 = vld [vmem:[#allocation3 + $0xcb0] sm:$0xff]
    %v3199 = vld [vmem:[#allocation3 + $0xcb8] sm:$0xff]
    %v3200 = vld [vmem:[#allocation3 + $0xcc0] sm:$0xff]
    %v3201 = vld [vmem:[#allocation3 + $0xcc8] sm:$0xff]
    %v3202 = vld [vmem:[#allocation3 + $0xcd0] sm:$0xff]
    %v3203 = vld [vmem:[#allocation3 + $0xcd8] sm:$0xff]
    %v3204 = vld [vmem:[#allocation3 + $0xce0] sm:$0xff]
    %v3205 = vld [vmem:[#allocation3 + $0xce8] sm:$0xff]
    %v3206 = vld [vmem:[#allocation3 + $0xcf0] sm:$0xff]
    %v3207 = vld [vmem:[#allocation3 + $0xcf8] sm:$0xff]
    %v3208 = vld [vmem:[#allocation3 + $0xd00] sm:$0xff]
    %v3209 = vld [vmem:[#allocation3 + $0xd08] sm:$0xff]
    %v3210 = vld [vmem:[#allocation3 + $0xd10] sm:$0xff]
    %v3211 = vld [vmem:[#allocation3 + $0xd18] sm:$0xff]
    %v3212 = vld [vmem:[#allocation3 + $0xd20] sm:$0xff]
    %v3213 = vld [vmem:[#allocation3 + $0xd28] sm:$0xff]
    %v3214 = vld [vmem:[#allocation3 + $0xd30] sm:$0xff]
    %v3215 = vld [vmem:[#allocation3 + $0xd38] sm:$0xff]
    %v3216 = vld [vmem:[#allocation3 + $0xd40] sm:$0xff]
    %v3217 = vld [vmem:[#allocation3 + $0xd48] sm:$0xff]
    %v3218 = vld [vmem:[#allocation3 + $0xd50] sm:$0xff]
    %v3219 = vld [vmem:[#allocation3 + $0xd58] sm:$0xff]
    %v3220 = vld [vmem:[#allocation3 + $0xd60] sm:$0xff]
    %v3221 = vld [vmem:[#allocation3 + $0xd68] sm:$0xff]
    %v3222 = vld [vmem:[#allocation3 + $0xd70] sm:$0xff]
    %v3223 = vld [vmem:[#allocation3 + $0xd78] sm:$0xff]
    %v3224 = vld [vmem:[#allocation3 + $0xd80] sm:$0xff]
    %v3225 = vld [vmem:[#allocation3 + $0xd88] sm:$0xff]
    %v3226 = vld [vmem:[#allocation3 + $0xd90] sm:$0xff]
    %v3227 = vld [vmem:[#allocation3 + $0xd98] sm:$0xff]
    %v3228 = vld [vmem:[#allocation3 + $0xda0] sm:$0xff]
    %v3229 = vld [vmem:[#allocation3 + $0xda8] sm:$0xff]
    %v3230 = vld [vmem:[#allocation3 + $0xdb0] sm:$0xff]
    %v3231 = vld [vmem:[#allocation3 + $0xdb8] sm:$0xff]
    %v3232 = vld [vmem:[#allocation3 + $0xdc0] sm:$0xff]
    %v3233 = vld [vmem:[#allocation3 + $0xdc8] sm:$0xff]
    %v3234 = vld [vmem:[#allocation3 + $0xdd0] sm:$0xff]
    %v3235 = vld [vmem:[#allocation3 + $0xdd8] sm:$0xff]
    %v3236 = vld [vmem:[#allocation3 + $0xde0] sm:$0xff]
    %v3237 = vld [vmem:[#allocation3 + $0xde8] sm:$0xff]
    %v3238 = vld [vmem:[#allocation3 + $0xdf0] sm:$0xff]
    %v3239 = vld [vmem:[#allocation3 + $0xdf8] sm:$0xff]
    %v3240 = vld [vmem:[#allocation25] sm:$0xff]
    %v3242 = vlaneseq
    %v3243 = vshrl.u32 %v3242, 7
    %v3244 = vsub.s32 0, %v3243
    %v3245 = vrot.slane %v3240, %v3244
    %v3246 = vlaneseq
    %v3247 = vshrl.u32 %v3246, 7
    %v3248 = vsub.s32 1, %v3247
    %v3249 = vrot.slane %v3240, %v3248
    %v3250 = vlaneseq
    %v3251 = vshrl.u32 %v3250, 7
    %v3252 = vsub.s32 2, %v3251
    %v3253 = vrot.slane %v3240, %v3252
    %v3254 = vlaneseq
    %v3255 = vshrl.u32 %v3254, 7
    %v3256 = vsub.s32 3, %v3255
    %v3257 = vrot.slane %v3240, %v3256
    %v3258 = vlaneseq
    %v3259 = vshrl.u32 %v3258, 7
    %v3260 = vsub.s32 4, %v3259
    %v3261 = vrot.slane %v3240, %v3260
    %v3262 = vlaneseq
    %v3263 = vshrl.u32 %v3262, 7
    %v3264 = vsub.s32 5, %v3263
    %v3265 = vrot.slane %v3240, %v3264
    %v3266 = vlaneseq
    %v3267 = vshrl.u32 %v3266, 7
    %v3268 = vsub.s32 6, %v3267
    %v3269 = vrot.slane %v3240, %v3268
    %3277 = vmatprep.subr.bf16.mxu0 %v2793
    %3278 = vmatpush1.bf16.msra.mxu0 %v2792
    %3279 = vmatprep.subr.bf16.mxu0 %v2800
    %3280 = vmatpush1.bf16.msra.mxu0 %v2799
    %3281 = vmatprep.subr.bf16.mxu0 %v2807
    %3282 = vmatpush1.bf16.msra.mxu0 %v2806
    %3283 = vmatprep.subr.bf16.mxu0 %v2814
    %3284 = vmatpush1.bf16.msra.mxu0 %v2813
    %3285 = vmatprep.subr.bf16.mxu0 %v2821
    %3286 = vmatpush1.bf16.msra.mxu0 %v2820
    %3287 = vmatprep.subr.bf16.mxu0 %v2828
    %3288 = vmatpush1.bf16.msra.mxu0 %v2827
    %3289 = vmatprep.subr.bf16.mxu0 %v2835
    %3290 = vmatpush1.bf16.msra.mxu0 %v2834
    %3291 = vmatprep.subr.bf16.mxu0 %v2842
    %3292 = vmatpush1.bf16.msra.mxu0 %v2841
    %3293 = vmatprep.subr.bf16.mxu0 %v2849
    %3294 = vmatpush1.bf16.msra.mxu0 %v2848
    %3295 = vmatprep.subr.bf16.mxu0 %v2856
    %3296 = vmatpush1.bf16.msra.mxu0 %v2855
    %3297 = vmatprep.subr.bf16.mxu0 %v2863
    %3298 = vmatpush1.bf16.msra.mxu0 %v2862
    %3299 = vmatprep.subr.bf16.mxu0 %v2870
    %3300 = vmatpush1.bf16.msra.mxu0 %v2869
    %3301 = vmatprep.subr.bf16.mxu0 %v2877
    %3302 = vmatpush1.bf16.msra.mxu0 %v2876
    %3303 = vmatprep.subr.bf16.mxu0 %v2884
    %3304 = vmatpush1.bf16.msra.mxu0 %v2883
    %3305 = vmatprep.subr.bf16.mxu0 %v2891
    %3306 = vmatpush1.bf16.msra.mxu0 %v2890
    %3307 = vmatprep.subr.bf16.mxu0 %v2898
    %3308 = vmatpush1.bf16.msra.mxu0 %v2897
    %3309 = vmatprep.mubr.bf16.mxu0 %v2773
    %3310 = vmatmul.mubr.bf16.gmra.mrb[0].mxu0 %v2772
    %v3311 = vpop.f32.mrb[0].mxu0
    %v3312 = vadd.f32 %v3245, %v3311
    %v3313 = vpop.f32.mrb[0].mxu0
    %v3314 = vadd.f32 %v3249, %v3313
    %v3315 = vpop.f32.mrb[0].mxu0
    %v3316 = vadd.f32 %v3245, %v3315
    %v3317 = vpop.f32.mrb[0].mxu0
    %v3318 = vadd.f32 %v3249, %v3317
    %3319 = vmatprep.mubr.bf16.mxu0 %v2781
    %3320 = vmatmul.mubr.bf16.gmra.mrb[0].mxu0 %v2780
    %v3321 = vpop.f32.mrb[0].mxu0
    %v3322 = vadd.f32 %v3245, %v3321
    %v3323 = vpop.f32.mrb[0].mxu0
    %v3324 = vadd.f32 %v3249, %v3323
    %v3325 = vpop.f32.mrb[0].mxu0
    %v3326 = vadd.f32 %v3245, %v3325
    %v3327 = vpop.f32.mrb[0].mxu0
    %v3328 = vadd.f32 %v3249, %v3327
    %3329 = vdwg.mxu0
    %3330 = vmatprep.subr.bf16.mxu0 %v2905
    %3331 = vmatpush1.bf16.msra.mxu0 %v2904
    %3332 = vmatprep.subr.bf16.mxu0 %v2912
    %3333 = vmatpush1.bf16.msra.mxu0 %v2911
    %3334 = vmatprep.subr.bf16.mxu0 %v2919
    %3335 = vmatpush1.bf16.msra.mxu0 %v2918
    %3336 = vmatprep.subr.bf16.mxu0 %v2926
    %3337 = vmatpush1.bf16.msra.mxu0 %v2925
    %3338 = vmatprep.subr.bf16.mxu0 %v2933
    %3339 = vmatpush1.bf16.msra.mxu0 %v2932
    %3340 = vmatprep.subr.bf16.mxu0 %v2940
    %3341 = vmatpush1.bf16.msra.mxu0 %v2939
    %3342 = vmatprep.subr.bf16.mxu0 %v2947
    %3343 = vmatpush1.bf16.msra.mxu0 %v2946
    %3344 = vmatprep.subr.bf16.mxu0 %v2954
    %3345 = vmatpush1.bf16.msra.mxu0 %v2953
    %3346 = vmatprep.subr.bf16.mxu0 %v2961
    %3347 = vmatpush1.bf16.msra.mxu0 %v2960
    %3348 = vmatprep.subr.bf16.mxu0 %v2968
    %3349 = vmatpush1.bf16.msra.mxu0 %v2967
    %3350 = vmatprep.subr.bf16.mxu0 %v2975
    %3351 = vmatpush1.bf16.msra.mxu0 %v2974
    %3352 = vmatprep.subr.bf16.mxu0 %v2982
    %3353 = vmatpush1.bf16.msra.mxu0 %v2981
    %3354 = vmatprep.subr.bf16.mxu0 %v2989
    %3355 = vmatpush1.bf16.msra.mxu0 %v2988
    %3356 = vmatprep.subr.bf16.mxu0 %v2996
    %3357 = vmatpush1.bf16.msra.mxu0 %v2995
    %3358 = vmatprep.subr.bf16.mxu0 %v3003
    %3359 = vmatpush1.bf16.msra.mxu0 %v3002
    %3360 = vmatprep.subr.bf16.mxu0 %v3010
    %3361 = vmatpush1.bf16.msra.mxu0 %v3009
    %3362 = vmatprep.mubr.bf16.mxu0 %v2775
    %3363 = vmatmul.mubr.bf16.gmra.mrb[0].mxu0 %v2774
    %v3364 = vpop.f32.mrb[0].mxu0
    %v3365 = vadd.f32 %v3312, %v3364
    %v3366 = vpop.f32.mrb[0].mxu0
    %v3367 = vadd.f32 %v3314, %v3366
    %v3368 = vpop.f32.mrb[0].mxu0
    %v3369 = vadd.f32 %v3316, %v3368
    %v3370 = vpop.f32.mrb[0].mxu0
    %v3371 = vadd.f32 %v3318, %v3370
    %3372 = vmatprep.mubr.bf16.mxu0 %v2783
    %3373 = vmatmul.mubr.bf16.gmra.mrb[0].mxu0 %v2782
    %v3374 = vpop.f32.mrb[0].mxu0
    %v3375 = vadd.f32 %v3322, %v3374
    %v3376 = vpop.f32.mrb[0].mxu0
    %v3377 = vadd.f32 %v3324, %v3376
    %v3378 = vpop.f32.mrb[0].mxu0
    %v3379 = vadd.f32 %v3326, %v3378
    %v3380 = vpop.f32.mrb[0].mxu0
    %v3381 = vadd.f32 %v3328, %v3380
    %3382 = vdwg.mxu0
    %3383 = vmatprep.subr.bf16.mxu0 %v3017
    %3384 = vmatpush1.bf16.msra.mxu0 %v3016
    %3385 = vmatprep.subr.bf16.mxu0 %v3024
    %3386 = vmatpush1.bf16.msra.mxu0 %v3023
    %3387 = vmatprep.subr.bf16.mxu0 %v3031
    %3388 = vmatpush1.bf16.msra.mxu0 %v3030
    %3389 = vmatprep.subr.bf16.mxu0 %v3038
    %3390 = vmatpush1.bf16.msra.mxu0 %v3037
    %3391 = vmatprep.subr.bf16.mxu0 %v3045
    %3392 = vmatpush1.bf16.msra.mxu0 %v3044
    %3393 = vmatprep.subr.bf16.mxu0 %v3052
    %3394 = vmatpush1.bf16.msra.mxu0 %v3051
    %3395 = vmatprep.subr.bf16.mxu0 %v3059
    %3396 = vmatpush1.bf16.msra.mxu0 %v3058
    %3397 = vmatprep.subr.bf16.mxu0 %v3066
    %3398 = vmatpush1.bf16.msra.mxu0 %v3065
    %3399 = vmatprep.subr.bf16.mxu0 %v3073
    %3400 = vmatpush1.bf16.msra.mxu0 %v3072
    %3401 = vmatprep.subr.bf16.mxu0 %v3080
    %3402 = vmatpush1.bf16.msra.mxu0 %v3079
    %3403 = vmatprep.subr.bf16.mxu0 %v3087
    %3404 = vmatpush1.bf16.msra.mxu0 %v3086
    %3405 = vmatprep.subr.bf16.mxu0 %v3094
    %3406 = vmatpush1.bf16.msra.mxu0 %v3093
    %3407 = vmatprep.subr.bf16.mxu0 %v3101
    %3408 = vmatpush1.bf16.msra.mxu0 %v3100
    %3409 = vmatprep.subr.bf16.mxu0 %v3108
    %3410 = vmatpush1.bf16.msra.mxu0 %v3107
    %3411 = vmatprep.subr.bf16.mxu0 %v3115
    %3412 = vmatpush1.bf16.msra.mxu0 %v3114
    %3413 = vmatprep.subr.bf16.mxu0 %v3122
    %3414 = vmatpush1.bf16.msra.mxu0 %v3121
    %3415 = vmatprep.mubr.bf16.mxu0 %v2777
    %3416 = vmatmul.mubr.bf16.gmra.mrb[0].mxu0 %v2776
    %v3417 = vpop.f32.mrb[0].mxu0
    %v3418 = vadd.f32 %v3365, %v3417
    %v3419 = vpop.f32.mrb[0].mxu0
    %v3420 = vadd.f32 %v3367, %v3419
    %v3421 = vpop.f32.mrb[0].mxu0
    %v3422 = vadd.f32 %v3369, %v3421
    %v3423 = vpop.f32.mrb[0].mxu0
    %v3424 = vadd.f32 %v3371, %v3423
    %3425 = vmatprep.mubr.bf16.mxu0 %v2785
    %3426 = vmatmul.mubr.bf16.gmra.mrb[0].mxu0 %v2784
    %v3427 = vpop.f32.mrb[0].mxu0
    %v3428 = vadd.f32 %v3375, %v3427
    %v3429 = vpop.f32.mrb[0].mxu0
    %v3430 = vadd.f32 %v3377, %v3429
    %v3431 = vpop.f32.mrb[0].mxu0
    %v3432 = vadd.f32 %v3379, %v3431
    %v3433 = vpop.f32.mrb[0].mxu0
    %v3434 = vadd.f32 %v3381, %v3433
    %3435 = vdwg.mxu0
    %3436 = vmatprep.subr.bf16.mxu0 %v3129
    %3437 = vmatpush1.bf16.msra.mxu0 %v3128
    %3438 = vmatprep.subr.bf16.mxu0 %v3136
    %3439 = vmatpush1.bf16.msra.mxu0 %v3135
    %3440 = vmatprep.subr.bf16.mxu0 %v3143
    %3441 = vmatpush1.bf16.msra.mxu0 %v3142
    %3442 = vmatprep.subr.bf16.mxu0 %v3150
    %3443 = vmatpush1.bf16.msra.mxu0 %v3149
    %3444 = vmatprep.subr.bf16.mxu0 %v3157
    %3445 = vmatpush1.bf16.msra.mxu0 %v3156
    %3446 = vmatprep.subr.bf16.mxu0 %v3164
    %3447 = vmatpush1.bf16.msra.mxu0 %v3163
    %3448 = vmatprep.subr.bf16.mxu0 %v3171
    %3449 = vmatpush1.bf16.msra.mxu0 %v3170
    %3450 = vmatprep.subr.bf16.mxu0 %v3178
    %3451 = vmatpush1.bf16.msra.mxu0 %v3177
    %3452 = vmatprep.subr.bf16.mxu0 %v3185
    %3453 = vmatpush1.bf16.msra.mxu0 %v3184
    %3454 = vmatprep.subr.bf16.mxu0 %v3192
    %3455 = vmatpush1.bf16.msra.mxu0 %v3191
    %3456 = vmatprep.subr.bf16.mxu0 %v3199
    %3457 = vmatpush1.bf16.msra.mxu0 %v3198
    %3458 = vmatprep.subr.bf16.mxu0 %v3206
    %3459 = vmatpush1.bf16.msra.mxu0 %v3205
    %3460 = vmatprep.subr.bf16.mxu0 %v3213
    %3461 = vmatpush1.bf16.msra.mxu0 %v3212
    %3462 = vmatprep.subr.bf16.mxu0 %v3220
    %3463 = vmatpush1.bf16.msra.mxu0 %v3219
    %3464 = vmatprep.subr.bf16.mxu0 %v3227
    %3465 = vmatpush1.bf16.msra.mxu0 %v3226
    %3466 = vmatprep.subr.bf16.mxu0 %v3234
    %3467 = vmatpush1.bf16.msra.mxu0 %v3233
    %3468 = vmatprep.mubr.bf16.mxu0 %v2779
    %3469 = vmatmul.mubr.bf16.gmra.mrb[0].mxu0 %v2778
    %v3470 = vpop.f32.mrb[0].mxu0
    %v3471 = vadd.f32 %v3418, %v3470
    %v3472 = vpop.f32.mrb[0].mxu0
    %v3473 = vadd.f32 %v3420, %v3472
    %v3474 = vpop.f32.mrb[0].mxu0
    %v3475 = vadd.f32 %v3422, %v3474
    %v3476 = vpop.f32.mrb[0].mxu0
    %v3477 = vadd.f32 %v3424, %v3476
    %3478 = vmatprep.mubr.bf16.mxu0 %v2787
    %3479 = vmatmul.mubr.bf16.gmra.mrb[0].mxu0 %v2786
    %v3480 = vpop.f32.mrb[0].mxu0
    %v3481 = vadd.f32 %v3428, %v3480
    %v3482 = vpop.f32.mrb[0].mxu0
    %v3483 = vadd.f32 %v3430, %v3482
    %v3484 = vpop.f32.mrb[0].mxu0
    %v3485 = vadd.f32 %v3432, %v3484
    %v3486 = vpop.f32.mrb[0].mxu0
    %v3487 = vadd.f32 %v3434, %v3486
    %3488 = vdwg.mxu0
    %3489 = vmatprep.subr.bf16.mxu0 %v2795
    %3490 = vmatpush1.bf16.msra.mxu0 %v2794
    %3491 = vmatprep.subr.bf16.mxu0 %v2802
    %3492 = vmatpush1.bf16.msra.mxu0 %v2801
    %3493 = vmatprep.subr.bf16.mxu0 %v2809
    %3494 = vmatpush1.bf16.msra.mxu0 %v2808
    %3495 = vmatprep.subr.bf16.mxu0 %v2816
    %3496 = vmatpush1.bf16.msra.mxu0 %v2815
    %3497 = vmatprep.subr.bf16.mxu0 %v2823
    %3498 = vmatpush1.bf16.msra.mxu0 %v2822
    %3499 = vmatprep.subr.bf16.mxu0 %v2830
    %3500 = vmatpush1.bf16.msra.mxu0 %v2829
    %3501 = vmatprep.subr.bf16.mxu0 %v2837
    %3502 = vmatpush1.bf16.msra.mxu0 %v2836
    %3503 = vmatprep.subr.bf16.mxu0 %v2844
    %3504 = vmatpush1.bf16.msra.mxu0 %v2843
    %3505 = vmatprep.subr.bf16.mxu0 %v2851
    %3506 = vmatpush1.bf16.msra.mxu0 %v2850
    %3507 = vmatprep.subr.bf16.mxu0 %v2858
    %3508 = vmatpush1.bf16.msra.mxu0 %v2857
    %3509 = vmatprep.subr.bf16.mxu0 %v2865
    %3510 = vmatpush1.bf16.msra.mxu0 %v2864
    %3511 = vmatprep.subr.bf16.mxu0 %v2872
    %3512 = vmatpush1.bf16.msra.mxu0 %v2871
    %3513 = vmatprep.subr.bf16.mxu0 %v2879
    %3514 = vmatpush1.bf16.msra.mxu0 %v2878
    %3515 = vmatprep.subr.bf16.mxu0 %v2886
    %3516 = vmatpush1.bf16.msra.mxu0 %v2885
    %3517 = vmatprep.subr.bf16.mxu0 %v2893
    %3518 = vmatpush1.bf16.msra.mxu0 %v2892
    %3519 = vmatprep.subr.bf16.mxu0 %v2900
    %3520 = vmatpush1.bf16.msra.mxu0 %v2899
    %3521 = vmatprep.mubr.bf16.mxu0 %v2773
    %3522 = vmatmul.mubr.bf16.gmra.mrb[0].mxu0 %v2772
    %v3523 = vpop.f32.mrb[0].mxu0
    %v3524 = vadd.f32 %v3253, %v3523
    %v3525 = vpop.f32.mrb[0].mxu0
    %v3526 = vadd.f32 %v3257, %v3525
    %v3527 = vpop.f32.mrb[0].mxu0
    %v3528 = vadd.f32 %v3253, %v3527
    %v3529 = vpop.f32.mrb[0].mxu0
    %v3530 = vadd.f32 %v3257, %v3529
    %3531 = vmatprep.mubr.bf16.mxu0 %v2781
    %3532 = vmatmul.mubr.bf16.gmra.mrb[0].mxu0 %v2780
    %v3533 = vpop.f32.mrb[0].mxu0
    %v3534 = vadd.f32 %v3253, %v3533
    %v3535 = vpop.f32.mrb[0].mxu0
    %v3536 = vadd.f32 %v3257, %v3535
    %v3537 = vpop.f32.mrb[0].mxu0
    %v3538 = vadd.f32 %v3253, %v3537
    %v3539 = vpop.f32.mrb[0].mxu0
    %v3540 = vadd.f32 %v3257, %v3539
    %3541 = vdwg.mxu0
    %3542 = vmatprep.subr.bf16.mxu0 %v2907
    %3543 = vmatpush1.bf16.msra.mxu0 %v2906
    %3544 = vmatprep.subr.bf16.mxu0 %v2914
    %3545 = vmatpush1.bf16.msra.mxu0 %v2913
    %3546 = vmatprep.subr.bf16.mxu0 %v2921
    %3547 = vmatpush1.bf16.msra.mxu0 %v2920
    %3548 = vmatprep.subr.bf16.mxu0 %v2928
    %3549 = vmatpush1.bf16.msra.mxu0 %v2927
    %3550 = vmatprep.subr.bf16.mxu0 %v2935
    %3551 = vmatpush1.bf16.msra.mxu0 %v2934
    %3552 = vmatprep.subr.bf16.mxu0 %v2942
    %3553 = vmatpush1.bf16.msra.mxu0 %v2941
    %3554 = vmatprep.subr.bf16.mxu0 %v2949
    %3555 = vmatpush1.bf16.msra.mxu0 %v2948
    %3556 = vmatprep.subr.bf16.mxu0 %v2956
    %3557 = vmatpush1.bf16.msra.mxu0 %v2955
    %3558 = vmatprep.subr.bf16.mxu0 %v2963
    %3559 = vmatpush1.bf16.msra.mxu0 %v2962
    %3560 = vmatprep.subr.bf16.mxu0 %v2970
    %3561 = vmatpush1.bf16.msra.mxu0 %v2969
    %3562 = vmatprep.subr.bf16.mxu0 %v2977
    %3563 = vmatpush1.bf16.msra.mxu0 %v2976
    %3564 = vmatprep.subr.bf16.mxu0 %v2984
    %3565 = vmatpush1.bf16.msra.mxu0 %v2983
    %3566 = vmatprep.subr.bf16.mxu0 %v2991
    %3567 = vmatpush1.bf16.msra.mxu0 %v2990
    %3568 = vmatprep.subr.bf16.mxu0 %v2998
    %3569 = vmatpush1.bf16.msra.mxu0 %v2997
    %3570 = vmatprep.subr.bf16.mxu0 %v3005
    %3571 = vmatpush1.bf16.msra.mxu0 %v3004
    %3572 = vmatprep.subr.bf16.mxu0 %v3012
    %3573 = vmatpush1.bf16.msra.mxu0 %v3011
    %3574 = vmatprep.mubr.bf16.mxu0 %v2775
    %3575 = vmatmul.mubr.bf16.gmra.mrb[0].mxu0 %v2774
    %v3576 = vpop.f32.mrb[0].mxu0
    %v3577 = vadd.f32 %v3524, %v3576
    %v3578 = vpop.f32.mrb[0].mxu0
    %v3579 = vadd.f32 %v3526, %v3578
    %v3580 = vpop.f32.mrb[0].mxu0
    %v3581 = vadd.f32 %v3528, %v3580
    %v3582 = vpop.f32.mrb[0].mxu0
    %v3583 = vadd.f32 %v3530, %v3582
    %3584 = vmatprep.mubr.bf16.mxu0 %v2783
    %3585 = vmatmul.mubr.bf16.gmra.mrb[0].mxu0 %v2782
    %v3586 = vpop.f32.mrb[0].mxu0
    %v3587 = vadd.f32 %v3534, %v3586
    %v3588 = vpop.f32.mrb[0].mxu0
    %v3589 = vadd.f32 %v3536, %v3588
    %v3590 = vpop.f32.mrb[0].mxu0
    %v3591 = vadd.f32 %v3538, %v3590
    %v3592 = vpop.f32.mrb[0].mxu0
    %v3593 = vadd.f32 %v3540, %v3592
    %3594 = vdwg.mxu0
    %3595 = vmatprep.subr.bf16.mxu0 %v3019
    %3596 = vmatpush1.bf16.msra.mxu0 %v3018
    %3597 = vmatprep.subr.bf16.mxu0 %v3026
    %3598 = vmatpush1.bf16.msra.mxu0 %v3025
    %3599 = vmatprep.subr.bf16.mxu0 %v3033
    %3600 = vmatpush1.bf16.msra.mxu0 %v3032
    %3601 = vmatprep.subr.bf16.mxu0 %v3040
    %3602 = vmatpush1.bf16.msra.mxu0 %v3039
    %3603 = vmatprep.subr.bf16.mxu0 %v3047
    %3604 = vmatpush1.bf16.msra.mxu0 %v3046
    %3605 = vmatprep.subr.bf16.mxu0 %v3054
    %3606 = vmatpush1.bf16.msra.mxu0 %v3053
    %3607 = vmatprep.subr.bf16.mxu0 %v3061
    %3608 = vmatpush1.bf16.msra.mxu0 %v3060
    %3609 = vmatprep.subr.bf16.mxu0 %v3068
    %3610 = vmatpush1.bf16.msra.mxu0 %v3067
    %3611 = vmatprep.subr.bf16.mxu0 %v3075
    %3612 = vmatpush1.bf16.msra.mxu0 %v3074
    %3613 = vmatprep.subr.bf16.mxu0 %v3082
    %3614 = vmatpush1.bf16.msra.mxu0 %v3081
    %3615 = vmatprep.subr.bf16.mxu0 %v3089
    %3616 = vmatpush1.bf16.msra.mxu0 %v3088
    %3617 = vmatprep.subr.bf16.mxu0 %v3096
    %3618 = vmatpush1.bf16.msra.mxu0 %v3095
    %3619 = vmatprep.subr.bf16.mxu0 %v3103
    %3620 = vmatpush1.bf16.msra.mxu0 %v3102
    %3621 = vmatprep.subr.bf16.mxu0 %v3110
    %3622 = vmatpush1.bf16.msra.mxu0 %v3109
    %3623 = vmatprep.subr.bf16.mxu0 %v3117
    %3624 = vmatpush1.bf16.msra.mxu0 %v3116
    %3625 = vmatprep.subr.bf16.mxu0 %v3124
    %3626 = vmatpush1.bf16.msra.mxu0 %v3123
    %3627 = vmatprep.mubr.bf16.mxu0 %v2777
    %3628 = vmatmul.mubr.bf16.gmra.mrb[0].mxu0 %v2776
    %v3629 = vpop.f32.mrb[0].mxu0
    %v3630 = vadd.f32 %v3577, %v3629
    %v3631 = vpop.f32.mrb[0].mxu0
    %v3632 = vadd.f32 %v3579, %v3631
    %v3633 = vpop.f32.mrb[0].mxu0
    %v3634 = vadd.f32 %v3581, %v3633
    %v3635 = vpop.f32.mrb[0].mxu0
    %v3636 = vadd.f32 %v3583, %v3635
    %3637 = vmatprep.mubr.bf16.mxu0 %v2785
    %3638 = vmatmul.mubr.bf16.gmra.mrb[0].mxu0 %v2784
    %v3639 = vpop.f32.mrb[0].mxu0
    %v3640 = vadd.f32 %v3587, %v3639
    %v3641 = vpop.f32.mrb[0].mxu0
    %v3642 = vadd.f32 %v3589, %v3641
    %v3643 = vpop.f32.mrb[0].mxu0
    %v3644 = vadd.f32 %v3591, %v3643
    %v3645 = vpop.f32.mrb[0].mxu0
    %v3646 = vadd.f32 %v3593, %v3645
    %3647 = vdwg.mxu0
    %3648 = vmatprep.subr.bf16.mxu0 %v3131
    %3649 = vmatpush1.bf16.msra.mxu0 %v3130
    %3650 = vmatprep.subr.bf16.mxu0 %v3138
    %3651 = vmatpush1.bf16.msra.mxu0 %v3137
    %3652 = vmatprep.subr.bf16.mxu0 %v3145
    %3653 = vmatpush1.bf16.msra.mxu0 %v3144
    %3654 = vmatprep.subr.bf16.mxu0 %v3152
    %3655 = vmatpush1.bf16.msra.mxu0 %v3151
    %3656 = vmatprep.subr.bf16.mxu0 %v3159
    %3657 = vmatpush1.bf16.msra.mxu0 %v3158
    %3658 = vmatprep.subr.bf16.mxu0 %v3166
    %3659 = vmatpush1.bf16.msra.mxu0 %v3165
    %3660 = vmatprep.subr.bf16.mxu0 %v3173
    %3661 = vmatpush1.bf16.msra.mxu0 %v3172
    %3662 = vmatprep.subr.bf16.mxu0 %v3180
    %3663 = vmatpush1.bf16.msra.mxu0 %v3179
    %3664 = vmatprep.subr.bf16.mxu0 %v3187
    %3665 = vmatpush1.bf16.msra.mxu0 %v3186
    %3666 = vmatprep.subr.bf16.mxu0 %v3194
    %3667 = vmatpush1.bf16.msra.mxu0 %v3193
    %3668 = vmatprep.subr.bf16.mxu0 %v3201
    %3669 = vmatpush1.bf16.msra.mxu0 %v3200
    %3670 = vmatprep.subr.bf16.mxu0 %v3208
    %3671 = vmatpush1.bf16.msra.mxu0 %v3207
    %3672 = vmatprep.subr.bf16.mxu0 %v3215
    %3673 = vmatpush1.bf16.msra.mxu0 %v3214
    %3674 = vmatprep.subr.bf16.mxu0 %v3222
    %3675 = vmatpush1.bf16.msra.mxu0 %v3221
    %3676 = vmatprep.subr.bf16.mxu0 %v3229
    %3677 = vmatpush1.bf16.msra.mxu0 %v3228
    %3678 = vmatprep.subr.bf16.mxu0 %v3236
    %3679 = vmatpush1.bf16.msra.mxu0 %v3235
    %3680 = vmatprep.mubr.bf16.mxu0 %v2779
    %3681 = vmatmul.mubr.bf16.gmra.mrb[0].mxu0 %v2778
    %v3682 = vpop.f32.mrb[0].mxu0
    %v3683 = vadd.f32 %v3630, %v3682
    %v3684 = vpop.f32.mrb[0].mxu0
    %v3685 = vadd.f32 %v3632, %v3684
    %v3686 = vpop.f32.mrb[0].mxu0
    %v3687 = vadd.f32 %v3634, %v3686
    %v3688 = vpop.f32.mrb[0].mxu0
    %v3689 = vadd.f32 %v3636, %v3688
    %3690 = vmatprep.mubr.bf16.mxu0 %v2787
    %3691 = vmatmul.mubr.bf16.gmra.mrb[0].mxu0 %v2786
    %v3692 = vpop.f32.mrb[0].mxu0
    %v3693 = vadd.f32 %v3640, %v3692
    %v3694 = vpop.f32.mrb[0].mxu0
    %v3695 = vadd.f32 %v3642, %v3694
    %v3696 = vpop.f32.mrb[0].mxu0
    %v3697 = vadd.f32 %v3644, %v3696
    %v3698 = vpop.f32.mrb[0].mxu0
    %v3699 = vadd.f32 %v3646, %v3698
    %3700 = vdwg.mxu0
    %3701 = vmatprep.subr.bf16.mxu0 %v2797
    %3702 = vmatpush1.bf16.msra.mxu0 %v2796
    %3703 = vmatprep.subr.bf16.mxu0 %v2804
    %3704 = vmatpush1.bf16.msra.mxu0 %v2803
    %3705 = vmatprep.subr.bf16.mxu0 %v2811
    %3706 = vmatpush1.bf16.msra.mxu0 %v2810
    %3707 = vmatprep.subr.bf16.mxu0 %v2818
    %3708 = vmatpush1.bf16.msra.mxu0 %v2817
    %3709 = vmatprep.subr.bf16.mxu0 %v2825
    %3710 = vmatpush1.bf16.msra.mxu0 %v2824
    %3711 = vmatprep.subr.bf16.mxu0 %v2832
    %3712 = vmatpush1.bf16.msra.mxu0 %v2831
    %3713 = vmatprep.subr.bf16.mxu0 %v2839
    %3714 = vmatpush1.bf16.msra.mxu0 %v2838
    %3715 = vmatprep.subr.bf16.mxu0 %v2846
    %3716 = vmatpush1.bf16.msra.mxu0 %v2845
    %3717 = vmatprep.subr.bf16.mxu0 %v2853
    %3718 = vmatpush1.bf16.msra.mxu0 %v2852
    %3719 = vmatprep.subr.bf16.mxu0 %v2860
    %3720 = vmatpush1.bf16.msra.mxu0 %v2859
    %3721 = vmatprep.subr.bf16.mxu0 %v2867
    %3722 = vmatpush1.bf16.msra.mxu0 %v2866
    %3723 = vmatprep.subr.bf16.mxu0 %v2874
    %3724 = vmatpush1.bf16.msra.mxu0 %v2873
    %3725 = vmatprep.subr.bf16.mxu0 %v2881
    %3726 = vmatpush1.bf16.msra.mxu0 %v2880
    %3727 = vmatprep.subr.bf16.mxu0 %v2888
    %3728 = vmatpush1.bf16.msra.mxu0 %v2887
    %3729 = vmatprep.subr.bf16.mxu0 %v2895
    %3730 = vmatpush1.bf16.msra.mxu0 %v2894
    %3731 = vmatprep.subr.bf16.mxu0 %v2902
    %3732 = vmatpush1.bf16.msra.mxu0 %v2901
    %3733 = vmatprep.mubr.bf16.mxu0 %v2773
    %3734 = vmatmul.mubr.bf16.gmra.mrb[0].mxu0 %v2772
    %v3735 = vpop.f32.mrb[0].mxu0
    %v3736 = vadd.f32 %v3261, %v3735
    %v3737 = vpop.f32.mrb[0].mxu0
    %v3738 = vadd.f32 %v3265, %v3737
    %v3739 = vpop.f32.mrb[0].mxu0
    %v3740 = vadd.f32 %v3261, %v3739
    %v3741 = vpop.f32.mrb[0].mxu0
    %v3742 = vadd.f32 %v3265, %v3741
    %3743 = vmatprep.mubr.bf16.mxu0 %v2781
    %3744 = vmatmul.mubr.bf16.gmra.mrb[0].mxu0 %v2780
    %v3745 = vpop.f32.mrb[0].mxu0
    %v3746 = vadd.f32 %v3261, %v3745
    %v3747 = vpop.f32.mrb[0].mxu0
    %v3748 = vadd.f32 %v3265, %v3747
    %v3749 = vpop.f32.mrb[0].mxu0
    %v3750 = vadd.f32 %v3261, %v3749
    %v3751 = vpop.f32.mrb[0].mxu0
    %v3752 = vadd.f32 %v3265, %v3751
    %3753 = vdwg.mxu0
    %3754 = vmatprep.subr.bf16.mxu0 %v2909
    %3755 = vmatpush1.bf16.msra.mxu0 %v2908
    %3756 = vmatprep.subr.bf16.mxu0 %v2916
    %3757 = vmatpush1.bf16.msra.mxu0 %v2915
    %3758 = vmatprep.subr.bf16.mxu0 %v2923
    %3759 = vmatpush1.bf16.msra.mxu0 %v2922
    %3760 = vmatprep.subr.bf16.mxu0 %v2930
    %3761 = vmatpush1.bf16.msra.mxu0 %v2929
    %3762 = vmatprep.subr.bf16.mxu0 %v2937
    %3763 = vmatpush1.bf16.msra.mxu0 %v2936
    %3764 = vmatprep.subr.bf16.mxu0 %v2944
    %3765 = vmatpush1.bf16.msra.mxu0 %v2943
    %3766 = vmatprep.subr.bf16.mxu0 %v2951
    %3767 = vmatpush1.bf16.msra.mxu0 %v2950
    %3768 = vmatprep.subr.bf16.mxu0 %v2958
    %3769 = vmatpush1.bf16.msra.mxu0 %v2957
    %3770 = vmatprep.subr.bf16.mxu0 %v2965
    %3771 = vmatpush1.bf16.msra.mxu0 %v2964
    %3772 = vmatprep.subr.bf16.mxu0 %v2972
    %3773 = vmatpush1.bf16.msra.mxu0 %v2971
    %3774 = vmatprep.subr.bf16.mxu0 %v2979
    %3775 = vmatpush1.bf16.msra.mxu0 %v2978
    %3776 = vmatprep.subr.bf16.mxu0 %v2986
    %3777 = vmatpush1.bf16.msra.mxu0 %v2985
    %3778 = vmatprep.subr.bf16.mxu0 %v2993
    %3779 = vmatpush1.bf16.msra.mxu0 %v2992
    %3780 = vmatprep.subr.bf16.mxu0 %v3000
    %3781 = vmatpush1.bf16.msra.mxu0 %v2999
    %3782 = vmatprep.subr.bf16.mxu0 %v3007
    %3783 = vmatpush1.bf16.msra.mxu0 %v3006
    %3784 = vmatprep.subr.bf16.mxu0 %v3014
    %3785 = vmatpush1.bf16.msra.mxu0 %v3013
    %3786 = vmatprep.mubr.bf16.mxu0 %v2775
    %3787 = vmatmul.mubr.bf16.gmra.mrb[0].mxu0 %v2774
    %v3788 = vpop.f32.mrb[0].mxu0
    %v3789 = vadd.f32 %v3736, %v3788
    %v3790 = vpop.f32.mrb[0].mxu0
    %v3791 = vadd.f32 %v3738, %v3790
    %v3792 = vpop.f32.mrb[0].mxu0
    %v3793 = vadd.f32 %v3740, %v3792
    %v3794 = vpop.f32.mrb[0].mxu0
    %v3795 = vadd.f32 %v3742, %v3794
    %3796 = vmatprep.mubr.bf16.mxu0 %v2783
    %3797 = vmatmul.mubr.bf16.gmra.mrb[0].mxu0 %v2782
    %v3798 = vpop.f32.mrb[0].mxu0
    %v3799 = vadd.f32 %v3746, %v3798
    %v3800 = vpop.f32.mrb[0].mxu0
    %v3801 = vadd.f32 %v3748, %v3800
    %v3802 = vpop.f32.mrb[0].mxu0
    %v3803 = vadd.f32 %v3750, %v3802
    %v3804 = vpop.f32.mrb[0].mxu0
    %v3805 = vadd.f32 %v3752, %v3804
    %3806 = vdwg.mxu0
    %3807 = vmatprep.subr.bf16.mxu0 %v3021
    %3808 = vmatpush1.bf16.msra.mxu0 %v3020
    %3809 = vmatprep.subr.bf16.mxu0 %v3028
    %3810 = vmatpush1.bf16.msra.mxu0 %v3027
    %3811 = vmatprep.subr.bf16.mxu0 %v3035
    %3812 = vmatpush1.bf16.msra.mxu0 %v3034
    %3813 = vmatprep.subr.bf16.mxu0 %v3042
    %3814 = vmatpush1.bf16.msra.mxu0 %v3041
    %3815 = vmatprep.subr.bf16.mxu0 %v3049
    %3816 = vmatpush1.bf16.msra.mxu0 %v3048
    %3817 = vmatprep.subr.bf16.mxu0 %v3056
    %3818 = vmatpush1.bf16.msra.mxu0 %v3055
    %3819 = vmatprep.subr.bf16.mxu0 %v3063
    %3820 = vmatpush1.bf16.msra.mxu0 %v3062
    %3821 = vmatprep.subr.bf16.mxu0 %v3070
    %3822 = vmatpush1.bf16.msra.mxu0 %v3069
    %3823 = vmatprep.subr.bf16.mxu0 %v3077
    %3824 = vmatpush1.bf16.msra.mxu0 %v3076
    %3825 = vmatprep.subr.bf16.mxu0 %v3084
    %3826 = vmatpush1.bf16.msra.mxu0 %v3083
    %3827 = vmatprep.subr.bf16.mxu0 %v3091
    %3828 = vmatpush1.bf16.msra.mxu0 %v3090
    %3829 = vmatprep.subr.bf16.mxu0 %v3098
    %3830 = vmatpush1.bf16.msra.mxu0 %v3097
    %3831 = vmatprep.subr.bf16.mxu0 %v3105
    %3832 = vmatpush1.bf16.msra.mxu0 %v3104
    %3833 = vmatprep.subr.bf16.mxu0 %v3112
    %3834 = vmatpush1.bf16.msra.mxu0 %v3111
    %3835 = vmatprep.subr.bf16.mxu0 %v3119
    %3836 = vmatpush1.bf16.msra.mxu0 %v3118
    %3837 = vmatprep.subr.bf16.mxu0 %v3126
    %3838 = vmatpush1.bf16.msra.mxu0 %v3125
    %3839 = vmatprep.mubr.bf16.mxu0 %v2777
    %3840 = vmatmul.mubr.bf16.gmra.mrb[0].mxu0 %v2776
    %v3841 = vpop.f32.mrb[0].mxu0
    %v3842 = vadd.f32 %v3789, %v3841
    %v3843 = vpop.f32.mrb[0].mxu0
    %v3844 = vadd.f32 %v3791, %v3843
    %v3845 = vpop.f32.mrb[0].mxu0
    %v3846 = vadd.f32 %v3793, %v3845
    %v3847 = vpop.f32.mrb[0].mxu0
    %v3848 = vadd.f32 %v3795, %v3847
    %3849 = vmatprep.mubr.bf16.mxu0 %v2785
    %3850 = vmatmul.mubr.bf16.gmra.mrb[0].mxu0 %v2784
    %v3851 = vpop.f32.mrb[0].mxu0
    %v3852 = vadd.f32 %v3799, %v3851
    %v3853 = vpop.f32.mrb[0].mxu0
    %v3854 = vadd.f32 %v3801, %v3853
    %v3855 = vpop.f32.mrb[0].mxu0
    %v3856 = vadd.f32 %v3803, %v3855
    %v3857 = vpop.f32.mrb[0].mxu0
    %v3858 = vadd.f32 %v3805, %v3857
    %3859 = vdwg.mxu0
    %3860 = vmatprep.subr.bf16.mxu0 %v3133
    %3861 = vmatpush1.bf16.msra.mxu0 %v3132
    %3862 = vmatprep.subr.bf16.mxu0 %v3140
    %3863 = vmatpush1.bf16.msra.mxu0 %v3139
    %3864 = vmatprep.subr.bf16.mxu0 %v3147
    %3865 = vmatpush1.bf16.msra.mxu0 %v3146
    %3866 = vmatprep.subr.bf16.mxu0 %v3154
    %3867 = vmatpush1.bf16.msra.mxu0 %v3153
    %3868 = vmatprep.subr.bf16.mxu0 %v3161
    %3869 = vmatpush1.bf16.msra.mxu0 %v3160
    %3870 = vmatprep.subr.bf16.mxu0 %v3168
    %3871 = vmatpush1.bf16.msra.mxu0 %v3167
    %3872 = vmatprep.subr.bf16.mxu0 %v3175
    %3873 = vmatpush1.bf16.msra.mxu0 %v3174
    %3874 = vmatprep.subr.bf16.mxu0 %v3182
    %3875 = vmatpush1.bf16.msra.mxu0 %v3181
    %3876 = vmatprep.subr.bf16.mxu0 %v3189
    %3877 = vmatpush1.bf16.msra.mxu0 %v3188
    %3878 = vmatprep.subr.bf16.mxu0 %v3196
    %3879 = vmatpush1.bf16.msra.mxu0 %v3195
    %3880 = vmatprep.subr.bf16.mxu0 %v3203
    %3881 = vmatpush1.bf16.msra.mxu0 %v3202
    %3882 = vmatprep.subr.bf16.mxu0 %v3210
    %3883 = vmatpush1.bf16.msra.mxu0 %v3209
    %3884 = vmatprep.subr.bf16.mxu0 %v3217
    %3885 = vmatpush1.bf16.msra.mxu0 %v3216
    %3886 = vmatprep.subr.bf16.mxu0 %v3224
    %3887 = vmatpush1.bf16.msra.mxu0 %v3223
    %3888 = vmatprep.subr.bf16.mxu0 %v3231
    %3889 = vmatpush1.bf16.msra.mxu0 %v3230
    %3890 = vmatprep.subr.bf16.mxu0 %v3238
    %3891 = vmatpush1.bf16.msra.mxu0 %v3237
    %3892 = vmatprep.mubr.bf16.mxu0 %v2779
    %3893 = vmatmul.mubr.bf16.gmra.mrb[0].mxu0 %v2778
    %v3894 = vpop.f32.mrb[0].mxu0
    %v3895 = vadd.f32 %v3842, %v3894
    %v3896 = vpop.f32.mrb[0].mxu0
    %v3897 = vadd.f32 %v3844, %v3896
    %v3898 = vpop.f32.mrb[0].mxu0
    %v3899 = vadd.f32 %v3846, %v3898
    %v3900 = vpop.f32.mrb[0].mxu0
    %v3901 = vadd.f32 %v3848, %v3900
    %3902 = vmatprep.mubr.bf16.mxu0 %v2787
    %3903 = vmatmul.mubr.bf16.gmra.mrb[0].mxu0 %v2786
    %v3904 = vpop.f32.mrb[0].mxu0
    %v3905 = vadd.f32 %v3852, %v3904
    %v3906 = vpop.f32.mrb[0].mxu0
    %v3907 = vadd.f32 %v3854, %v3906
    %v3908 = vpop.f32.mrb[0].mxu0
    %v3909 = vadd.f32 %v3856, %v3908
    %v3910 = vpop.f32.mrb[0].mxu0
    %v3911 = vadd.f32 %v3858, %v3910
    %3912 = vdwg.mxu0
    %3913 = vmatprep.subr.bf16.mxu0 0
    %3914 = vmatpush1.bf16.msra.mxu0 %v2798
    %3915 = vmatprep.subr.bf16.mxu0 0
    %3916 = vmatpush1.bf16.msra.mxu0 %v2805
    %3917 = vmatprep.subr.bf16.mxu0 0
    %3918 = vmatpush1.bf16.msra.mxu0 %v2812
    %3919 = vmatprep.subr.bf16.mxu0 0
    %3920 = vmatpush1.bf16.msra.mxu0 %v2819
    %3921 = vmatprep.subr.bf16.mxu0 0
    %3922 = vmatpush1.bf16.msra.mxu0 %v2826
    %3923 = vmatprep.subr.bf16.mxu0 0
    %3924 = vmatpush1.bf16.msra.mxu0 %v2833
    %3925 = vmatprep.subr.bf16.mxu0 0
    %3926 = vmatpush1.bf16.msra.mxu0 %v2840
    %3927 = vmatprep.subr.bf16.mxu0 0
    %3928 = vmatpush1.bf16.msra.mxu0 %v2847
    %3929 = vmatprep.subr.bf16.mxu0 0
    %3930 = vmatpush1.bf16.msra.mxu0 %v2854
    %3931 = vmatprep.subr.bf16.mxu0 0
    %3932 = vmatpush1.bf16.msra.mxu0 %v2861
    %3933 = vmatprep.subr.bf16.mxu0 0
    %3934 = vmatpush1.bf16.msra.mxu0 %v2868
    %3935 = vmatprep.subr.bf16.mxu0 0
    %3936 = vmatpush1.bf16.msra.mxu0 %v2875
    %3937 = vmatprep.subr.bf16.mxu0 0
    %3938 = vmatpush1.bf16.msra.mxu0 %v2882
    %3939 = vmatprep.subr.bf16.mxu0 0
    %3940 = vmatpush1.bf16.msra.mxu0 %v2889
    %3941 = vmatprep.subr.bf16.mxu0 0
    %3942 = vmatpush1.bf16.msra.mxu0 %v2896
    %3943 = vmatprep.subr.bf16.mxu0 0
    %3944 = vmatpush1.bf16.msra.mxu0 %v2903
    %3945 = vmatprep.mubr.bf16.mxu0 %v2773
    %3946 = vmatmul.mubr.bf16.gmra.mrb[0].mxu0 %v2772
    %v3947 = vpop.f32.mrb[0].mxu0
    %v3948 = vadd.f32 %v3269, %v3947
    %v3949 = vpop.f32.mrb[0].mxu0
    %v3950 = vpop.f32.mrb[0].mxu0
    %v3951 = vadd.f32 %v3269, %v3950
    %v3952 = vpop.f32.mrb[0].mxu0
    %3953 = vmatprep.mubr.bf16.mxu0 %v2781
    %3954 = vmatmul.mubr.bf16.gmra.mrb[0].mxu0 %v2780
    %v3955 = vpop.f32.mrb[0].mxu0
    %v3956 = vadd.f32 %v3269, %v3955
    %v3957 = vpop.f32.mrb[0].mxu0
    %v3958 = vpop.f32.mrb[0].mxu0
    %v3959 = vadd.f32 %v3269, %v3958
    %v3960 = vpop.f32.mrb[0].mxu0
    %3961 = vdwg.mxu0
    %3962 = vmatprep.subr.bf16.mxu0 0
    %3963 = vmatpush1.bf16.msra.mxu0 %v2910
    %3964 = vmatprep.subr.bf16.mxu0 0
    %3965 = vmatpush1.bf16.msra.mxu0 %v2917
    %3966 = vmatprep.subr.bf16.mxu0 0
    %3967 = vmatpush1.bf16.msra.mxu0 %v2924
    %3968 = vmatprep.subr.bf16.mxu0 0
    %3969 = vmatpush1.bf16.msra.mxu0 %v2931
    %3970 = vmatprep.subr.bf16.mxu0 0
    %3971 = vmatpush1.bf16.msra.mxu0 %v2938
    %3972 = vmatprep.subr.bf16.mxu0 0
    %3973 = vmatpush1.bf16.msra.mxu0 %v2945
    %3974 = vmatprep.subr.bf16.mxu0 0
    %3975 = vmatpush1.bf16.msra.mxu0 %v2952
    %3976 = vmatprep.subr.bf16.mxu0 0
    %3977 = vmatpush1.bf16.msra.mxu0 %v2959
    %3978 = vmatprep.subr.bf16.mxu0 0
    %3979 = vmatpush1.bf16.msra.mxu0 %v2966
    %3980 = vmatprep.subr.bf16.mxu0 0
    %3981 = vmatpush1.bf16.msra.mxu0 %v2973
    %3982 = vmatprep.subr.bf16.mxu0 0
    %3983 = vmatpush1.bf16.msra.mxu0 %v2980
    %3984 = vmatprep.subr.bf16.mxu0 0
    %3985 = vmatpush1.bf16.msra.mxu0 %v2987
    %3986 = vmatprep.subr.bf16.mxu0 0
    %3987 = vmatpush1.bf16.msra.mxu0 %v2994
    %3988 = vmatprep.subr.bf16.mxu0 0
    %3989 = vmatpush1.bf16.msra.mxu0 %v3001
    %3990 = vmatprep.subr.bf16.mxu0 0
    %3991 = vmatpush1.bf16.msra.mxu0 %v3008
    %3992 = vmatprep.subr.bf16.mxu0 0
    %3993 = vmatpush1.bf16.msra.mxu0 %v3015
    %3994 = vmatprep.mubr.bf16.mxu0 %v2775
    %3995 = vmatmul.mubr.bf16.gmra.mrb[0].mxu0 %v2774
    %v3996 = vpop.f32.mrb[0].mxu0
    %v3997 = vadd.f32 %v3948, %v3996
    %v3998 = vpop.f32.mrb[0].mxu0
    %v3999 = vpop.f32.mrb[0].mxu0
    %v4000 = vadd.f32 %v3951, %v3999
    %v4001 = vpop.f32.mrb[0].mxu0
    %4002 = vmatprep.mubr.bf16.mxu0 %v2783
    %4003 = vmatmul.mubr.bf16.gmra.mrb[0].mxu0 %v2782
    %v4004 = vpop.f32.mrb[0].mxu0
    %v4005 = vadd.f32 %v3956, %v4004
    %v4006 = vpop.f32.mrb[0].mxu0
    %v4007 = vpop.f32.mrb[0].mxu0
    %v4008 = vadd.f32 %v3959, %v4007
    %v4009 = vpop.f32.mrb[0].mxu0
    %4010 = vdwg.mxu0
    %4011 = vmatprep.subr.bf16.mxu0 0
    %4012 = vmatpush1.bf16.msra.mxu0 %v3022
    %4013 = vmatprep.subr.bf16.mxu0 0
    %4014 = vmatpush1.bf16.msra.mxu0 %v3029
    %4015 = vmatprep.subr.bf16.mxu0 0
    %4016 = vmatpush1.bf16.msra.mxu0 %v3036
    %4017 = vmatprep.subr.bf16.mxu0 0
    %4018 = vmatpush1.bf16.msra.mxu0 %v3043
    %4019 = vmatprep.subr.bf16.mxu0 0
    %4020 = vmatpush1.bf16.msra.mxu0 %v3050
    %4021 = vmatprep.subr.bf16.mxu0 0
    %4022 = vmatpush1.bf16.msra.mxu0 %v3057
    %4023 = vmatprep.subr.bf16.mxu0 0
    %4024 = vmatpush1.bf16.msra.mxu0 %v3064
    %4025 = vmatprep.subr.bf16.mxu0 0
    %4026 = vmatpush1.bf16.msra.mxu0 %v3071
    %4027 = vmatprep.subr.bf16.mxu0 0
    %4028 = vmatpush1.bf16.msra.mxu0 %v3078
    %4029 = vmatprep.subr.bf16.mxu0 0
    %4030 = vmatpush1.bf16.msra.mxu0 %v3085
    %4031 = vmatprep.subr.bf16.mxu0 0
    %4032 = vmatpush1.bf16.msra.mxu0 %v3092
    %4033 = vmatprep.subr.bf16.mxu0 0
    %4034 = vmatpush1.bf16.msra.mxu0 %v3099
    %4035 = vmatprep.subr.bf16.mxu0 0
    %4036 = vmatpush1.bf16.msra.mxu0 %v3106
    %4037 = vmatprep.subr.bf16.mxu0 0
    %4038 = vmatpush1.bf16.msra.mxu0 %v3113
    %4039 = vmatprep.subr.bf16.mxu0 0
    %4040 = vmatpush1.bf16.msra.mxu0 %v3120
    %4041 = vmatprep.subr.bf16.mxu0 0
    %4042 = vmatpush1.bf16.msra.mxu0 %v3127
    %4043 = vmatprep.mubr.bf16.mxu0 %v2777
    %4044 = vmatmul.mubr.bf16.gmra.mrb[0].mxu0 %v2776
    %v4045 = vpop.f32.mrb[0].mxu0
    %v4046 = vadd.f32 %v3997, %v4045
    %v4047 = vpop.f32.mrb[0].mxu0
    %v4048 = vpop.f32.mrb[0].mxu0
    %v4049 = vadd.f32 %v4000, %v4048
    %v4050 = vpop.f32.mrb[0].mxu0
    %4051 = vmatprep.mubr.bf16.mxu0 %v2785
    %4052 = vmatmul.mubr.bf16.gmra.mrb[0].mxu0 %v2784
    %v4053 = vpop.f32.mrb[0].mxu0
    %v4054 = vadd.f32 %v4005, %v4053
    %v4055 = vpop.f32.mrb[0].mxu0
    %v4056 = vpop.f32.mrb[0].mxu0
    %v4057 = vadd.f32 %v4008, %v4056
    %v4058 = vpop.f32.mrb[0].mxu0
    %4059 = vdwg.mxu0
    %4060 = vmatprep.subr.bf16.mxu0 0
    %4061 = vmatpush1.bf16.msra.mxu0 %v3134
    %4062 = vmatprep.subr.bf16.mxu0 0
    %4063 = vmatpush1.bf16.msra.mxu0 %v3141
    %4064 = vmatprep.subr.bf16.mxu0 0
    %4065 = vmatpush1.bf16.msra.mxu0 %v3148
    %4066 = vmatprep.subr.bf16.mxu0 0
    %4067 = vmatpush1.bf16.msra.mxu0 %v3155
    %4068 = vmatprep.subr.bf16.mxu0 0
    %4069 = vmatpush1.bf16.msra.mxu0 %v3162
    %4070 = vmatprep.subr.bf16.mxu0 0
    %4071 = vmatpush1.bf16.msra.mxu0 %v3169
    %4072 = vmatprep.subr.bf16.mxu0 0
    %4073 = vmatpush1.bf16.msra.mxu0 %v3176
    %4074 = vmatprep.subr.bf16.mxu0 0
    %4075 = vmatpush1.bf16.msra.mxu0 %v3183
    %4076 = vmatprep.subr.bf16.mxu0 0
    %4077 = vmatpush1.bf16.msra.mxu0 %v3190
    %4078 = vmatprep.subr.bf16.mxu0 0
    %4079 = vmatpush1.bf16.msra.mxu0 %v3197
    %4080 = vmatprep.subr.bf16.mxu0 0
    %4081 = vmatpush1.bf16.msra.mxu0 %v3204
    %4082 = vmatprep.subr.bf16.mxu0 0
    %4083 = vmatpush1.bf16.msra.mxu0 %v3211
    %4084 = vmatprep.subr.bf16.mxu0 0
    %4085 = vmatpush1.bf16.msra.mxu0 %v3218
    %4086 = vmatprep.subr.bf16.mxu0 0
    %4087 = vmatpush1.bf16.msra.mxu0 %v3225
    %4088 = vmatprep.subr.bf16.mxu0 0
    %4089 = vmatpush1.bf16.msra.mxu0 %v3232
    %4090 = vmatprep.subr.bf16.mxu0 0
    %4091 = vmatpush1.bf16.msra.mxu0 %v3239
    %4092 = vmatprep.mubr.bf16.mxu0 %v2779
    %4093 = vmatmul.mubr.bf16.gmra.mrb[0].mxu0 %v2778
    %v4094 = vpop.f32.mrb[0].mxu0
    %v4095 = vadd.f32 %v4046, %v4094
    %v4096 = vpop.f32.mrb[0].mxu0
    %v4097 = vpop.f32.mrb[0].mxu0
    %v4098 = vadd.f32 %v4049, %v4097
    %v4099 = vpop.f32.mrb[0].mxu0
    %4100 = vmatprep.mubr.bf16.mxu0 %v2787
    %4101 = vmatmul.mubr.bf16.gmra.mrb[0].mxu0 %v2786
    %v4102 = vpop.f32.mrb[0].mxu0
    %v4103 = vadd.f32 %v4054, %v4102
    %v4104 = vpop.f32.mrb[0].mxu0
    %v4105 = vpop.f32.mrb[0].mxu0
    %v4106 = vadd.f32 %v4057, %v4105
    %v4107 = vpop.f32.mrb[0].mxu0
    %4108 = vdwg.mxu0
    %v4109 = vtanh.pop %v3471
    %v4110 = vtanh.pop %v3473
    %v4111 = vtanh.pop %v3683
    %v4112 = vtanh.pop %v3685
    %v4113 = vtanh.pop %v3895
    %v4114 = vtanh.pop %v3897
    %v4115 = vtanh.pop %v4095
    %v4116 = vtanh.pop %v3475
    %v4117 = vtanh.pop %v3477
    %v4118 = vtanh.pop %v3687
    %v4119 = vtanh.pop %v3689
    %v4120 = vtanh.pop %v3899
    %v4121 = vtanh.pop %v3901
    %v4122 = vtanh.pop %v4098
    %v4123 = vtanh.pop %v3481
    %v4124 = vtanh.pop %v3483
    %v4125 = vtanh.pop %v3693
    %v4126 = vtanh.pop %v3695
    %v4127 = vtanh.pop %v3905
    %v4128 = vtanh.pop %v3907
    %v4129 = vtanh.pop %v4103
    %v4130 = vtanh.pop %v3485
    %v4131 = vtanh.pop %v3487
    %v4132 = vtanh.pop %v3697
    %v4133 = vtanh.pop %v3699
    %v4134 = vtanh.pop %v3909
    %v4135 = vtanh.pop %v3911
    %v4136 = vtanh.pop %v4106
    %4137 = vst [vmem:[#allocation26] sm:$0xff] %v4109
    %4138 = vst [vmem:[#allocation26 + $0x8] sm:$0xff] %v4110
    %4139 = vst [vmem:[#allocation26 + $0x10] sm:$0xff] %v4111
    %4140 = vst [vmem:[#allocation26 + $0x18] sm:$0xff] %v4112
    %4141 = vst [vmem:[#allocation26 + $0x20] sm:$0xff] %v4113
    %4142 = vst [vmem:[#allocation26 + $0x28] sm:$0xff] %v4114
    %4143 = vst [vmem:[#allocation26 + $0x30] sm:$0xff] %v4115
    %4144 = vst [vmem:[#allocation26 + $0x38] sm:$0xff] %v4116
    %4145 = vst [vmem:[#allocation26 + $0x40] sm:$0xff] %v4117
    %4146 = vst [vmem:[#allocation26 + $0x48] sm:$0xff] %v4118
    %4147 = vst [vmem:[#allocation26 + $0x50] sm:$0xff] %v4119
    %4148 = vst [vmem:[#allocation26 + $0x58] sm:$0xff] %v4120
    %4149 = vst [vmem:[#allocation26 + $0x60] sm:$0xff] %v4121
    %4150 = vst [vmem:[#allocation26 + $0x68] sm:$0xff] %v4122
    %4151 = vst [vmem:[#allocation26 + $0x70] sm:$0xff] %v4123
    %4152 = vst [vmem:[#allocation26 + $0x78] sm:$0xff] %v4124
    %4153 = vst [vmem:[#allocation26 + $0x80] sm:$0xff] %v4125
    %4154 = vst [vmem:[#allocation26 + $0x88] sm:$0xff] %v4126
    %4155 = vst [vmem:[#allocation26 + $0x90] sm:$0xff] %v4127
    %4156 = vst [vmem:[#allocation26 + $0x98] sm:$0xff] %v4128
    %4157 = vst [vmem:[#allocation26 + $0xa0] sm:$0xff] %v4129
    %4158 = vst [vmem:[#allocation26 + $0xa8] sm:$0xff] %v4130
    %4159 = vst [vmem:[#allocation26 + $0xb0] sm:$0xff] %v4131
    %4160 = vst [vmem:[#allocation26 + $0xb8] sm:$0xff] %v4132
    %4161 = vst [vmem:[#allocation26 + $0xc0] sm:$0xff] %v4133
    %4162 = vst [vmem:[#allocation26 + $0xc8] sm:$0xff] %v4134
    %4163 = vst [vmem:[#allocation26 + $0xd0] sm:$0xff] %v4135
    %4164 = vst [vmem:[#allocation26 + $0xd8] sm:$0xff] %v4136
    // Predicated region
    $region106: #{tpu_custom_call.1} parent=1 // pred_check
      _
    $region107: #{tpu_custom_call.1} parent=1 // pred_check_branch
      %4166 = sbr.rel (0) target = $region109
    $region108: #{tpu_custom_call.1} parent=1 // pred_region
      %s4168 = ssub.s32 3584, 3584
      %4169 = vsyncadd [#allocation7], %s4168
      %s4170 = sshll.u32 [#allocation26], 4
      %s4171 = int_to_ptr.vmem [resolvable:$true] %s4170
      %4176 = dma.vmem_to_hbm [thread:$0]  %s4171, 3584, %s15, [#allocation7], 896, 896, 56
    $region109: #{tpu_custom_call.1} parent=1 // pred_fallthru
      _
    // Predicated region
    $region110: #{tpu_custom_call.1} parent=1 // pred_check
      _
    $region111: #{tpu_custom_call.1} parent=1 // pred_check_branch
      %4178 = sbr.rel (0) target = $region113
    $region112: #{tpu_custom_call.1} parent=1 // pred_region
      %4179 = dma.done [#allocation7], 3584
    $region113: #{tpu_custom_call.1} parent=1 // pred_fallthru
      _
    %4180 = vsyncpa [#allocation6], 1
    %4181 = vsyncpa [#allocation9], 1
    %4182 = vsyncpa [#allocation12], 1
    %4183 = vsyncpa [#allocation15], 1
    %4184 = vsyncpa [#allocation18], 1
    %4185 = vsyncpa [#allocation21], 1
    %4186 = vsyncpa [#allocation24], 1
    %4187 = vsyncpa [#allocation7], 1
  %4188 = vsyncmov [#allocation4]
  %s4189 = vpop.sfrf %4188
  %p4190 = scmp.eq.s32.totalorder %s4189, 0
  %p4191 = pneg %p4190
  %4193 = shalt.err (%p4191)
  %s4194 = scalar_lea.sflag [#allocation4], 1
  %4195 = vsyncmov %s4194
  %s4196 = vpop.sfrf %4195
  %p4197 = scmp.eq.s32.totalorder %s4196, 0
  %p4198 = pneg %p4197
  %4200 = shalt.err (%p4198)

</llo_original>
